<compile_context>
chip_gen: v5e
topology: v5e:2x2
jax: 0.10.0
libtpu: 0.0.40
codegen_flags: <defaults>
</compile_context>

<pallas_src>
import functools

import jax
import jax.numpy as jnp
from jax import lax
from jax.experimental import pallas as pl
from jax.experimental.pallas import tpu as pltpu


# Fixed network structure of CNNSpatial.main:
#   Conv(3->256, 3x3, s2)+BN+ReLU ; Conv(256->128, s1)+BN+ReLU ;
#   Conv(128->64, s1)+BN+ReLU     ; Conv(64->16, s1)
_LAYER_SPECS = ((3, 256, 2, True), (256, 128, 1, True),
                (128, 64, 1, True), (64, 16, 1, False))


# ---------------------------------------------------------------------------
# Fused Pallas kernel: the full 4-layer conv stack for one batch element.
# ---------------------------------------------------------------------------
def _cnn_fused_kernel(p1_ref, w1_ref, s1_ref, w2_ref, s2_ref, w3_ref, s3_ref,
                      w4_ref, s4_ref, o_ref, act1_ref, act2_ref, act3_ref,
                      *, dims):
    (H1, _), (H2, W2), (H3, W3), (H4, W4) = dims

    def writer(ref):
        def _store(h, y):
            ref[h] = y.astype(ref.dtype)
        return _store

    # ---- Layer 1: stride-2 conv expressed as a per-row patch matmul --------
    s1 = s1_ref[...]                                   # (1, C1) f32
    w1 = w1_ref[...]                                   # (K1, C1) bf16
    store1 = writer(act1_ref)

    def l1_row(h, carry):
        p = p1_ref[h]                                  # (W1, K1) bf16
        acc = jnp.dot(p, w1, preferred_element_type=jnp.float32)
        store1(h, jnp.maximum(acc + s1, 0.0))
        return carry

    lax.fori_loop(0, H1, l1_row, 0)

    # ---- Layers 2-4: 3x3 stride-1 VALID conv, 9 accumulating matmuls / row --
    def conv3x3(in_ref, w_ref, s_ref, store_row, ho, wo, relu):
        shift = s_ref[...]                             # (1, Cout) f32, hoisted
        cout = w_ref.shape[-1]

        def row(h, carry):
            acc = jnp.zeros((wo, cout), jnp.float32)
            for dh in range(3):                        # statically unrolled
                xrow = in_ref[h + dh]                  # (Wi, Cin) f32, VMEM
                for dw in range(3):
                    xs = xrow[dw:dw + wo, :].astype(w_ref.dtype)   # -> bf16
                    acc = acc + jnp.dot(xs, w_ref[dh, dw],
                                        preferred_element_type=jnp.float32)
            y = acc + shift
            if relu:
                y = jnp.maximum(y, 0.0)
            store_row(h, y)
            return carry

        lax.fori_loop(0, ho, row, 0)

    conv3x3(act1_ref, w2_ref, s2_ref, writer(act2_ref), H2, W2, relu=True)
    conv3x3(act2_ref, w3_ref, s3_ref, writer(act3_ref), H3, W3, relu=True)
    conv3x3(act3_ref, w4_ref, s4_ref, writer(o_ref),    H4, W4, relu=False)


# ---------------------------------------------------------------------------
# Wrapper glue
# ---------------------------------------------------------------------------
def extract_patches_nhwc(x, stride):
    """x: [B,H,W,C] -> ([B,Ho,Wo,9*C], Ho, Wo) patches of a 3x3 VALID conv.

    Patch feature order along the last axis is (kh, kw, cin)."""
    _, H, W, _ = x.shape
    Ho = (H - 3) // stride + 1
    Wo = (W - 3) // stride + 1
    cols = []
    for dh in range(3):
        for dw in range(3):
            cols.append(x[:, dh:dh + stride * (Ho - 1) + 1:stride,
                             dw:dw + stride * (Wo - 1) + 1:stride, :])
    return jnp.concatenate(cols, axis=-1), Ho, Wo


def _fold_bn(w_hwio, conv_b, gamma, beta, mean, var, eps=1e-5):
    """Fold eval-mode BatchNorm + conv bias into (scaled weight, shift)."""
    w_hwio = w_hwio.astype(jnp.float32)
    conv_b = conv_b.astype(jnp.float32)
    if gamma is None:
        return w_hwio, conv_b
    inv = gamma / jnp.sqrt(var + eps)
    return w_hwio * inv[None, None, None, :], beta + (conv_b - mean) * inv


@jax.jit
def cnn_spatial_forward(x_nchw, params):
    """Reproduces CNNSpatial.forward: returns (output, output) in NCHW."""
    assert len(params) == 4
    x = jnp.transpose(x_nchw, (0, 2, 3, 1)).astype(jnp.float32)   # NCHW -> NHWC
    B = x.shape[0]

    folded = [_fold_bn(p["w"], p["b"], p["gamma"], p["beta"], p["mean"], p["var"])
              for p in params]
    (w1f, s1), (w2f, s2), (w3f, s3), (w4f, s4) = folded

    # Layer-1 (stride 2, Cin=3) im2col stays in the wrapper -- ~0.2 MB bf16.
    patches1, H1, W1 = extract_patches_nhwc(x, stride=_LAYER_SPECS[0][2])
    K1 = patches1.shape[-1]
    C1, C2, C3, C4 = w1f.shape[-1], w2f.shape[-1], w3f.shape[-1], w4f.shape[-1]
    H2, W2 = H1 - 2, W1 - 2
    H3, W3 = H2 - 2, W2 - 2
    H4, W4 = H3 - 2, W3 - 2
    dims = ((H1, W1), (H2, W2), (H3, W3), (H4, W4))

    bf16 = jnp.bfloat16
    kernel = functools.partial(_cnn_fused_kernel, dims=dims)

    out_nhwc = pl.pallas_call(
        kernel,
        out_shape=jax.ShapeDtypeStruct((B, H4, W4, C4), jnp.float32),
        grid_spec=pltpu.PrefetchScalarGridSpec(
            num_scalar_prefetch=0,
            grid=(B,),                            # one batch element / grid step
            in_specs=[
                pl.BlockSpec((None, H1, W1, K1), lambda b: (b, 0, 0, 0)),
                pl.BlockSpec((K1, C1), lambda b: (0, 0)),            # w1 (resident)
                pl.BlockSpec((1, C1), lambda b: (0, 0)),             # shift1
                pl.BlockSpec((3, 3, C1, C2), lambda b: (0, 0, 0, 0)),  # w2
                pl.BlockSpec((1, C2), lambda b: (0, 0)),             # shift2
                pl.BlockSpec((3, 3, C2, C3), lambda b: (0, 0, 0, 0)),  # w3
                pl.BlockSpec((1, C3), lambda b: (0, 0)),             # shift3
                pl.BlockSpec((3, 3, C3, C4), lambda b: (0, 0, 0, 0)),  # w4
                pl.BlockSpec((1, C4), lambda b: (0, 0)),             # shift4
            ],
            out_specs=pl.BlockSpec((None, H4, W4, C4), lambda b: (b, 0, 0, 0)),
            scratch_shapes=[
                pltpu.VMEM((H1, W1, C1), jnp.float32),   # layer-1 activations
                pltpu.VMEM((H2, W2, C2), jnp.float32),   # layer-2 activations
                pltpu.VMEM((H3, W3, C3), jnp.float32),   # layer-3 activations
            ],
        ),
        compiler_params=pltpu.CompilerParams(
            dimension_semantics=("parallel",),           # v7x: 2 TCs split batch
        ),
    )(
        patches1.astype(bf16),
        w1f.reshape(K1, C1).astype(bf16), s1.reshape(1, C1),
        w2f.astype(bf16), s2.reshape(1, C2),
        w3f.astype(bf16), s3.reshape(1, C3),
        w4f.astype(bf16), s4.reshape(1, C4),
    )

    out = jnp.transpose(out_nhwc, (0, 3, 1, 2))          # NHWC -> NCHW
    return out, out


# ---------------------------------------------------------------------------
# Deterministic parameter init (shapes from CNNSpatial.__init__)
# ---------------------------------------------------------------------------
def init_params(key):
    params = []
    for (cin, cout, _stride, has_bn) in _LAYER_SPECS:
        key, k1, k2, k3, k4 = jax.random.split(key, 5)
        w = jax.random.normal(k1, (3, 3, cin, cout), jnp.float32) * 0.05
        b = jax.random.normal(k2, (cout,), jnp.float32) * 0.05
        if has_bn:
            gamma = 1.0 + 0.1 * jax.random.normal(k3, (cout,), jnp.float32)
            beta = 0.1 * jax.random.normal(k4, (cout,), jnp.float32)
            mean = jnp.zeros((cout,), jnp.float32)
            var = jnp.ones((cout,), jnp.float32)
        else:
            gamma = beta = mean = var = None
        params.append(dict(w=w, b=b, gamma=gamma, beta=beta, mean=mean, var=var))
    return params


# ---------------------------------------------------------------------------
# Pure-JAX reference (eval-mode BN) to sanity-check the Pallas path
# ---------------------------------------------------------------------------
def reference_forward(x_nchw, params, eps=1e-5):
    x = x_nchw
    for p, (_cin, _cout, stride, has_bn) in zip(params, _LAYER_SPECS):
        w_oihw = jnp.transpose(p["w"], (3, 2, 0, 1))
        y = jax.lax.conv_general_dilated(
            x, w_oihw, (stride, stride), "VALID",
            dimension_numbers=("NCHW", "OIHW", "NCHW"),
            precision=jax.lax.Precision.HIGHEST)
        y = y + p["b"][None, :, None, None]
        if has_bn:
            inv = p["gamma"] / jnp.sqrt(p["var"] + eps)
            y = (y - p["mean"][None, :, None, None]) * inv[None, :, None, None] \
                + p["beta"][None, :, None, None]
            y = jnp.maximum(y, 0.0)
        x = y
    return x


if __name__ == "__main__":
    key = jax.random.PRNGKey(0)
    kx, kp = jax.random.split(key)

    # Input spatial size (60, 105) is what yields last_conv_size = [23, 46].
    batch = 2
    x = jax.random.uniform(kx, (batch, 3, 60, 105), jnp.float32)
    params = init_params(kp)

    out, out2 = cnn_spatial_forward(x, params)
    out = jax.block_until_ready(out)

    assert out.shape == (batch, 16, 23, 46), out.shape
    assert bool(jnp.all(jnp.isfinite(out)))

    ref = jax.block_until_ready(reference_forward(x, params))
    max_abs = float(jnp.max(jnp.abs(ref))) + 1e-6
    rel_err = float(jnp.max(jnp.abs(out - ref))) / max_abs
    assert rel_err < 1e-2, f"relative error too large: {rel_err}"

    print("KERNEL_OK")
</pallas_src>

<mosaic_0001>
module attributes {stable_mosaic.version = 11 : i64} {
  func.func @_cnn_fused_kernel(%arg0: i32, %arg1: memref<1x29x52x27xbf16, #tpu.memory_space<vmem>>, %arg2: memref<27x256xbf16, #tpu.memory_space<vmem>>, %arg3: memref<1x256xf32, #tpu.memory_space<vmem>>, %arg4: memref<3x3x256x128xbf16, #tpu.memory_space<vmem>>, %arg5: memref<1x128xf32, #tpu.memory_space<vmem>>, %arg6: memref<3x3x128x64xbf16, #tpu.memory_space<vmem>>, %arg7: memref<1x64xf32, #tpu.memory_space<vmem>>, %arg8: memref<3x3x64x16xbf16, #tpu.memory_space<vmem>>, %arg9: memref<1x16xf32, #tpu.memory_space<vmem>>, %arg10: memref<1x23x46x16xf32, #tpu.memory_space<vmem>>, %arg11: memref<29x52x256xf32, #tpu.memory_space<vmem>>, %arg12: memref<27x50x128xf32, #tpu.memory_space<vmem>>, %arg13: memref<25x48x64xf32, #tpu.memory_space<vmem>>) attributes {dimension_semantics = [#tpu.dimension_semantics<parallel>], iteration_bounds = array<i64: 2>, scalar_prefetch = 0 : i64, scratch_operands = 3 : i64, tpu.core_type = #tpu.core_type<tc>, window_params = [{transform_indices = @transform_0, window_bounds = array<i64: 1, 29, 52, 27>}, {pipeline_mode = #tpu.pipeline_mode<synchronous>, transform_indices = @transform_1, window_bounds = array<i64: 27, 256>}, {pipeline_mode = #tpu.pipeline_mode<synchronous>, transform_indices = @transform_2, window_bounds = array<i64: 1, 256>}, {pipeline_mode = #tpu.pipeline_mode<synchronous>, transform_indices = @transform_3, window_bounds = array<i64: 3, 3, 256, 128>}, {pipeline_mode = #tpu.pipeline_mode<synchronous>, transform_indices = @transform_4, window_bounds = array<i64: 1, 128>}, {pipeline_mode = #tpu.pipeline_mode<synchronous>, transform_indices = @transform_5, window_bounds = array<i64: 3, 3, 128, 64>}, {pipeline_mode = #tpu.pipeline_mode<synchronous>, transform_indices = @transform_6, window_bounds = array<i64: 1, 64>}, {pipeline_mode = #tpu.pipeline_mode<synchronous>, transform_indices = @transform_7, window_bounds = array<i64: 3, 3, 64, 16>}, {pipeline_mode = #tpu.pipeline_mode<synchronous>, transform_indices = @transform_8, window_bounds = array<i64: 1, 16>}, {transform_indices = @transform_9, window_bounds = array<i64: 1, 23, 46, 16>}]} {
    %c0 = arith.constant 0 : index
    %c0_0 = arith.constant 0 : index
    %0 = vector.load %arg3[%c0, %c0_0] : memref<1x256xf32, #tpu.memory_space<vmem>>, vector<1x256xf32>
    %c0_1 = arith.constant 0 : index
    %c0_2 = arith.constant 0 : index
    %1 = vector.load %arg2[%c0_1, %c0_2] : memref<27x256xbf16, #tpu.memory_space<vmem>>, vector<27x256xbf16>
    %c0_i32 = arith.constant 0 : i32
    %c29_i32 = arith.constant 29 : i32
    %2 = arith.addi %c0_i32, %c29_i32 : i32
    %c1_i32 = arith.constant 1 : i32
    scf.for %arg14 = %c0_i32 to %2 step %c1_i32  : i32 {
      %c0_19 = arith.constant 0 : index
      %9 = arith.index_cast %arg14 : i32 to index
      %c0_20 = arith.constant 0 : index
      %c0_21 = arith.constant 0 : index
      %10 = vector.load %arg1[%c0_19, %9, %c0_20, %c0_21] : memref<1x29x52x27xbf16, #tpu.memory_space<vmem>>, vector<1x1x52x27xbf16>
      %11 = vector.shape_cast %10 : vector<1x1x52x27xbf16> to vector<52x27xbf16>
      %cst = arith.constant dense<0.000000e+00> : vector<52x256xf32>
      %12 = tpu.matmul %11, %1, %cst {dimension_numbers = #tpu.dot_dimension_numbers<[1], [0], [0], [1], [0, 0, 1, 1], [], []>} : vector<52x27xbf16>, vector<27x256xbf16>, vector<52x256xf32> -> vector<52x256xf32>
      %13 = vector.broadcast %0 : vector<1x256xf32> to vector<52x256xf32>
      %14 = arith.addf %12, %13 : vector<52x256xf32>
      %cst_22 = arith.constant 0.000000e+00 : f32
      %15 = vector.broadcast %cst_22 : f32 to vector<52x256xf32>
      %16 = arith.maximumf %14, %15 : vector<52x256xf32>
      %17 = arith.index_cast %arg14 : i32 to index
      %c0_23 = arith.constant 0 : index
      %c0_24 = arith.constant 0 : index
      %18 = vector.load %arg11[%17, %c0_23, %c0_24] : memref<29x52x256xf32, #tpu.memory_space<vmem>>, vector<1x52x256xf32>
      %19 = vector.shape_cast %18 : vector<1x52x256xf32> to vector<52x256xf32>
      %20 = vector.shape_cast %16 : vector<52x256xf32> to vector<1x52x256xf32>
      tpu.vector_store %arg11[%17, %c0_23, %c0_24], %20 {strides = array<i32>} : memref<29x52x256xf32, #tpu.memory_space<vmem>>, vector<1x52x256xf32>,
    }
    %c29_i32_3 = arith.constant 29 : i32
    %c0_4 = arith.constant 0 : index
    %c0_5 = arith.constant 0 : index
    %3 = vector.load %arg5[%c0_4, %c0_5] : memref<1x128xf32, #tpu.memory_space<vmem>>, vector<1x128xf32>
    %c0_i32_6 = arith.constant 0 : i32
    %c27_i32 = arith.constant 27 : i32
    %4 = arith.addi %c0_i32_6, %c27_i32 : i32
    %c1_i32_7 = arith.constant 1 : i32
    scf.for %arg14 = %c0_i32_6 to %4 step %c1_i32_7  : i32 {
      %cst = arith.constant 0.000000e+00 : f32
      %9 = vector.broadcast %cst : f32 to vector<50x128xf32>
      %c0_i32_19 = arith.constant 0 : i32
      %10 = arith.addi %arg14, %c0_i32_19 : i32
      %11 = arith.index_cast %10 : i32 to index
      %c0_20 = arith.constant 0 : index
      %c0_21 = arith.constant 0 : index
      %12 = vector.load %arg11[%11, %c0_20, %c0_21] : memref<29x52x256xf32, #tpu.memory_space<vmem>>, vector<1x52x256xf32>
      %13 = vector.shape_cast %12 : vector<1x52x256xf32> to vector<52x256xf32>
      %14 = vector.extract_strided_slice %13 {offsets = [0, 0], sizes = [50, 256], strides = [1, 1]} : vector<52x256xf32> to vector<50x256xf32>
      %15 = arith.truncf %14 : vector<50x256xf32> to vector<50x256xbf16>
      %c0_22 = arith.constant 0 : index
      %c0_23 = arith.constant 0 : index
      %c0_24 = arith.constant 0 : index
      %c0_25 = arith.constant 0 : index
      %16 = vector.load %arg4[%c0_22, %c0_23, %c0_24, %c0_25] : memref<3x3x256x128xbf16, #tpu.memory_space<vmem>>, vector<1x1x256x128xbf16>
      %17 = vector.shape_cast %16 : vector<1x1x256x128xbf16> to vector<256x128xbf16>
      %cst_26 = arith.constant dense<0.000000e+00> : vector<50x128xf32>
      %18 = tpu.matmul %15, %17, %cst_26 {dimension_numbers = #tpu.dot_dimension_numbers<[1], [0], [0], [1], [0, 0, 1, 1], [], []>} : vector<50x256xbf16>, vector<256x128xbf16>, vector<50x128xf32> -> vector<50x128xf32>
      %19 = arith.addf %9, %18 : vector<50x128xf32>
      %20 = vector.extract_strided_slice %13 {offsets = [1, 0], sizes = [50, 256], strides = [1, 1]} : vector<52x256xf32> to vector<50x256xf32>
      %21 = arith.truncf %20 : vector<50x256xf32> to vector<50x256xbf16>
      %c0_27 = arith.constant 0 : index
      %c1 = arith.constant 1 : index
      %c0_28 = arith.constant 0 : index
      %c0_29 = arith.constant 0 : index
      %22 = vector.load %arg4[%c0_27, %c1, %c0_28, %c0_29] : memref<3x3x256x128xbf16, #tpu.memory_space<vmem>>, vector<1x1x256x128xbf16>
      %23 = vector.shape_cast %22 : vector<1x1x256x128xbf16> to vector<256x128xbf16>
      %cst_30 = arith.constant dense<0.000000e+00> : vector<50x128xf32>
      %24 = tpu.matmul %21, %23, %cst_30 {dimension_numbers = #tpu.dot_dimension_numbers<[1], [0], [0], [1], [0, 0, 1, 1], [], []>} : vector<50x256xbf16>, vector<256x128xbf16>, vector<50x128xf32> -> vector<50x128xf32>
      %25 = arith.addf %19, %24 : vector<50x128xf32>
      %26 = vector.extract_strided_slice %13 {offsets = [2, 0], sizes = [50, 256], strides = [1, 1]} : vector<52x256xf32> to vector<50x256xf32>
      %27 = arith.truncf %26 : vector<50x256xf32> to vector<50x256xbf16>
      %c0_31 = arith.constant 0 : index
      %c2 = arith.constant 2 : index
      %c0_32 = arith.constant 0 : index
      %c0_33 = arith.constant 0 : index
      %28 = vector.load %arg4[%c0_31, %c2, %c0_32, %c0_33] : memref<3x3x256x128xbf16, #tpu.memory_space<vmem>>, vector<1x1x256x128xbf16>
      %29 = vector.shape_cast %28 : vector<1x1x256x128xbf16> to vector<256x128xbf16>
      %cst_34 = arith.constant dense<0.000000e+00> : vector<50x128xf32>
      %30 = tpu.matmul %27, %29, %cst_34 {dimension_numbers = #tpu.dot_dimension_numbers<[1], [0], [0], [1], [0, 0, 1, 1], [], []>} : vector<50x256xbf16>, vector<256x128xbf16>, vector<50x128xf32> -> vector<50x128xf32>
      %31 = arith.addf %25, %30 : vector<50x128xf32>
      %c1_i32_35 = arith.constant 1 : i32
      %32 = arith.addi %arg14, %c1_i32_35 : i32
      %33 = arith.index_cast %32 : i32 to index
      %c0_36 = arith.constant 0 : index
      %c0_37 = arith.constant 0 : index
      %34 = vector.load %arg11[%33, %c0_36, %c0_37] : memref<29x52x256xf32, #tpu.memory_space<vmem>>, vector<1x52x256xf32>
      %35 = vector.shape_cast %34 : vector<1x52x256xf32> to vector<52x256xf32>
      %36 = vector.extract_strided_slice %35 {offsets = [0, 0], sizes = [50, 256], strides = [1, 1]} : vector<52x256xf32> to vector<50x256xf32>
      %37 = arith.truncf %36 : vector<50x256xf32> to vector<50x256xbf16>
      %c1_38 = arith.constant 1 : index
      %c0_39 = arith.constant 0 : index
      %c0_40 = arith.constant 0 : index
      %c0_41 = arith.constant 0 : index
      %38 = vector.load %arg4[%c1_38, %c0_39, %c0_40, %c0_41] : memref<3x3x256x128xbf16, #tpu.memory_space<vmem>>, vector<1x1x256x128xbf16>
      %39 = vector.shape_cast %38 : vector<1x1x256x128xbf16> to vector<256x128xbf16>
      %cst_42 = arith.constant dense<0.000000e+00> : vector<50x128xf32>
      %40 = tpu.matmul %37, %39, %cst_42 {dimension_numbers = #tpu.dot_dimension_numbers<[1], [0], [0], [1], [0, 0, 1, 1], [], []>} : vector<50x256xbf16>, vector<256x128xbf16>, vector<50x128xf32> -> vector<50x128xf32>
      %41 = arith.addf %31, %40 : vector<50x128xf32>
      %42 = vector.extract_strided_slice %35 {offsets = [1, 0], sizes = [50, 256], strides = [1, 1]} : vector<52x256xf32> to vector<50x256xf32>
      %43 = arith.truncf %42 : vector<50x256xf32> to vector<50x256xbf16>
      %c1_43 = arith.constant 1 : index
      %c1_44 = arith.constant 1 : index
      %c0_45 = arith.constant 0 : index
      %c0_46 = arith.constant 0 : index
      %44 = vector.load %arg4[%c1_43, %c1_44, %c0_45, %c0_46] : memref<3x3x256x128xbf16, #tpu.memory_space<vmem>>, vector<1x1x256x128xbf16>
      %45 = vector.shape_cast %44 : vector<1x1x256x128xbf16> to vector<256x128xbf16>
      %cst_47 = arith.constant dense<0.000000e+00> : vector<50x128xf32>
      %46 = tpu.matmul %43, %45, %cst_47 {dimension_numbers = #tpu.dot_dimension_numbers<[1], [0], [0], [1], [0, 0, 1, 1], [], []>} : vector<50x256xbf16>, vector<256x128xbf16>, vector<50x128xf32> -> vector<50x128xf32>
      %47 = arith.addf %41, %46 : vector<50x128xf32>
      %48 = vector.extract_strided_slice %35 {offsets = [2, 0], sizes = [50, 256], strides = [1, 1]} : vector<52x256xf32> to vector<50x256xf32>
      %49 = arith.truncf %48 : vector<50x256xf32> to vector<50x256xbf16>
      %c1_48 = arith.constant 1 : index
      %c2_49 = arith.constant 2 : index
      %c0_50 = arith.constant 0 : index
      %c0_51 = arith.constant 0 : index
      %50 = vector.load %arg4[%c1_48, %c2_49, %c0_50, %c0_51] : memref<3x3x256x128xbf16, #tpu.memory_space<vmem>>, vector<1x1x256x128xbf16>
      %51 = vector.shape_cast %50 : vector<1x1x256x128xbf16> to vector<256x128xbf16>
      %cst_52 = arith.constant dense<0.000000e+00> : vector<50x128xf32>
      %52 = tpu.matmul %49, %51, %cst_52 {dimension_numbers = #tpu.dot_dimension_numbers<[1], [0], [0], [1], [0, 0, 1, 1], [], []>} : vector<50x256xbf16>, vector<256x128xbf16>, vector<50x128xf32> -> vector<50x128xf32>
      %53 = arith.addf %47, %52 : vector<50x128xf32>
      %c2_i32 = arith.constant 2 : i32
      %54 = arith.addi %arg14, %c2_i32 : i32
      %55 = arith.index_cast %54 : i32 to index
      %c0_53 = arith.constant 0 : index
      %c0_54 = arith.constant 0 : index
      %56 = vector.load %arg11[%55, %c0_53, %c0_54] : memref<29x52x256xf32, #tpu.memory_space<vmem>>, vector<1x52x256xf32>
      %57 = vector.shape_cast %56 : vector<1x52x256xf32> to vector<52x256xf32>
      %58 = vector.extract_strided_slice %57 {offsets = [0, 0], sizes = [50, 256], strides = [1, 1]} : vector<52x256xf32> to vector<50x256xf32>
      %59 = arith.truncf %58 : vector<50x256xf32> to vector<50x256xbf16>
      %c2_55 = arith.constant 2 : index
      %c0_56 = arith.constant 0 : index
      %c0_57 = arith.constant 0 : index
      %c0_58 = arith.constant 0 : index
      %60 = vector.load %arg4[%c2_55, %c0_56, %c0_57, %c0_58] : memref<3x3x256x128xbf16, #tpu.memory_space<vmem>>, vector<1x1x256x128xbf16>
      %61 = vector.shape_cast %60 : vector<1x1x256x128xbf16> to vector<256x128xbf16>
      %cst_59 = arith.constant dense<0.000000e+00> : vector<50x128xf32>
      %62 = tpu.matmul %59, %61, %cst_59 {dimension_numbers = #tpu.dot_dimension_numbers<[1], [0], [0], [1], [0, 0, 1, 1], [], []>} : vector<50x256xbf16>, vector<256x128xbf16>, vector<50x128xf32> -> vector<50x128xf32>
      %63 = arith.addf %53, %62 : vector<50x128xf32>
      %64 = vector.extract_strided_slice %57 {offsets = [1, 0], sizes = [50, 256], strides = [1, 1]} : vector<52x256xf32> to vector<50x256xf32>
      %65 = arith.truncf %64 : vector<50x256xf32> to vector<50x256xbf16>
      %c2_60 = arith.constant 2 : index
      %c1_61 = arith.constant 1 : index
      %c0_62 = arith.constant 0 : index
      %c0_63 = arith.constant 0 : index
      %66 = vector.load %arg4[%c2_60, %c1_61, %c0_62, %c0_63] : memref<3x3x256x128xbf16, #tpu.memory_space<vmem>>, vector<1x1x256x128xbf16>
      %67 = vector.shape_cast %66 : vector<1x1x256x128xbf16> to vector<256x128xbf16>
      %cst_64 = arith.constant dense<0.000000e+00> : vector<50x128xf32>
      %68 = tpu.matmul %65, %67, %cst_64 {dimension_numbers = #tpu.dot_dimension_numbers<[1], [0], [0], [1], [0, 0, 1, 1], [], []>} : vector<50x256xbf16>, vector<256x128xbf16>, vector<50x128xf32> -> vector<50x128xf32>
      %69 = arith.addf %63, %68 : vector<50x128xf32>
      %70 = vector.extract_strided_slice %57 {offsets = [2, 0], sizes = [50, 256], strides = [1, 1]} : vector<52x256xf32> to vector<50x256xf32>
      %71 = arith.truncf %70 : vector<50x256xf32> to vector<50x256xbf16>
      %c2_65 = arith.constant 2 : index
      %c2_66 = arith.constant 2 : index
      %c0_67 = arith.constant 0 : index
      %c0_68 = arith.constant 0 : index
      %72 = vector.load %arg4[%c2_65, %c2_66, %c0_67, %c0_68] : memref<3x3x256x128xbf16, #tpu.memory_space<vmem>>, vector<1x1x256x128xbf16>
      %73 = vector.shape_cast %72 : vector<1x1x256x128xbf16> to vector<256x128xbf16>
      %cst_69 = arith.constant dense<0.000000e+00> : vector<50x128xf32>
      %74 = tpu.matmul %71, %73, %cst_69 {dimension_numbers = #tpu.dot_dimension_numbers<[1], [0], [0], [1], [0, 0, 1, 1], [], []>} : vector<50x256xbf16>, vector<256x128xbf16>, vector<50x128xf32> -> vector<50x128xf32>
      %75 = arith.addf %69, %74 : vector<50x128xf32>
      %76 = vector.broadcast %3 : vector<1x128xf32> to vector<50x128xf32>
      %77 = arith.addf %75, %76 : vector<50x128xf32>
      %cst_70 = arith.constant 0.000000e+00 : f32
      %78 = vector.broadcast %cst_70 : f32 to vector<50x128xf32>
      %79 = arith.maximumf %77, %78 : vector<50x128xf32>
      %80 = arith.index_cast %arg14 : i32 to index
      %c0_71 = arith.constant 0 : index
      %c0_72 = arith.constant 0 : index
      %81 = vector.load %arg12[%80, %c0_71, %c0_72] : memref<27x50x128xf32, #tpu.memory_space<vmem>>, vector<1x50x128xf32>
      %82 = vector.shape_cast %81 : vector<1x50x128xf32> to vector<50x128xf32>
      %83 = vector.shape_cast %79 : vector<50x128xf32> to vector<1x50x128xf32>
      tpu.vector_store %arg12[%80, %c0_71, %c0_72], %83 {strides = array<i32>} : memref<27x50x128xf32, #tpu.memory_space<vmem>>, vector<1x50x128xf32>,
    }
    %c27_i32_8 = arith.constant 27 : i32
    %c0_9 = arith.constant 0 : index
    %c0_10 = arith.constant 0 : index
    %5 = vector.load %arg7[%c0_9, %c0_10] : memref<1x64xf32, #tpu.memory_space<vmem>>, vector<1x64xf32>
    %c0_i32_11 = arith.constant 0 : i32
    %c25_i32 = arith.constant 25 : i32
    %6 = arith.addi %c0_i32_11, %c25_i32 : i32
    %c1_i32_12 = arith.constant 1 : i32
    scf.for %arg14 = %c0_i32_11 to %6 step %c1_i32_12  : i32 {
      %cst = arith.constant 0.000000e+00 : f32
      %9 = vector.broadcast %cst : f32 to vector<48x64xf32>
      %c0_i32_19 = arith.constant 0 : i32
      %10 = arith.addi %arg14, %c0_i32_19 : i32
      %11 = arith.index_cast %10 : i32 to index
      %c0_20 = arith.constant 0 : index
      %c0_21 = arith.constant 0 : index
      %12 = vector.load %arg12[%11, %c0_20, %c0_21] : memref<27x50x128xf32, #tpu.memory_space<vmem>>, vector<1x50x128xf32>
      %13 = vector.shape_cast %12 : vector<1x50x128xf32> to vector<50x128xf32>
      %14 = vector.extract_strided_slice %13 {offsets = [0, 0], sizes = [48, 128], strides = [1, 1]} : vector<50x128xf32> to vector<48x128xf32>
      %15 = arith.truncf %14 : vector<48x128xf32> to vector<48x128xbf16>
      %c0_22 = arith.constant 0 : index
      %c0_23 = arith.constant 0 : index
      %c0_24 = arith.constant 0 : index
      %c0_25 = arith.constant 0 : index
      %16 = vector.load %arg6[%c0_22, %c0_23, %c0_24, %c0_25] : memref<3x3x128x64xbf16, #tpu.memory_space<vmem>>, vector<1x1x128x64xbf16>
      %17 = vector.shape_cast %16 : vector<1x1x128x64xbf16> to vector<128x64xbf16>
      %cst_26 = arith.constant dense<0.000000e+00> : vector<48x64xf32>
      %18 = tpu.matmul %15, %17, %cst_26 {dimension_numbers = #tpu.dot_dimension_numbers<[1], [0], [0], [1], [0, 0, 1, 1], [], []>} : vector<48x128xbf16>, vector<128x64xbf16>, vector<48x64xf32> -> vector<48x64xf32>
      %19 = arith.addf %9, %18 : vector<48x64xf32>
      %20 = vector.extract_strided_slice %13 {offsets = [1, 0], sizes = [48, 128], strides = [1, 1]} : vector<50x128xf32> to vector<48x128xf32>
      %21 = arith.truncf %20 : vector<48x128xf32> to vector<48x128xbf16>
      %c0_27 = arith.constant 0 : index
      %c1 = arith.constant 1 : index
      %c0_28 = arith.constant 0 : index
      %c0_29 = arith.constant 0 : index
      %22 = vector.load %arg6[%c0_27, %c1, %c0_28, %c0_29] : memref<3x3x128x64xbf16, #tpu.memory_space<vmem>>, vector<1x1x128x64xbf16>
      %23 = vector.shape_cast %22 : vector<1x1x128x64xbf16> to vector<128x64xbf16>
      %cst_30 = arith.constant dense<0.000000e+00> : vector<48x64xf32>
      %24 = tpu.matmul %21, %23, %cst_30 {dimension_numbers = #tpu.dot_dimension_numbers<[1], [0], [0], [1], [0, 0, 1, 1], [], []>} : vector<48x128xbf16>, vector<128x64xbf16>, vector<48x64xf32> -> vector<48x64xf32>
      %25 = arith.addf %19, %24 : vector<48x64xf32>
      %26 = vector.extract_strided_slice %13 {offsets = [2, 0], sizes = [48, 128], strides = [1, 1]} : vector<50x128xf32> to vector<48x128xf32>
      %27 = arith.truncf %26 : vector<48x128xf32> to vector<48x128xbf16>
      %c0_31 = arith.constant 0 : index
      %c2 = arith.constant 2 : index
      %c0_32 = arith.constant 0 : index
      %c0_33 = arith.constant 0 : index
      %28 = vector.load %arg6[%c0_31, %c2, %c0_32, %c0_33] : memref<3x3x128x64xbf16, #tpu.memory_space<vmem>>, vector<1x1x128x64xbf16>
      %29 = vector.shape_cast %28 : vector<1x1x128x64xbf16> to vector<128x64xbf16>
      %cst_34 = arith.constant dense<0.000000e+00> : vector<48x64xf32>
      %30 = tpu.matmul %27, %29, %cst_34 {dimension_numbers = #tpu.dot_dimension_numbers<[1], [0], [0], [1], [0, 0, 1, 1], [], []>} : vector<48x128xbf16>, vector<128x64xbf16>, vector<48x64xf32> -> vector<48x64xf32>
      %31 = arith.addf %25, %30 : vector<48x64xf32>
      %c1_i32_35 = arith.constant 1 : i32
      %32 = arith.addi %arg14, %c1_i32_35 : i32
      %33 = arith.index_cast %32 : i32 to index
      %c0_36 = arith.constant 0 : index
      %c0_37 = arith.constant 0 : index
      %34 = vector.load %arg12[%33, %c0_36, %c0_37] : memref<27x50x128xf32, #tpu.memory_space<vmem>>, vector<1x50x128xf32>
      %35 = vector.shape_cast %34 : vector<1x50x128xf32> to vector<50x128xf32>
      %36 = vector.extract_strided_slice %35 {offsets = [0, 0], sizes = [48, 128], strides = [1, 1]} : vector<50x128xf32> to vector<48x128xf32>
      %37 = arith.truncf %36 : vector<48x128xf32> to vector<48x128xbf16>
      %c1_38 = arith.constant 1 : index
      %c0_39 = arith.constant 0 : index
      %c0_40 = arith.constant 0 : index
      %c0_41 = arith.constant 0 : index
      %38 = vector.load %arg6[%c1_38, %c0_39, %c0_40, %c0_41] : memref<3x3x128x64xbf16, #tpu.memory_space<vmem>>, vector<1x1x128x64xbf16>
      %39 = vector.shape_cast %38 : vector<1x1x128x64xbf16> to vector<128x64xbf16>
      %cst_42 = arith.constant dense<0.000000e+00> : vector<48x64xf32>
      %40 = tpu.matmul %37, %39, %cst_42 {dimension_numbers = #tpu.dot_dimension_numbers<[1], [0], [0], [1], [0, 0, 1, 1], [], []>} : vector<48x128xbf16>, vector<128x64xbf16>, vector<48x64xf32> -> vector<48x64xf32>
      %41 = arith.addf %31, %40 : vector<48x64xf32>
      %42 = vector.extract_strided_slice %35 {offsets = [1, 0], sizes = [48, 128], strides = [1, 1]} : vector<50x128xf32> to vector<48x128xf32>
      %43 = arith.truncf %42 : vector<48x128xf32> to vector<48x128xbf16>
      %c1_43 = arith.constant 1 : index
      %c1_44 = arith.constant 1 : index
      %c0_45 = arith.constant 0 : index
      %c0_46 = arith.constant 0 : index
      %44 = vector.load %arg6[%c1_43, %c1_44, %c0_45, %c0_46] : memref<3x3x128x64xbf16, #tpu.memory_space<vmem>>, vector<1x1x128x64xbf16>
      %45 = vector.shape_cast %44 : vector<1x1x128x64xbf16> to vector<128x64xbf16>
      %cst_47 = arith.constant dense<0.000000e+00> : vector<48x64xf32>
      %46 = tpu.matmul %43, %45, %cst_47 {dimension_numbers = #tpu.dot_dimension_numbers<[1], [0], [0], [1], [0, 0, 1, 1], [], []>} : vector<48x128xbf16>, vector<128x64xbf16>, vector<48x64xf32> -> vector<48x64xf32>
      %47 = arith.addf %41, %46 : vector<48x64xf32>
      %48 = vector.extract_strided_slice %35 {offsets = [2, 0], sizes = [48, 128], strides = [1, 1]} : vector<50x128xf32> to vector<48x128xf32>
      %49 = arith.truncf %48 : vector<48x128xf32> to vector<48x128xbf16>
      %c1_48 = arith.constant 1 : index
      %c2_49 = arith.constant 2 : index
      %c0_50 = arith.constant 0 : index
      %c0_51 = arith.constant 0 : index
      %50 = vector.load %arg6[%c1_48, %c2_49, %c0_50, %c0_51] : memref<3x3x128x64xbf16, #tpu.memory_space<vmem>>, vector<1x1x128x64xbf16>
      %51 = vector.shape_cast %50 : vector<1x1x128x64xbf16> to vector<128x64xbf16>
      %cst_52 = arith.constant dense<0.000000e+00> : vector<48x64xf32>
      %52 = tpu.matmul %49, %51, %cst_52 {dimension_numbers = #tpu.dot_dimension_numbers<[1], [0], [0], [1], [0, 0, 1, 1], [], []>} : vector<48x128xbf16>, vector<128x64xbf16>, vector<48x64xf32> -> vector<48x64xf32>
      %53 = arith.addf %47, %52 : vector<48x64xf32>
      %c2_i32 = arith.constant 2 : i32
      %54 = arith.addi %arg14, %c2_i32 : i32
      %55 = arith.index_cast %54 : i32 to index
      %c0_53 = arith.constant 0 : index
      %c0_54 = arith.constant 0 : index
      %56 = vector.load %arg12[%55, %c0_53, %c0_54] : memref<27x50x128xf32, #tpu.memory_space<vmem>>, vector<1x50x128xf32>
      %57 = vector.shape_cast %56 : vector<1x50x128xf32> to vector<50x128xf32>
      %58 = vector.extract_strided_slice %57 {offsets = [0, 0], sizes = [48, 128], strides = [1, 1]} : vector<50x128xf32> to vector<48x128xf32>
      %59 = arith.truncf %58 : vector<48x128xf32> to vector<48x128xbf16>
      %c2_55 = arith.constant 2 : index
      %c0_56 = arith.constant 0 : index
      %c0_57 = arith.constant 0 : index
      %c0_58 = arith.constant 0 : index
      %60 = vector.load %arg6[%c2_55, %c0_56, %c0_57, %c0_58] : memref<3x3x128x64xbf16, #tpu.memory_space<vmem>>, vector<1x1x128x64xbf16>
      %61 = vector.shape_cast %60 : vector<1x1x128x64xbf16> to vector<128x64xbf16>
      %cst_59 = arith.constant dense<0.000000e+00> : vector<48x64xf32>
      %62 = tpu.matmul %59, %61, %cst_59 {dimension_numbers = #tpu.dot_dimension_numbers<[1], [0], [0], [1], [0, 0, 1, 1], [], []>} : vector<48x128xbf16>, vector<128x64xbf16>, vector<48x64xf32> -> vector<48x64xf32>
      %63 = arith.addf %53, %62 : vector<48x64xf32>
      %64 = vector.extract_strided_slice %57 {offsets = [1, 0], sizes = [48, 128], strides = [1, 1]} : vector<50x128xf32> to vector<48x128xf32>
      %65 = arith.truncf %64 : vector<48x128xf32> to vector<48x128xbf16>
      %c2_60 = arith.constant 2 : index
      %c1_61 = arith.constant 1 : index
      %c0_62 = arith.constant 0 : index
      %c0_63 = arith.constant 0 : index
      %66 = vector.load %arg6[%c2_60, %c1_61, %c0_62, %c0_63] : memref<3x3x128x64xbf16, #tpu.memory_space<vmem>>, vector<1x1x128x64xbf16>
      %67 = vector.shape_cast %66 : vector<1x1x128x64xbf16> to vector<128x64xbf16>
      %cst_64 = arith.constant dense<0.000000e+00> : vector<48x64xf32>
      %68 = tpu.matmul %65, %67, %cst_64 {dimension_numbers = #tpu.dot_dimension_numbers<[1], [0], [0], [1], [0, 0, 1, 1], [], []>} : vector<48x128xbf16>, vector<128x64xbf16>, vector<48x64xf32> -> vector<48x64xf32>
      %69 = arith.addf %63, %68 : vector<48x64xf32>
      %70 = vector.extract_strided_slice %57 {offsets = [2, 0], sizes = [48, 128], strides = [1, 1]} : vector<50x128xf32> to vector<48x128xf32>
      %71 = arith.truncf %70 : vector<48x128xf32> to vector<48x128xbf16>
      %c2_65 = arith.constant 2 : index
      %c2_66 = arith.constant 2 : index
      %c0_67 = arith.constant 0 : index
      %c0_68 = arith.constant 0 : index
      %72 = vector.load %arg6[%c2_65, %c2_66, %c0_67, %c0_68] : memref<3x3x128x64xbf16, #tpu.memory_space<vmem>>, vector<1x1x128x64xbf16>
      %73 = vector.shape_cast %72 : vector<1x1x128x64xbf16> to vector<128x64xbf16>
      %cst_69 = arith.constant dense<0.000000e+00> : vector<48x64xf32>
      %74 = tpu.matmul %71, %73, %cst_69 {dimension_numbers = #tpu.dot_dimension_numbers<[1], [0], [0], [1], [0, 0, 1, 1], [], []>} : vector<48x128xbf16>, vector<128x64xbf16>, vector<48x64xf32> -> vector<48x64xf32>
      %75 = arith.addf %69, %74 : vector<48x64xf32>
      %76 = vector.broadcast %5 : vector<1x64xf32> to vector<48x64xf32>
      %77 = arith.addf %75, %76 : vector<48x64xf32>
      %cst_70 = arith.constant 0.000000e+00 : f32
      %78 = vector.broadcast %cst_70 : f32 to vector<48x64xf32>
      %79 = arith.maximumf %77, %78 : vector<48x64xf32>
      %80 = arith.index_cast %arg14 : i32 to index
      %c0_71 = arith.constant 0 : index
      %c0_72 = arith.constant 0 : index
      %81 = vector.load %arg13[%80, %c0_71, %c0_72] : memref<25x48x64xf32, #tpu.memory_space<vmem>>, vector<1x48x64xf32>
      %82 = vector.shape_cast %81 : vector<1x48x64xf32> to vector<48x64xf32>
      %83 = vector.shape_cast %79 : vector<48x64xf32> to vector<1x48x64xf32>
      tpu.vector_store %arg13[%80, %c0_71, %c0_72], %83 {strides = array<i32>} : memref<25x48x64xf32, #tpu.memory_space<vmem>>, vector<1x48x64xf32>,
    }
    %c25_i32_13 = arith.constant 25 : i32
    %c0_14 = arith.constant 0 : index
    %c0_15 = arith.constant 0 : index
    %7 = vector.load %arg9[%c0_14, %c0_15] : memref<1x16xf32, #tpu.memory_space<vmem>>, vector<1x16xf32>
    %c0_i32_16 = arith.constant 0 : i32
    %c23_i32 = arith.constant 23 : i32
    %8 = arith.addi %c0_i32_16, %c23_i32 : i32
    %c1_i32_17 = arith.constant 1 : i32
    scf.for %arg14 = %c0_i32_16 to %8 step %c1_i32_17  : i32 {
      %cst = arith.constant 0.000000e+00 : f32
      %9 = vector.broadcast %cst : f32 to vector<46x16xf32>
      %c0_i32_19 = arith.constant 0 : i32
      %10 = arith.addi %arg14, %c0_i32_19 : i32
      %11 = arith.index_cast %10 : i32 to index
      %c0_20 = arith.constant 0 : index
      %c0_21 = arith.constant 0 : index
      %12 = vector.load %arg13[%11, %c0_20, %c0_21] : memref<25x48x64xf32, #tpu.memory_space<vmem>>, vector<1x48x64xf32>
      %13 = vector.shape_cast %12 : vector<1x48x64xf32> to vector<48x64xf32>
      %14 = vector.extract_strided_slice %13 {offsets = [0, 0], sizes = [46, 64], strides = [1, 1]} : vector<48x64xf32> to vector<46x64xf32>
      %15 = arith.truncf %14 : vector<46x64xf32> to vector<46x64xbf16>
      %c0_22 = arith.constant 0 : index
      %c0_23 = arith.constant 0 : index
      %c0_24 = arith.constant 0 : index
      %c0_25 = arith.constant 0 : index
      %16 = vector.load %arg8[%c0_22, %c0_23, %c0_24, %c0_25] : memref<3x3x64x16xbf16, #tpu.memory_space<vmem>>, vector<1x1x64x16xbf16>
      %17 = vector.shape_cast %16 : vector<1x1x64x16xbf16> to vector<64x16xbf16>
      %cst_26 = arith.constant dense<0.000000e+00> : vector<46x16xf32>
      %18 = tpu.matmul %15, %17, %cst_26 {dimension_numbers = #tpu.dot_dimension_numbers<[1], [0], [0], [1], [0, 0, 1, 1], [], []>} : vector<46x64xbf16>, vector<64x16xbf16>, vector<46x16xf32> -> vector<46x16xf32>
      %19 = arith.addf %9, %18 : vector<46x16xf32>
      %20 = vector.extract_strided_slice %13 {offsets = [1, 0], sizes = [46, 64], strides = [1, 1]} : vector<48x64xf32> to vector<46x64xf32>
      %21 = arith.truncf %20 : vector<46x64xf32> to vector<46x64xbf16>
      %c0_27 = arith.constant 0 : index
      %c1 = arith.constant 1 : index
      %c0_28 = arith.constant 0 : index
      %c0_29 = arith.constant 0 : index
      %22 = vector.load %arg8[%c0_27, %c1, %c0_28, %c0_29] : memref<3x3x64x16xbf16, #tpu.memory_space<vmem>>, vector<1x1x64x16xbf16>
      %23 = vector.shape_cast %22 : vector<1x1x64x16xbf16> to vector<64x16xbf16>
      %cst_30 = arith.constant dense<0.000000e+00> : vector<46x16xf32>
      %24 = tpu.matmul %21, %23, %cst_30 {dimension_numbers = #tpu.dot_dimension_numbers<[1], [0], [0], [1], [0, 0, 1, 1], [], []>} : vector<46x64xbf16>, vector<64x16xbf16>, vector<46x16xf32> -> vector<46x16xf32>
      %25 = arith.addf %19, %24 : vector<46x16xf32>
      %26 = vector.extract_strided_slice %13 {offsets = [2, 0], sizes = [46, 64], strides = [1, 1]} : vector<48x64xf32> to vector<46x64xf32>
      %27 = arith.truncf %26 : vector<46x64xf32> to vector<46x64xbf16>
      %c0_31 = arith.constant 0 : index
      %c2 = arith.constant 2 : index
      %c0_32 = arith.constant 0 : index
      %c0_33 = arith.constant 0 : index
      %28 = vector.load %arg8[%c0_31, %c2, %c0_32, %c0_33] : memref<3x3x64x16xbf16, #tpu.memory_space<vmem>>, vector<1x1x64x16xbf16>
      %29 = vector.shape_cast %28 : vector<1x1x64x16xbf16> to vector<64x16xbf16>
      %cst_34 = arith.constant dense<0.000000e+00> : vector<46x16xf32>
      %30 = tpu.matmul %27, %29, %cst_34 {dimension_numbers = #tpu.dot_dimension_numbers<[1], [0], [0], [1], [0, 0, 1, 1], [], []>} : vector<46x64xbf16>, vector<64x16xbf16>, vector<46x16xf32> -> vector<46x16xf32>
      %31 = arith.addf %25, %30 : vector<46x16xf32>
      %c1_i32_35 = arith.constant 1 : i32
      %32 = arith.addi %arg14, %c1_i32_35 : i32
      %33 = arith.index_cast %32 : i32 to index
      %c0_36 = arith.constant 0 : index
      %c0_37 = arith.constant 0 : index
      %34 = vector.load %arg13[%33, %c0_36, %c0_37] : memref<25x48x64xf32, #tpu.memory_space<vmem>>, vector<1x48x64xf32>
      %35 = vector.shape_cast %34 : vector<1x48x64xf32> to vector<48x64xf32>
      %36 = vector.extract_strided_slice %35 {offsets = [0, 0], sizes = [46, 64], strides = [1, 1]} : vector<48x64xf32> to vector<46x64xf32>
      %37 = arith.truncf %36 : vector<46x64xf32> to vector<46x64xbf16>
      %c1_38 = arith.constant 1 : index
      %c0_39 = arith.constant 0 : index
      %c0_40 = arith.constant 0 : index
      %c0_41 = arith.constant 0 : index
      %38 = vector.load %arg8[%c1_38, %c0_39, %c0_40, %c0_41] : memref<3x3x64x16xbf16, #tpu.memory_space<vmem>>, vector<1x1x64x16xbf16>
      %39 = vector.shape_cast %38 : vector<1x1x64x16xbf16> to vector<64x16xbf16>
      %cst_42 = arith.constant dense<0.000000e+00> : vector<46x16xf32>
      %40 = tpu.matmul %37, %39, %cst_42 {dimension_numbers = #tpu.dot_dimension_numbers<[1], [0], [0], [1], [0, 0, 1, 1], [], []>} : vector<46x64xbf16>, vector<64x16xbf16>, vector<46x16xf32> -> vector<46x16xf32>
      %41 = arith.addf %31, %40 : vector<46x16xf32>
      %42 = vector.extract_strided_slice %35 {offsets = [1, 0], sizes = [46, 64], strides = [1, 1]} : vector<48x64xf32> to vector<46x64xf32>
      %43 = arith.truncf %42 : vector<46x64xf32> to vector<46x64xbf16>
      %c1_43 = arith.constant 1 : index
      %c1_44 = arith.constant 1 : index
      %c0_45 = arith.constant 0 : index
      %c0_46 = arith.constant 0 : index
      %44 = vector.load %arg8[%c1_43, %c1_44, %c0_45, %c0_46] : memref<3x3x64x16xbf16, #tpu.memory_space<vmem>>, vector<1x1x64x16xbf16>
      %45 = vector.shape_cast %44 : vector<1x1x64x16xbf16> to vector<64x16xbf16>
      %cst_47 = arith.constant dense<0.000000e+00> : vector<46x16xf32>
      %46 = tpu.matmul %43, %45, %cst_47 {dimension_numbers = #tpu.dot_dimension_numbers<[1], [0], [0], [1], [0, 0, 1, 1], [], []>} : vector<46x64xbf16>, vector<64x16xbf16>, vector<46x16xf32> -> vector<46x16xf32>
      %47 = arith.addf %41, %46 : vector<46x16xf32>
      %48 = vector.extract_strided_slice %35 {offsets = [2, 0], sizes = [46, 64], strides = [1, 1]} : vector<48x64xf32> to vector<46x64xf32>
      %49 = arith.truncf %48 : vector<46x64xf32> to vector<46x64xbf16>
      %c1_48 = arith.constant 1 : index
      %c2_49 = arith.constant 2 : index
      %c0_50 = arith.constant 0 : index
      %c0_51 = arith.constant 0 : index
      %50 = vector.load %arg8[%c1_48, %c2_49, %c0_50, %c0_51] : memref<3x3x64x16xbf16, #tpu.memory_space<vmem>>, vector<1x1x64x16xbf16>
      %51 = vector.shape_cast %50 : vector<1x1x64x16xbf16> to vector<64x16xbf16>
      %cst_52 = arith.constant dense<0.000000e+00> : vector<46x16xf32>
      %52 = tpu.matmul %49, %51, %cst_52 {dimension_numbers = #tpu.dot_dimension_numbers<[1], [0], [0], [1], [0, 0, 1, 1], [], []>} : vector<46x64xbf16>, vector<64x16xbf16>, vector<46x16xf32> -> vector<46x16xf32>
      %53 = arith.addf %47, %52 : vector<46x16xf32>
      %c2_i32 = arith.constant 2 : i32
      %54 = arith.addi %arg14, %c2_i32 : i32
      %55 = arith.index_cast %54 : i32 to index
      %c0_53 = arith.constant 0 : index
      %c0_54 = arith.constant 0 : index
      %56 = vector.load %arg13[%55, %c0_53, %c0_54] : memref<25x48x64xf32, #tpu.memory_space<vmem>>, vector<1x48x64xf32>
      %57 = vector.shape_cast %56 : vector<1x48x64xf32> to vector<48x64xf32>
      %58 = vector.extract_strided_slice %57 {offsets = [0, 0], sizes = [46, 64], strides = [1, 1]} : vector<48x64xf32> to vector<46x64xf32>
      %59 = arith.truncf %58 : vector<46x64xf32> to vector<46x64xbf16>
      %c2_55 = arith.constant 2 : index
      %c0_56 = arith.constant 0 : index
      %c0_57 = arith.constant 0 : index
      %c0_58 = arith.constant 0 : index
      %60 = vector.load %arg8[%c2_55, %c0_56, %c0_57, %c0_58] : memref<3x3x64x16xbf16, #tpu.memory_space<vmem>>, vector<1x1x64x16xbf16>
      %61 = vector.shape_cast %60 : vector<1x1x64x16xbf16> to vector<64x16xbf16>
      %cst_59 = arith.constant dense<0.000000e+00> : vector<46x16xf32>
      %62 = tpu.matmul %59, %61, %cst_59 {dimension_numbers = #tpu.dot_dimension_numbers<[1], [0], [0], [1], [0, 0, 1, 1], [], []>} : vector<46x64xbf16>, vector<64x16xbf16>, vector<46x16xf32> -> vector<46x16xf32>
      %63 = arith.addf %53, %62 : vector<46x16xf32>
      %64 = vector.extract_strided_slice %57 {offsets = [1, 0], sizes = [46, 64], strides = [1, 1]} : vector<48x64xf32> to vector<46x64xf32>
      %65 = arith.truncf %64 : vector<46x64xf32> to vector<46x64xbf16>
      %c2_60 = arith.constant 2 : index
      %c1_61 = arith.constant 1 : index
      %c0_62 = arith.constant 0 : index
      %c0_63 = arith.constant 0 : index
      %66 = vector.load %arg8[%c2_60, %c1_61, %c0_62, %c0_63] : memref<3x3x64x16xbf16, #tpu.memory_space<vmem>>, vector<1x1x64x16xbf16>
      %67 = vector.shape_cast %66 : vector<1x1x64x16xbf16> to vector<64x16xbf16>
      %cst_64 = arith.constant dense<0.000000e+00> : vector<46x16xf32>
      %68 = tpu.matmul %65, %67, %cst_64 {dimension_numbers = #tpu.dot_dimension_numbers<[1], [0], [0], [1], [0, 0, 1, 1], [], []>} : vector<46x64xbf16>, vector<64x16xbf16>, vector<46x16xf32> -> vector<46x16xf32>
      %69 = arith.addf %63, %68 : vector<46x16xf32>
      %70 = vector.extract_strided_slice %57 {offsets = [2, 0], sizes = [46, 64], strides = [1, 1]} : vector<48x64xf32> to vector<46x64xf32>
      %71 = arith.truncf %70 : vector<46x64xf32> to vector<46x64xbf16>
      %c2_65 = arith.constant 2 : index
      %c2_66 = arith.constant 2 : index
      %c0_67 = arith.constant 0 : index
      %c0_68 = arith.constant 0 : index
      %72 = vector.load %arg8[%c2_65, %c2_66, %c0_67, %c0_68] : memref<3x3x64x16xbf16, #tpu.memory_space<vmem>>, vector<1x1x64x16xbf16>
      %73 = vector.shape_cast %72 : vector<1x1x64x16xbf16> to vector<64x16xbf16>
      %cst_69 = arith.constant dense<0.000000e+00> : vector<46x16xf32>
      %74 = tpu.matmul %71, %73, %cst_69 {dimension_numbers = #tpu.dot_dimension_numbers<[1], [0], [0], [1], [0, 0, 1, 1], [], []>} : vector<46x64xbf16>, vector<64x16xbf16>, vector<46x16xf32> -> vector<46x16xf32>
      %75 = arith.addf %69, %74 : vector<46x16xf32>
      %76 = vector.broadcast %7 : vector<1x16xf32> to vector<46x16xf32>
      %77 = arith.addf %75, %76 : vector<46x16xf32>
      %c0_70 = arith.constant 0 : index
      %78 = arith.index_cast %arg14 : i32 to index
      %c0_71 = arith.constant 0 : index
      %c0_72 = arith.constant 0 : index
      %79 = vector.load %arg10[%c0_70, %78, %c0_71, %c0_72] : memref<1x23x46x16xf32, #tpu.memory_space<vmem>>, vector<1x1x46x16xf32>
      %80 = vector.shape_cast %79 : vector<1x1x46x16xf32> to vector<46x16xf32>
      %81 = vector.shape_cast %77 : vector<46x16xf32> to vector<1x1x46x16xf32>
      tpu.vector_store %arg10[%c0_70, %78, %c0_71, %c0_72], %81 {strides = array<i32>} : memref<1x23x46x16xf32, #tpu.memory_space<vmem>>, vector<1x1x46x16xf32>,
    }
    %c23_i32_18 = arith.constant 23 : i32
    return
  }
  func.func @transform_0(%arg0: i32) -> (i32, i32, i32, i32) {
    %c0_i32 = arith.constant 0 : i32
    %c0_i32_0 = arith.constant 0 : i32
    %c0_i32_1 = arith.constant 0 : i32
    %c0_i32_2 = arith.constant 0 : i32
    return %arg0, %c0_i32, %c0_i32_0, %c0_i32_1 : i32, i32, i32, i32
  }
  func.func @transform_1(%arg0: i32) -> (i32, i32) {
    %c0_i32 = arith.constant 0 : i32
    %c0_i32_0 = arith.constant 0 : i32
    %c0_i32_1 = arith.constant 0 : i32
    return %c0_i32, %c0_i32_0 : i32, i32
  }
  func.func @transform_2(%arg0: i32) -> (i32, i32) {
    %c0_i32 = arith.constant 0 : i32
    %c0_i32_0 = arith.constant 0 : i32
    %c0_i32_1 = arith.constant 0 : i32
    return %c0_i32, %c0_i32_0 : i32, i32
  }
  func.func @transform_3(%arg0: i32) -> (i32, i32, i32, i32) {
    %c0_i32 = arith.constant 0 : i32
    %c0_i32_0 = arith.constant 0 : i32
    %c0_i32_1 = arith.constant 0 : i32
    %c0_i32_2 = arith.constant 0 : i32
    %c0_i32_3 = arith.constant 0 : i32
    return %c0_i32, %c0_i32_0, %c0_i32_1, %c0_i32_2 : i32, i32, i32, i32
  }
  func.func @transform_4(%arg0: i32) -> (i32, i32) {
    %c0_i32 = arith.constant 0 : i32
    %c0_i32_0 = arith.constant 0 : i32
    %c0_i32_1 = arith.constant 0 : i32
    return %c0_i32, %c0_i32_0 : i32, i32
  }
  func.func @transform_5(%arg0: i32) -> (i32, i32, i32, i32) {
    %c0_i32 = arith.constant 0 : i32
    %c0_i32_0 = arith.constant 0 : i32
    %c0_i32_1 = arith.constant 0 : i32
    %c0_i32_2 = arith.constant 0 : i32
    %c0_i32_3 = arith.constant 0 : i32
    return %c0_i32, %c0_i32_0, %c0_i32_1, %c0_i32_2 : i32, i32, i32, i32
  }
  func.func @transform_6(%arg0: i32) -> (i32, i32) {
    %c0_i32 = arith.constant 0 : i32
    %c0_i32_0 = arith.constant 0 : i32
    %c0_i32_1 = arith.constant 0 : i32
    return %c0_i32, %c0_i32_0 : i32, i32
  }
  func.func @transform_7(%arg0: i32) -> (i32, i32, i32, i32) {
    %c0_i32 = arith.constant 0 : i32
    %c0_i32_0 = arith.constant 0 : i32
    %c0_i32_1 = arith.constant 0 : i32
    %c0_i32_2 = arith.constant 0 : i32
    %c0_i32_3 = arith.constant 0 : i32
    return %c0_i32, %c0_i32_0, %c0_i32_1, %c0_i32_2 : i32, i32, i32, i32
  }
  func.func @transform_8(%arg0: i32) -> (i32, i32) {
    %c0_i32 = arith.constant 0 : i32
    %c0_i32_0 = arith.constant 0 : i32
    %c0_i32_1 = arith.constant 0 : i32
    return %c0_i32, %c0_i32_0 : i32, i32
  }
  func.func @transform_9(%arg0: i32) -> (i32, i32, i32, i32) {
    %c0_i32 = arith.constant 0 : i32
    %c0_i32_0 = arith.constant 0 : i32
    %c0_i32_1 = arith.constant 0 : i32
    %c0_i32_2 = arith.constant 0 : i32
    return %arg0, %c0_i32, %c0_i32_0, %c0_i32_1 : i32, i32, i32, i32
  }
}

</mosaic_0001>

<llo_original>
// kernel: cnn_spatial_forward.1
$region0: #{cnn_spatial_forward.1}
  #allocation0 [shape = 'u32[]', space=smem, size = 0x4, offset = 0x4, fixed_abs, tag = 'smem constant byte address 0x4 - core index']
  #allocation1 [shape = 'u32[72,128]{1,0:T(1,128)}', space=vmem, size = 0x9000, scoped, tag = 'internal scratch']
  #allocation2 [shape = 'f32[29,52,256]{2,1,0:T(8,128)}', space=vmem, size = 0x196000, scoped, tag = 'scratch operand']
  #allocation3 [shape = 'f32[27,50,128]{2,1,0:T(8,128)}', space=vmem, size = 0xbd000, scoped, tag = 'scratch operand']
  #allocation4 [shape = 'f32[25,48,64]{2,1,0:T(8,128)}', space=vmem, size = 0x96000, scoped, tag = 'scratch operand']
  %s0 = inlined_call_operand.vmem [shape: bf16[2,29,52,27], index: 0, kind: input, shape index: {}]
  %s1 = inlined_call_operand.vmem [shape: bf16[27,256], index: 1, kind: input, shape index: {}]
  %s2 = inlined_call_operand.vmem [shape: f32[1,256], index: 2, kind: input, shape index: {}]
  %s3 = inlined_call_operand.vmem [shape: bf16[3,3,256,128], index: 3, kind: input, shape index: {}]
  %s4 = inlined_call_operand.vmem [shape: f32[1,128], index: 4, kind: input, shape index: {}]
  %s5 = inlined_call_operand.vmem [shape: bf16[3,3,128,64], index: 5, kind: input, shape index: {}]
  %s6 = inlined_call_operand.vmem [shape: f32[1,64], index: 6, kind: input, shape index: {}]
  %s7 = inlined_call_operand.vmem [shape: bf16[3,3,64,16], index: 7, kind: input, shape index: {}]
  %s8 = inlined_call_operand.vmem [shape: f32[1,16], index: 8, kind: input, shape index: {}]
  %s9 = inlined_call_operand.vmem [shape: f32[2,23,46,16], index: 9, kind: output, shape index: {}]
  %s10 = sld [smem:[#allocation0]]
  $region97: #{cnn_spatial_forward.1} parent=0
    _
  %s12 = ssub.s32 1, %s10
  %s13 = scalar_select 0, %s12, %s10
  loop: start=0, step=1, limit=4
  $region2: #{cnn_spatial_forward.1} parent=0 // loop_pre_header
    _
  $region3: #{cnn_spatial_forward.1} parent=0 // loop_header
    %s15 = sphi 0, %s19
    %p16 = scmp.ge.s32.totalorder %s15, 4
    %s25 = sphi 0, %s27
    %s28 = sphi 0, %s25
    %s29 = sphi 0, %s28
    %s45 = sphi 0, %s29
    %s49 = sphi 0, %s49
    %s51 = sphi 0, %s49
    %s52 = sphi 0, %s51
    %s66 = sphi 0, %s52
    %s70 = sphi 0, %s70
    %s72 = sphi 0, %s70
    %s73 = sphi 0, %s72
    %s87 = sphi 0, %s73
    %s91 = sphi 0, %s91
    %s93 = sphi 0, %s91
    %s94 = sphi 0, %s93
    %s108 = sphi 0, %s94
    %s112 = sphi 0, %s112
    %s114 = sphi 0, %s112
    %s115 = sphi 0, %s114
    %s129 = sphi 0, %s115
    %s133 = sphi 0, %s133
    %s135 = sphi 0, %s133
    %s136 = sphi 0, %s135
    %s150 = sphi 0, %s136
    %s154 = sphi 0, %s154
    %s156 = sphi 0, %s154
    %s157 = sphi 0, %s156
    %s171 = sphi 0, %s157
    %s175 = sphi 0, %s175
    %s177 = sphi 0, %s175
    %s178 = sphi 0, %s177
    %s192 = sphi 0, %s178
    %s196 = sphi 0, %s196
    %s198 = sphi 0, %s196
    %s199 = sphi 0, %s198
    %s213 = sphi 0, %s199
    %s219 = sphi 0, %s221
    %s222 = sphi 0, %s219
    %s223 = sphi 0, %s222
    %s239 = sphi 0, %s223
  $region4: #{cnn_spatial_forward.1} parent=0 // loop_header_branch
    %18 = sbr.rel (%p16) target = $region8
  $region5: #{cnn_spatial_forward.1} parent=0 // loop_body
    %s20 = ssub.s32 %s15, 1
    %s21 = ssub.s32 %s15, 2
    %s22 = sadd.s32 %s15, 1
    %s23 = ssub.s32 %s15, %s22
    %p24 = scmp.eq.s32.totalorder %s23, 0
    %s26 = sadd.s32 %s25, 1
    %s27 = scalar_select %p24, %s25, %s26
    %p30 = pneg %p24
    %p31 = scmp.eq.s32.totalorder %s15, 1
    %p32 = por %p30, %p31
    %p33 = scmp.ne.s32.totalorder %s25, %s28
    %p34 = scmp.eq.s32.totalorder %s15, 0
    %p35 = por %p33, %p34
    %p36 = scmp.ne.s32.totalorder %s25, %s28
    %p37 = scmp.eq.s32.totalorder %s20, 1
    %p38 = por %p36, %p37
    %p39 = scmp.ne.s32.totalorder %s28, %s29
    %p40 = scmp.eq.s32.totalorder %s20, 0
    %p41 = por %p39, %p40
    %p42 = scmp.ne.s32.totalorder %s28, %s29
    %p43 = scmp.eq.s32.totalorder %s21, 1
    %p44 = por %p42, %p43
    %p46 = scmp.ne.s32.totalorder %s29, %s45
    %p47 = scmp.eq.s32.totalorder %s21, 0
    %p48 = por %p46, %p47
    %s50 = sadd.s32 %s49, 1
    %p53 = scmp.eq.s32.totalorder %s15, 1
    %p54 = scmp.ne.s32.totalorder %s49, %s51
    %p55 = scmp.eq.s32.totalorder %s15, 0
    %p56 = por %p54, %p55
    %p57 = scmp.ne.s32.totalorder %s49, %s51
    %p58 = scmp.eq.s32.totalorder %s20, 1
    %p59 = por %p57, %p58
    %p60 = scmp.ne.s32.totalorder %s51, %s52
    %p61 = scmp.eq.s32.totalorder %s20, 0
    %p62 = por %p60, %p61
    %p63 = scmp.ne.s32.totalorder %s51, %s52
    %p64 = scmp.eq.s32.totalorder %s21, 1
    %p65 = por %p63, %p64
    %p67 = scmp.ne.s32.totalorder %s52, %s66
    %p68 = scmp.eq.s32.totalorder %s21, 0
    %p69 = por %p67, %p68
    %s71 = sadd.s32 %s70, 1
    %p74 = scmp.eq.s32.totalorder %s15, 1
    %p75 = scmp.ne.s32.totalorder %s70, %s72
    %p76 = scmp.eq.s32.totalorder %s15, 0
    %p77 = por %p75, %p76
    %p78 = scmp.ne.s32.totalorder %s70, %s72
    %p79 = scmp.eq.s32.totalorder %s20, 1
    %p80 = por %p78, %p79
    %p81 = scmp.ne.s32.totalorder %s72, %s73
    %p82 = scmp.eq.s32.totalorder %s20, 0
    %p83 = por %p81, %p82
    %p84 = scmp.ne.s32.totalorder %s72, %s73
    %p85 = scmp.eq.s32.totalorder %s21, 1
    %p86 = por %p84, %p85
    %p88 = scmp.ne.s32.totalorder %s73, %s87
    %p89 = scmp.eq.s32.totalorder %s21, 0
    %p90 = por %p88, %p89
    %s92 = sadd.s32 %s91, 1
    %p95 = scmp.eq.s32.totalorder %s15, 1
    %p96 = scmp.ne.s32.totalorder %s91, %s93
    %p97 = scmp.eq.s32.totalorder %s15, 0
    %p98 = por %p96, %p97
    %p99 = scmp.ne.s32.totalorder %s91, %s93
    %p100 = scmp.eq.s32.totalorder %s20, 1
    %p101 = por %p99, %p100
    %p102 = scmp.ne.s32.totalorder %s93, %s94
    %p103 = scmp.eq.s32.totalorder %s20, 0
    %p104 = por %p102, %p103
    %p105 = scmp.ne.s32.totalorder %s93, %s94
    %p106 = scmp.eq.s32.totalorder %s21, 1
    %p107 = por %p105, %p106
    %p109 = scmp.ne.s32.totalorder %s94, %s108
    %p110 = scmp.eq.s32.totalorder %s21, 0
    %p111 = por %p109, %p110
    %s113 = sadd.s32 %s112, 1
    %p116 = scmp.eq.s32.totalorder %s15, 1
    %p117 = scmp.ne.s32.totalorder %s112, %s114
    %p118 = scmp.eq.s32.totalorder %s15, 0
    %p119 = por %p117, %p118
    %p120 = scmp.ne.s32.totalorder %s112, %s114
    %p121 = scmp.eq.s32.totalorder %s20, 1
    %p122 = por %p120, %p121
    %p123 = scmp.ne.s32.totalorder %s114, %s115
    %p124 = scmp.eq.s32.totalorder %s20, 0
    %p125 = por %p123, %p124
    %p126 = scmp.ne.s32.totalorder %s114, %s115
    %p127 = scmp.eq.s32.totalorder %s21, 1
    %p128 = por %p126, %p127
    %p130 = scmp.ne.s32.totalorder %s115, %s129
    %p131 = scmp.eq.s32.totalorder %s21, 0
    %p132 = por %p130, %p131
    %s134 = sadd.s32 %s133, 1
    %p137 = scmp.eq.s32.totalorder %s15, 1
    %p138 = scmp.ne.s32.totalorder %s133, %s135
    %p139 = scmp.eq.s32.totalorder %s15, 0
    %p140 = por %p138, %p139
    %p141 = scmp.ne.s32.totalorder %s133, %s135
    %p142 = scmp.eq.s32.totalorder %s20, 1
    %p143 = por %p141, %p142
    %p144 = scmp.ne.s32.totalorder %s135, %s136
    %p145 = scmp.eq.s32.totalorder %s20, 0
    %p146 = por %p144, %p145
    %p147 = scmp.ne.s32.totalorder %s135, %s136
    %p148 = scmp.eq.s32.totalorder %s21, 1
    %p149 = por %p147, %p148
    %p151 = scmp.ne.s32.totalorder %s136, %s150
    %p152 = scmp.eq.s32.totalorder %s21, 0
    %p153 = por %p151, %p152
    %s155 = sadd.s32 %s154, 1
    %p158 = scmp.eq.s32.totalorder %s15, 1
    %p159 = scmp.ne.s32.totalorder %s154, %s156
    %p160 = scmp.eq.s32.totalorder %s15, 0
    %p161 = por %p159, %p160
    %p162 = scmp.ne.s32.totalorder %s154, %s156
    %p163 = scmp.eq.s32.totalorder %s20, 1
    %p164 = por %p162, %p163
    %p165 = scmp.ne.s32.totalorder %s156, %s157
    %p166 = scmp.eq.s32.totalorder %s20, 0
    %p167 = por %p165, %p166
    %p168 = scmp.ne.s32.totalorder %s156, %s157
    %p169 = scmp.eq.s32.totalorder %s21, 1
    %p170 = por %p168, %p169
    %p172 = scmp.ne.s32.totalorder %s157, %s171
    %p173 = scmp.eq.s32.totalorder %s21, 0
    %p174 = por %p172, %p173
    %s176 = sadd.s32 %s175, 1
    %p179 = scmp.eq.s32.totalorder %s15, 1
    %p180 = scmp.ne.s32.totalorder %s175, %s177
    %p181 = scmp.eq.s32.totalorder %s15, 0
    %p182 = por %p180, %p181
    %p183 = scmp.ne.s32.totalorder %s175, %s177
    %p184 = scmp.eq.s32.totalorder %s20, 1
    %p185 = por %p183, %p184
    %p186 = scmp.ne.s32.totalorder %s177, %s178
    %p187 = scmp.eq.s32.totalorder %s20, 0
    %p188 = por %p186, %p187
    %p189 = scmp.ne.s32.totalorder %s177, %s178
    %p190 = scmp.eq.s32.totalorder %s21, 1
    %p191 = por %p189, %p190
    %p193 = scmp.ne.s32.totalorder %s178, %s192
    %p194 = scmp.eq.s32.totalorder %s21, 0
    %p195 = por %p193, %p194
    %s197 = sadd.s32 %s196, 1
    %p200 = scmp.eq.s32.totalorder %s15, 1
    %p201 = scmp.ne.s32.totalorder %s196, %s198
    %p202 = scmp.eq.s32.totalorder %s15, 0
    %p203 = por %p201, %p202
    %p204 = scmp.ne.s32.totalorder %s196, %s198
    %p205 = scmp.eq.s32.totalorder %s20, 1
    %p206 = por %p204, %p205
    %p207 = scmp.ne.s32.totalorder %s198, %s199
    %p208 = scmp.eq.s32.totalorder %s20, 0
    %p209 = por %p207, %p208
    %p210 = scmp.ne.s32.totalorder %s198, %s199
    %p211 = scmp.eq.s32.totalorder %s21, 1
    %p212 = por %p210, %p211
    %p214 = scmp.ne.s32.totalorder %s199, %s213
    %p215 = scmp.eq.s32.totalorder %s21, 0
    %p216 = por %p214, %p215
    %s217 = ssub.s32 %s15, %s22
    %p218 = scmp.eq.s32.totalorder %s217, 0
    %s220 = sadd.s32 %s219, 1
    %s221 = scalar_select %p218, %s219, %s220
    %p224 = pneg %p218
    %p225 = scmp.eq.s32.totalorder %s15, 1
    %p226 = por %p224, %p225
    %p227 = scmp.ne.s32.totalorder %s219, %s222
    %p228 = scmp.eq.s32.totalorder %s15, 0
    %p229 = por %p227, %p228
    %p230 = scmp.ne.s32.totalorder %s219, %s222
    %p231 = scmp.eq.s32.totalorder %s20, 1
    %p232 = por %p230, %p231
    %p233 = scmp.ne.s32.totalorder %s222, %s223
    %p234 = scmp.eq.s32.totalorder %s20, 0
    %p235 = por %p233, %p234
    %p236 = scmp.ne.s32.totalorder %s222, %s223
    %p237 = scmp.eq.s32.totalorder %s21, 1
    %p238 = por %p236, %p237
    %p240 = scmp.ne.s32.totalorder %s223, %s239
    %p241 = scmp.eq.s32.totalorder %s21, 0
    %p242 = por %p240, %p241
    %p243 = scmp.le.s32.totalorder 1, %s15
    %p244 = scmp.lt.s32.totalorder %s15, 3
    %p245 = pnand %p243, %p244
    %p246 = pneg %p245
    // Predicated region
    $region9: #{cnn_spatial_forward.1} parent=5 // pred_check
      _
    $region10: #{cnn_spatial_forward.1} parent=5 // pred_check_branch
      %248 = sbr.rel (%p245) target = $region12
    $region11: #{cnn_spatial_forward.1} parent=5 // pred_region
      %s249 = ssub.s32 %s15, 1
      // Predicated region
      $region13: #{cnn_spatial_forward.1} parent=11 // pred_check
        %p250 = pneg %p62
      $region14: #{cnn_spatial_forward.1} parent=11 // pred_check_branch
        %252 = sbr.rel (%p250) target = $region16
      $region15: #{cnn_spatial_forward.1} parent=11 // pred_region
        _
      $region16: #{cnn_spatial_forward.1} parent=11 // pred_fallthru
        _
      // Predicated region
      $region17: #{cnn_spatial_forward.1} parent=11 // pred_check
        %p253 = pneg %p83
      $region18: #{cnn_spatial_forward.1} parent=11 // pred_check_branch
        %255 = sbr.rel (%p253) target = $region20
      $region19: #{cnn_spatial_forward.1} parent=11 // pred_region
        _
      $region20: #{cnn_spatial_forward.1} parent=11 // pred_fallthru
        _
      // Predicated region
      $region21: #{cnn_spatial_forward.1} parent=11 // pred_check
        %p256 = pneg %p104
      $region22: #{cnn_spatial_forward.1} parent=11 // pred_check_branch
        %258 = sbr.rel (%p256) target = $region24
      $region23: #{cnn_spatial_forward.1} parent=11 // pred_region
        _
      $region24: #{cnn_spatial_forward.1} parent=11 // pred_fallthru
        _
      // Predicated region
      $region25: #{cnn_spatial_forward.1} parent=11 // pred_check
        %p259 = pneg %p125
      $region26: #{cnn_spatial_forward.1} parent=11 // pred_check_branch
        %261 = sbr.rel (%p259) target = $region28
      $region27: #{cnn_spatial_forward.1} parent=11 // pred_region
        _
      $region28: #{cnn_spatial_forward.1} parent=11 // pred_fallthru
        _
      // Predicated region
      $region29: #{cnn_spatial_forward.1} parent=11 // pred_check
        %p262 = pneg %p146
      $region30: #{cnn_spatial_forward.1} parent=11 // pred_check_branch
        %264 = sbr.rel (%p262) target = $region32
      $region31: #{cnn_spatial_forward.1} parent=11 // pred_region
        _
      $region32: #{cnn_spatial_forward.1} parent=11 // pred_fallthru
        _
      // Predicated region
      $region33: #{cnn_spatial_forward.1} parent=11 // pred_check
        %p265 = pneg %p167
      $region34: #{cnn_spatial_forward.1} parent=11 // pred_check_branch
        %267 = sbr.rel (%p265) target = $region36
      $region35: #{cnn_spatial_forward.1} parent=11 // pred_region
        _
      $region36: #{cnn_spatial_forward.1} parent=11 // pred_fallthru
        _
      // Predicated region
      $region37: #{cnn_spatial_forward.1} parent=11 // pred_check
        %p268 = pneg %p188
      $region38: #{cnn_spatial_forward.1} parent=11 // pred_check_branch
        %270 = sbr.rel (%p268) target = $region40
      $region39: #{cnn_spatial_forward.1} parent=11 // pred_region
        _
      $region40: #{cnn_spatial_forward.1} parent=11 // pred_fallthru
        _
      // Predicated region
      $region41: #{cnn_spatial_forward.1} parent=11 // pred_check
        %p271 = pneg %p209
      $region42: #{cnn_spatial_forward.1} parent=11 // pred_check_branch
        %273 = sbr.rel (%p271) target = $region44
      $region43: #{cnn_spatial_forward.1} parent=11 // pred_region
        _
      $region44: #{cnn_spatial_forward.1} parent=11 // pred_fallthru
        _
    $region12: #{cnn_spatial_forward.1} parent=5 // pred_fallthru
      _
    %p274 = scmp.lt.s32.totalorder %s15, 2
    // Predicated region
    $region45: #{cnn_spatial_forward.1} parent=5 // pred_check
      %p275 = pneg %p274
    $region46: #{cnn_spatial_forward.1} parent=5 // pred_check_branch
      %277 = sbr.rel (%p275) target = $region48
    $region47: #{cnn_spatial_forward.1} parent=5 // pred_region
      // Predicated region
      $region49: #{cnn_spatial_forward.1} parent=47 // pred_check
        %p278 = pneg %p35
      $region50: #{cnn_spatial_forward.1} parent=47 // pred_check_branch
        %280 = sbr.rel (%p278) target = $region52
      $region51: #{cnn_spatial_forward.1} parent=47 // pred_region
        %p281 = scmp.lt.s32.totalorder %s15, 1
        %s282 = scalar_select %p281, %s15, 1
        %s283 = smul.addr %s282, 203
        %s284 = smul.addr %s283, 4
        %s285 = scalar_lea.vmem %s0, %s284
      $region52: #{cnn_spatial_forward.1} parent=47 // pred_fallthru
        _
    $region48: #{cnn_spatial_forward.1} parent=5 // pred_fallthru
      _
    %p286 = scmp.le.s32.totalorder 1, %s15
    %p287 = scmp.lt.s32.totalorder %s15, 3
    %p288 = pnand %p286, %p287
    %p289 = pneg %p288
    // Predicated region
    $region53: #{cnn_spatial_forward.1} parent=5 // pred_check
      _
    $region54: #{cnn_spatial_forward.1} parent=5 // pred_check_branch
      %291 = sbr.rel (%p288) target = $region56
    $region55: #{cnn_spatial_forward.1} parent=5 // pred_region
      %s292 = ssub.s32 %s15, 1
      %p293 = scmp.lt.s32.totalorder %s20, 1
      %s294 = scalar_select %p293, %s20, 1
      %s295 = smul.addr %s294, 203
      %s296 = smul.addr %s295, 4
      %s297 = scalar_lea.vmem %s0, %s296
      %p298 = pneg %p41
      %p299 = pneg %p38
      %p300 = pneg %p62
      %p301 = pneg %p59
      %p302 = pneg %p83
      %p303 = pneg %p80
      %p304 = pneg %p104
      %p305 = pneg %p101
      %p306 = pneg %p125
      %p307 = pneg %p122
      %p308 = pneg %p146
      %p309 = pneg %p143
      %p310 = pneg %p167
      %p311 = pneg %p164
      %p312 = pneg %p188
      %p313 = pneg %p185
      %p314 = pneg %p209
      %p315 = pneg %p206
      %p316 = pneg %p235
      %p317 = pneg %p232
      %p318 = scmp.lt.s32.totalorder %s20, 1
      %s319 = scalar_select %p318, %s20, 1
      %s320 = smul.addr %s319, 138
      %s321 = smul.addr %s320, 8
      %s322 = scalar_lea.vmem %s9, %s321
      %p323 = scmp.lt.s32.totalorder %s20, 1
      %s324 = scalar_select %p323, %s20, 1
      %s325 = smul.addr %s324, 203
      %s326 = smul.addr %s325, 4
      %s327 = scalar_lea.vmem %s0, %s326
      %p328 = scmp.lt.s32.totalorder %s20, 1
      %s329 = scalar_select %p328, %s20, 1
      %s330 = smul.addr %s329, 138
      %s331 = smul.addr %s330, 8
      %s332 = scalar_lea.vmem %s9, %s331
      %v334 = vld [vmem:[%s2] sm:$0x3]
      %v335 = vld [vmem:[%s1] sm:$0xff]
      %v336 = vld [vmem:[%s1 + $0x8] sm:$0xff]
      %v337 = vld [vmem:[%s1 + $0x10] sm:$0xff]
      %v338 = vld [vmem:[%s1 + $0x18] sm:$0x33]
      loop: start=0, step=1, limit=29
      $region57: #{cnn_spatial_forward.1} parent=55 // loop_pre_header
        _
      $region58: #{cnn_spatial_forward.1} parent=55 // loop_header
        %s340 = sphi 0, %s344
        %p341 = scmp.ge.s32.totalorder %s340, 29
      $region59: #{cnn_spatial_forward.1} parent=55 // loop_header_branch
        %343 = sbr.rel (%p341) target = $region63
      $region60: #{cnn_spatial_forward.1} parent=55 // loop_body
        %s345 = smul.u32 %s340, 7
        %s346 = smul.addr %s345, 4
        %s347 = scalar_lea.vmem %s327, %s346
        %v348 = vld [vmem:[%s347] sm:$0xf]
        %v349 = vld [vmem:[%s347 + $0x4] sm:$0xf]
        %v350 = vld [vmem:[%s347 + $0x8] sm:$0xf]
        %v351 = vld [vmem:[%s347 + $0xc] sm:$0xf]
        %v352 = vld [vmem:[%s347 + $0x10] sm:$0xf]
        %v353 = vld [vmem:[%s347 + $0x14] sm:$0xf]
        %v354 = vld [vmem:[%s347 + $0x18] sm:$0x3]
        %v356 = vperm.slane %v334, 0
        %v357 = vperm.slane %v334, 1
        %v367 = vunpack.c.l.b16 %v348
        %v368 = vunpack.c.l.b16 %v349
        %v369 = vunpack.c.l.b16 %v350
        %v370 = vunpack.c.l.b16 %v351
        %v371 = vunpack.c.l.b16 %v352
        %v372 = vunpack.c.l.b16 %v353
        %v373 = vunpack.c.l.b16 %v354
        %v374 = vpack.c.b16 %v368, %v367
        %v375 = vpack.c.b16 %v370, %v369
        %v376 = vpack.c.b16 %v372, %v371
        %v377 = vpack.c.b16 %v373, %v373
        %v382 = vunpack.c.l.b16 %v335
        %v383 = vunpack.c.h.b16 %v335
        %v384 = vunpack.c.l.b16 %v336
        %v385 = vunpack.c.h.b16 %v336
        %v386 = vunpack.c.l.b16 %v337
        %v387 = vunpack.c.h.b16 %v337
        %v388 = vunpack.c.l.b16 %v338
        %v389 = vunpack.c.h.b16 %v338
        %v390 = vpack.c.b16 %v384, %v382
        %v391 = vpack.c.b16 %v385, %v383
        %v392 = vpack.c.b16 %v388, %v386
        %v393 = vpack.c.b16 %v389, %v387
        %vm396 = vcmask 220160
        %v398 = vsel %vm396, %v374, 0
        %v401 = vsel %vm396, %v375, 0
        %v404 = vsel %vm396, %v376, 0
        %v407 = vsel %vm396, %v377, 0
        %vm409 = vcmask 1044480
        %vm410 = vcmask 1045504
        %v411 = vsel %vm409, 4294967295, 65535
        %v412 = vsel %vm410, %v411, 0
        %v414 = vand.u32 %v392, %v412
        %v417 = vand.u32 %v393, %v412
        %419 = vmatpush.bf16.msra.mxu0 0
        %420 = vmatpush.bf16.msra.mxu0 0
        %421 = vmatpush.bf16.msra.mxu0 0
        %422 = vmatpush.bf16.msra.mxu0 0
        %423 = vmatpush.bf16.msra.mxu0 0
        %424 = vmatpush.bf16.msra.mxu0 0
        %425 = vmatpush.bf16.msra.mxu0 %v414
        %426 = vmatpush.bf16.msra.mxu0 %v390
        %427 = vmatmul.bf16.gmra.mxu0 %v398
        %v428 = vpop.f32.mrf.mxu0
        %v429 = vadd.f32 %v356, %v428
        %v430 = vpop.f32.mrf.mxu0
        %v431 = vadd.f32 %v356, %v430
        %432 = vmatmul.bf16.gmra.mxu0 %v401
        %v433 = vpop.f32.mrf.mxu0
        %v434 = vadd.f32 %v356, %v433
        %v435 = vpop.f32.mrf.mxu0
        %v436 = vadd.f32 %v356, %v435
        %437 = vmatmul.bf16.gmra.mxu0 %v404
        %v438 = vpop.f32.mrf.mxu0
        %v439 = vadd.f32 %v356, %v438
        %v440 = vpop.f32.mrf.mxu0
        %v441 = vadd.f32 %v356, %v440
        %442 = vmatmul.bf16.gmra.mxu0 %v407
        %v443 = vpop.f32.mrf.mxu0
        %v444 = vadd.f32 %v356, %v443
        %v445 = vpop.f32.mrf.mxu0
        %446 = vdwg.mxu0
        %447 = vmatpush.bf16.msra.mxu0 0
        %448 = vmatpush.bf16.msra.mxu0 0
        %449 = vmatpush.bf16.msra.mxu0 0
        %450 = vmatpush.bf16.msra.mxu0 0
        %451 = vmatpush.bf16.msra.mxu0 0
        %452 = vmatpush.bf16.msra.mxu0 0
        %453 = vmatpush.bf16.msra.mxu0 %v417
        %454 = vmatpush.bf16.msra.mxu0 %v391
        %455 = vmatmul.bf16.gmra.mxu0 %v398
        %v456 = vpop.f32.mrf.mxu0
        %v457 = vadd.f32 %v357, %v456
        %v458 = vpop.f32.mrf.mxu0
        %v459 = vadd.f32 %v357, %v458
        %460 = vmatmul.bf16.gmra.mxu0 %v401
        %v461 = vpop.f32.mrf.mxu0
        %v462 = vadd.f32 %v357, %v461
        %v463 = vpop.f32.mrf.mxu0
        %v464 = vadd.f32 %v357, %v463
        %465 = vmatmul.bf16.gmra.mxu0 %v404
        %v466 = vpop.f32.mrf.mxu0
        %v467 = vadd.f32 %v357, %v466
        %v468 = vpop.f32.mrf.mxu0
        %v469 = vadd.f32 %v357, %v468
        %470 = vmatmul.bf16.gmra.mxu0 %v407
        %v471 = vpop.f32.mrf.mxu0
        %v472 = vadd.f32 %v357, %v471
        %v473 = vpop.f32.mrf.mxu0
        %474 = vdwg.mxu0
        %v475 = vmax.f32 %v429, 0.0
        %v476 = vmax.f32 %v457, 0.0
        %v477 = vmax.f32 %v431, 0.0
        %v478 = vmax.f32 %v459, 0.0
        %v479 = vmax.f32 %v434, 0.0
        %v480 = vmax.f32 %v462, 0.0
        %v481 = vmax.f32 %v436, 0.0
        %v482 = vmax.f32 %v464, 0.0
        %v483 = vmax.f32 %v439, 0.0
        %v484 = vmax.f32 %v467, 0.0
        %v485 = vmax.f32 %v441, 0.0
        %v486 = vmax.f32 %v469, 0.0
        %v487 = vmax.f32 %v444, 0.0
        %v488 = vmax.f32 %v472, 0.0
        %s489 = smul.u32 %s340, 14
        %s490 = smul.addr %s489, 8
        %s491 = scalar_lea.vmem [#allocation2], %s490
        %492 = vst [vmem:[%s491] sm:$0xff] %v475
        %493 = vst [vmem:[%s491 + $0x8] sm:$0xff] %v476
        %494 = vst [vmem:[%s491 + $0x10] sm:$0xff] %v477
        %495 = vst [vmem:[%s491 + $0x18] sm:$0xff] %v478
        %496 = vst [vmem:[%s491 + $0x20] sm:$0xff] %v479
        %497 = vst [vmem:[%s491 + $0x28] sm:$0xff] %v480
        %498 = vst [vmem:[%s491 + $0x30] sm:$0xff] %v481
        %499 = vst [vmem:[%s491 + $0x38] sm:$0xff] %v482
        %500 = vst [vmem:[%s491 + $0x40] sm:$0xff] %v483
        %501 = vst [vmem:[%s491 + $0x48] sm:$0xff] %v484
        %502 = vst [vmem:[%s491 + $0x50] sm:$0xff] %v485
        %503 = vst [vmem:[%s491 + $0x58] sm:$0xff] %v486
        %504 = vst [vmem:[%s491 + $0x60] sm:$0xf] %v487
        %505 = vst [vmem:[%s491 + $0x68] sm:$0xf] %v488
      $region61: #{cnn_spatial_forward.1} parent=55 // loop_footer
        %s344 = sadd.s32 1, %s340
      $region62: #{cnn_spatial_forward.1} parent=55 // loop_footer_branch
        %339 = sbr.rel target = $region58
      $region63: #{cnn_spatial_forward.1} parent=55 // loop_exit
        _
      %v506 = vld [vmem:[%s4] sm:$0x1]
      loop: start=0, step=1, limit=27
      $region64: #{cnn_spatial_forward.1} parent=55 // loop_pre_header
        _
      $region65: #{cnn_spatial_forward.1} parent=55 // loop_header
        %s508 = sphi 0, %s512
        %p509 = scmp.ge.s32.totalorder %s508, 27
      $region66: #{cnn_spatial_forward.1} parent=55 // loop_header_branch
        %511 = sbr.rel (%p509) target = $region70
      $region67: #{cnn_spatial_forward.1} parent=55 // loop_body
        %s513 = smul.u32 %s508, 14
        %s514 = smul.addr %s513, 8
        %s515 = scalar_lea.vmem [#allocation2], %s514
        %v516 = vld [vmem:[%s515] sm:$0xff]
        %v517 = vld [vmem:[%s515 + $0x8] sm:$0xff]
        %v518 = vld [vmem:[%s515 + $0x10] sm:$0xff]
        %v519 = vld [vmem:[%s515 + $0x18] sm:$0xff]
        %v520 = vld [vmem:[%s515 + $0x20] sm:$0xff]
        %v521 = vld [vmem:[%s515 + $0x28] sm:$0xff]
        %v522 = vld [vmem:[%s515 + $0x30] sm:$0xff]
        %v523 = vld [vmem:[%s515 + $0x38] sm:$0xff]
        %v524 = vld [vmem:[%s515 + $0x40] sm:$0xff]
        %v525 = vld [vmem:[%s515 + $0x48] sm:$0xff]
        %v526 = vld [vmem:[%s515 + $0x50] sm:$0xff]
        %v527 = vld [vmem:[%s515 + $0x58] sm:$0xff]
        %v528 = vld [vmem:[%s515 + $0x60] sm:$0xf]
        %v529 = vld [vmem:[%s515 + $0x68] sm:$0xf]
        %v530 = vpack.c.bf16 %v518, %v516
        %v531 = vpack.c.bf16 %v519, %v517
        %v532 = vpack.c.bf16 %v522, %v520
        %v533 = vpack.c.bf16 %v523, %v521
        %v534 = vpack.c.bf16 %v526, %v524
        %v535 = vpack.c.bf16 %v527, %v525
        %v536 = vpack.c.bf16 %v528, %v528
        %v537 = vpack.c.bf16 %v529, %v529
        %v538 = vld [vmem:[%s3] sm:$0xf]
        %v539 = vld [vmem:[%s3 + $0x4] sm:$0xf]
        %v540 = vld [vmem:[%s3 + $0x8] sm:$0xf]
        %v541 = vld [vmem:[%s3 + $0xc] sm:$0xf]
        %v542 = vld [vmem:[%s3 + $0x10] sm:$0xf]
        %v543 = vld [vmem:[%s3 + $0x14] sm:$0xf]
        %v544 = vld [vmem:[%s3 + $0x18] sm:$0xf]
        %v545 = vld [vmem:[%s3 + $0x1c] sm:$0xf]
        %v546 = vld [vmem:[%s3 + $0x20] sm:$0xf]
        %v547 = vld [vmem:[%s3 + $0x24] sm:$0xf]
        %v548 = vld [vmem:[%s3 + $0x28] sm:$0xf]
        %v549 = vld [vmem:[%s3 + $0x2c] sm:$0xf]
        %v550 = vld [vmem:[%s3 + $0x30] sm:$0xf]
        %v551 = vld [vmem:[%s3 + $0x34] sm:$0xf]
        %v552 = vld [vmem:[%s3 + $0x38] sm:$0xf]
        %v553 = vld [vmem:[%s3 + $0x3c] sm:$0xf]
        %v554 = vld [vmem:[%s3 + $0x40] sm:$0xf]
        %v555 = vld [vmem:[%s3 + $0x44] sm:$0xf]
        %v556 = vld [vmem:[%s3 + $0x48] sm:$0xf]
        %v557 = vld [vmem:[%s3 + $0x4c] sm:$0xf]
        %v558 = vld [vmem:[%s3 + $0x50] sm:$0xf]
        %v559 = vld [vmem:[%s3 + $0x54] sm:$0xf]
        %v560 = vld [vmem:[%s3 + $0x58] sm:$0xf]
        %v561 = vld [vmem:[%s3 + $0x5c] sm:$0xf]
        %v562 = vld [vmem:[%s3 + $0x60] sm:$0xf]
        %v563 = vld [vmem:[%s3 + $0x64] sm:$0xf]
        %v564 = vld [vmem:[%s3 + $0x68] sm:$0xf]
        %v565 = vld [vmem:[%s3 + $0x6c] sm:$0xf]
        %v566 = vld [vmem:[%s3 + $0x70] sm:$0xf]
        %v567 = vld [vmem:[%s3 + $0x74] sm:$0xf]
        %v568 = vld [vmem:[%s3 + $0x78] sm:$0xf]
        %v569 = vld [vmem:[%s3 + $0x7c] sm:$0xf]
        %s570 = scalar_lea.vmem %s3, 128
        %v571 = vld [vmem:[%s570] sm:$0xf]
        %v572 = vld [vmem:[%s570 + $0x4] sm:$0xf]
        %v573 = vld [vmem:[%s570 + $0x8] sm:$0xf]
        %v574 = vld [vmem:[%s570 + $0xc] sm:$0xf]
        %v575 = vld [vmem:[%s570 + $0x10] sm:$0xf]
        %v576 = vld [vmem:[%s570 + $0x14] sm:$0xf]
        %v577 = vld [vmem:[%s570 + $0x18] sm:$0xf]
        %v578 = vld [vmem:[%s570 + $0x1c] sm:$0xf]
        %v579 = vld [vmem:[%s570 + $0x20] sm:$0xf]
        %v580 = vld [vmem:[%s570 + $0x24] sm:$0xf]
        %v581 = vld [vmem:[%s570 + $0x28] sm:$0xf]
        %v582 = vld [vmem:[%s570 + $0x2c] sm:$0xf]
        %v583 = vld [vmem:[%s570 + $0x30] sm:$0xf]
        %v584 = vld [vmem:[%s570 + $0x34] sm:$0xf]
        %v585 = vld [vmem:[%s570 + $0x38] sm:$0xf]
        %v586 = vld [vmem:[%s570 + $0x3c] sm:$0xf]
        %v587 = vld [vmem:[%s570 + $0x40] sm:$0xf]
        %v588 = vld [vmem:[%s570 + $0x44] sm:$0xf]
        %v589 = vld [vmem:[%s570 + $0x48] sm:$0xf]
        %v590 = vld [vmem:[%s570 + $0x4c] sm:$0xf]
        %v591 = vld [vmem:[%s570 + $0x50] sm:$0xf]
        %v592 = vld [vmem:[%s570 + $0x54] sm:$0xf]
        %v593 = vld [vmem:[%s570 + $0x58] sm:$0xf]
        %v594 = vld [vmem:[%s570 + $0x5c] sm:$0xf]
        %v595 = vld [vmem:[%s570 + $0x60] sm:$0xf]
        %v596 = vld [vmem:[%s570 + $0x64] sm:$0xf]
        %v597 = vld [vmem:[%s570 + $0x68] sm:$0xf]
        %v598 = vld [vmem:[%s570 + $0x6c] sm:$0xf]
        %v599 = vld [vmem:[%s570 + $0x70] sm:$0xf]
        %v600 = vld [vmem:[%s570 + $0x74] sm:$0xf]
        %v601 = vld [vmem:[%s570 + $0x78] sm:$0xf]
        %v602 = vld [vmem:[%s570 + $0x7c] sm:$0xf]
        %vm603 = vsmask.f32 7424
        %v605 = vshrl.u32 %v530, 16
        %v607 = vshll.u32 %v530, 16
        %v609 = vrot.slane %v607, 1
        %v610 = vor.u32 %v605, %v609
        %v612 = vshll.u32 %v532, 16
        %v614 = vrot.slane %v612, 1
        %v615 = vsel %vm603, %v610, %v614
        %v617 = vshrl.u32 %v531, 16
        %v619 = vshll.u32 %v531, 16
        %v621 = vrot.slane %v619, 1
        %v622 = vor.u32 %v617, %v621
        %v624 = vshll.u32 %v533, 16
        %v626 = vrot.slane %v624, 1
        %v627 = vsel %vm603, %v622, %v626
        %v628 = vshrl.u32 %v532, 16
        %v630 = vor.u32 %v628, %v614
        %v632 = vshll.u32 %v534, 16
        %v634 = vrot.slane %v632, 1
        %v635 = vsel %vm603, %v630, %v634
        %v636 = vshrl.u32 %v533, 16
        %v638 = vor.u32 %v636, %v626
        %v640 = vshll.u32 %v535, 16
        %v642 = vrot.slane %v640, 1
        %v643 = vsel %vm603, %v638, %v642
        %v644 = vshrl.u32 %v534, 16
        %v646 = vor.u32 %v644, %v634
        %v648 = vshll.u32 %v536, 16
        %v650 = vrot.slane %v648, 1
        %v651 = vsel %vm603, %v646, %v650
        %v652 = vshrl.u32 %v535, 16
        %v654 = vor.u32 %v652, %v642
        %v656 = vshll.u32 %v537, 16
        %v658 = vrot.slane %v656, 1
        %v659 = vsel %vm603, %v654, %v658
        %v660 = vshrl.u32 %v536, 16
        %v662 = vor.u32 %v660, %v650
        %v663 = vshrl.u32 %v537, 16
        %v665 = vor.u32 %v663, %v658
        %v706 = vunpack.c.l.b16 %v571
        %v707 = vunpack.c.l.b16 %v572
        %v708 = vunpack.c.l.b16 %v573
        %v709 = vunpack.c.l.b16 %v574
        %v710 = vunpack.c.l.b16 %v575
        %v711 = vunpack.c.l.b16 %v576
        %v712 = vunpack.c.l.b16 %v577
        %v713 = vunpack.c.l.b16 %v578
        %v714 = vunpack.c.l.b16 %v579
        %v715 = vunpack.c.l.b16 %v580
        %v716 = vunpack.c.l.b16 %v581
        %v717 = vunpack.c.l.b16 %v582
        %v718 = vunpack.c.l.b16 %v583
        %v719 = vunpack.c.l.b16 %v584
        %v720 = vunpack.c.l.b16 %v585
        %v721 = vunpack.c.l.b16 %v586
        %v722 = vunpack.c.l.b16 %v587
        %v723 = vunpack.c.l.b16 %v588
        %v724 = vunpack.c.l.b16 %v589
        %v725 = vunpack.c.l.b16 %v590
        %v726 = vunpack.c.l.b16 %v591
        %v727 = vunpack.c.l.b16 %v592
        %v728 = vunpack.c.l.b16 %v593
        %v729 = vunpack.c.l.b16 %v594
        %v730 = vunpack.c.l.b16 %v595
        %v731 = vunpack.c.l.b16 %v596
        %v732 = vunpack.c.l.b16 %v597
        %v733 = vunpack.c.l.b16 %v598
        %v734 = vunpack.c.l.b16 %v599
        %v735 = vunpack.c.l.b16 %v600
        %v736 = vunpack.c.l.b16 %v601
        %v737 = vunpack.c.l.b16 %v602
        %v738 = vpack.c.b16 %v707, %v706
        %v739 = vpack.c.b16 %v709, %v708
        %v740 = vpack.c.b16 %v711, %v710
        %v741 = vpack.c.b16 %v713, %v712
        %v742 = vpack.c.b16 %v715, %v714
        %v743 = vpack.c.b16 %v717, %v716
        %v744 = vpack.c.b16 %v719, %v718
        %v745 = vpack.c.b16 %v721, %v720
        %v746 = vpack.c.b16 %v723, %v722
        %v747 = vpack.c.b16 %v725, %v724
        %v748 = vpack.c.b16 %v727, %v726
        %v749 = vpack.c.b16 %v729, %v728
        %v750 = vpack.c.b16 %v731, %v730
        %v751 = vpack.c.b16 %v733, %v732
        %v752 = vpack.c.b16 %v735, %v734
        %v753 = vpack.c.b16 %v737, %v736
        %770 = vmatpush.bf16.msra.mxu0 %v745
        %771 = vmatpush.bf16.msra.mxu0 %v744
        %772 = vmatpush.bf16.msra.mxu0 %v743
        %773 = vmatpush.bf16.msra.mxu0 %v742
        %774 = vmatpush.bf16.msra.mxu0 %v741
        %775 = vmatpush.bf16.msra.mxu0 %v740
        %776 = vmatpush.bf16.msra.mxu0 %v739
        %777 = vmatpush.bf16.msra.mxu0 %v738
        %778 = vmatmul.bf16.gmra.mxu0 %v615
        %v779 = vpop.f32.mrf.mxu0
        %v780 = vadd.f32 0.0, %v779
        %v781 = vpop.f32.mrf.mxu0
        %v782 = vadd.f32 0.0, %v781
        %783 = vmatmul.bf16.gmra.mxu0 %v635
        %v784 = vpop.f32.mrf.mxu0
        %v785 = vadd.f32 0.0, %v784
        %v786 = vpop.f32.mrf.mxu0
        %v787 = vadd.f32 0.0, %v786
        %788 = vmatmul.bf16.gmra.mxu0 %v651
        %v789 = vpop.f32.mrf.mxu0
        %v790 = vadd.f32 0.0, %v789
        %v791 = vpop.f32.mrf.mxu0
        %v792 = vadd.f32 0.0, %v791
        %793 = vmatmul.bf16.gmra.mxu0 %v662
        %v794 = vpop.f32.mrf.mxu0
        %v795 = vadd.f32 0.0, %v794
        %v796 = vpop.f32.mrf.mxu0
        %797 = vdwg.mxu0
        %798 = vmatpush.bf16.msra.mxu0 %v753
        %799 = vmatpush.bf16.msra.mxu0 %v752
        %800 = vmatpush.bf16.msra.mxu0 %v751
        %801 = vmatpush.bf16.msra.mxu0 %v750
        %802 = vmatpush.bf16.msra.mxu0 %v749
        %803 = vmatpush.bf16.msra.mxu0 %v748
        %804 = vmatpush.bf16.msra.mxu0 %v747
        %805 = vmatpush.bf16.msra.mxu0 %v746
        %806 = vmatmul.bf16.gmra.mxu0 %v627
        %v807 = vpop.f32.mrf.mxu0
        %v808 = vadd.f32 %v780, %v807
        %v809 = vpop.f32.mrf.mxu0
        %v810 = vadd.f32 %v782, %v809
        %811 = vmatmul.bf16.gmra.mxu0 %v643
        %v812 = vpop.f32.mrf.mxu0
        %v813 = vadd.f32 %v785, %v812
        %v814 = vpop.f32.mrf.mxu0
        %v815 = vadd.f32 %v787, %v814
        %816 = vmatmul.bf16.gmra.mxu0 %v659
        %v817 = vpop.f32.mrf.mxu0
        %v818 = vadd.f32 %v790, %v817
        %v819 = vpop.f32.mrf.mxu0
        %v820 = vadd.f32 %v792, %v819
        %821 = vmatmul.bf16.gmra.mxu0 %v665
        %v822 = vpop.f32.mrf.mxu0
        %v823 = vadd.f32 %v795, %v822
        %v824 = vpop.f32.mrf.mxu0
        %825 = vdwg.mxu0
        %v858 = vunpack.c.l.b16 %v538
        %v859 = vunpack.c.l.b16 %v539
        %v860 = vunpack.c.l.b16 %v540
        %v861 = vunpack.c.l.b16 %v541
        %v862 = vunpack.c.l.b16 %v542
        %v863 = vunpack.c.l.b16 %v543
        %v864 = vunpack.c.l.b16 %v544
        %v865 = vunpack.c.l.b16 %v545
        %v866 = vunpack.c.l.b16 %v546
        %v867 = vunpack.c.l.b16 %v547
        %v868 = vunpack.c.l.b16 %v548
        %v869 = vunpack.c.l.b16 %v549
        %v870 = vunpack.c.l.b16 %v550
        %v871 = vunpack.c.l.b16 %v551
        %v872 = vunpack.c.l.b16 %v552
        %v873 = vunpack.c.l.b16 %v553
        %v874 = vunpack.c.l.b16 %v554
        %v875 = vunpack.c.l.b16 %v555
        %v876 = vunpack.c.l.b16 %v556
        %v877 = vunpack.c.l.b16 %v557
        %v878 = vunpack.c.l.b16 %v558
        %v879 = vunpack.c.l.b16 %v559
        %v880 = vunpack.c.l.b16 %v560
        %v881 = vunpack.c.l.b16 %v561
        %v882 = vunpack.c.l.b16 %v562
        %v883 = vunpack.c.l.b16 %v563
        %v884 = vunpack.c.l.b16 %v564
        %v885 = vunpack.c.l.b16 %v565
        %v886 = vunpack.c.l.b16 %v566
        %v887 = vunpack.c.l.b16 %v567
        %v888 = vunpack.c.l.b16 %v568
        %v889 = vunpack.c.l.b16 %v569
        %v890 = vpack.c.b16 %v859, %v858
        %v891 = vpack.c.b16 %v861, %v860
        %v892 = vpack.c.b16 %v863, %v862
        %v893 = vpack.c.b16 %v865, %v864
        %v894 = vpack.c.b16 %v867, %v866
        %v895 = vpack.c.b16 %v869, %v868
        %v896 = vpack.c.b16 %v871, %v870
        %v897 = vpack.c.b16 %v873, %v872
        %v898 = vpack.c.b16 %v875, %v874
        %v899 = vpack.c.b16 %v877, %v876
        %v900 = vpack.c.b16 %v879, %v878
        %v901 = vpack.c.b16 %v881, %v880
        %v902 = vpack.c.b16 %v883, %v882
        %v903 = vpack.c.b16 %v885, %v884
        %v904 = vpack.c.b16 %v887, %v886
        %v905 = vpack.c.b16 %v889, %v888
        %922 = vmatpush.bf16.msra.mxu0 %v897
        %923 = vmatpush.bf16.msra.mxu0 %v896
        %924 = vmatpush.bf16.msra.mxu0 %v895
        %925 = vmatpush.bf16.msra.mxu0 %v894
        %926 = vmatpush.bf16.msra.mxu0 %v893
        %927 = vmatpush.bf16.msra.mxu0 %v892
        %928 = vmatpush.bf16.msra.mxu0 %v891
        %929 = vmatpush.bf16.msra.mxu0 %v890
        %930 = vmatmul.bf16.gmra.mxu0 %v530
        %v931 = vpop.f32.mrf.mxu0
        %v932 = vadd.f32 %v808, %v931
        %v933 = vpop.f32.mrf.mxu0
        %v934 = vadd.f32 %v810, %v933
        %935 = vmatmul.bf16.gmra.mxu0 %v532
        %v936 = vpop.f32.mrf.mxu0
        %v937 = vadd.f32 %v813, %v936
        %v938 = vpop.f32.mrf.mxu0
        %v939 = vadd.f32 %v815, %v938
        %940 = vmatmul.bf16.gmra.mxu0 %v534
        %v941 = vpop.f32.mrf.mxu0
        %v942 = vadd.f32 %v818, %v941
        %v943 = vpop.f32.mrf.mxu0
        %v944 = vadd.f32 %v820, %v943
        %945 = vmatmul.bf16.gmra.mxu0 %v536
        %v946 = vpop.f32.mrf.mxu0
        %v947 = vadd.f32 %v823, %v946
        %v948 = vpop.f32.mrf.mxu0
        %949 = vdwg.mxu0
        %950 = vmatpush.bf16.msra.mxu0 %v905
        %951 = vmatpush.bf16.msra.mxu0 %v904
        %952 = vmatpush.bf16.msra.mxu0 %v903
        %953 = vmatpush.bf16.msra.mxu0 %v902
        %954 = vmatpush.bf16.msra.mxu0 %v901
        %955 = vmatpush.bf16.msra.mxu0 %v900
        %956 = vmatpush.bf16.msra.mxu0 %v899
        %957 = vmatpush.bf16.msra.mxu0 %v898
        %958 = vmatmul.bf16.gmra.mxu0 %v531
        %v959 = vpop.f32.mrf.mxu0
        %v960 = vadd.f32 %v932, %v959
        %v961 = vpop.f32.mrf.mxu0
        %v962 = vadd.f32 %v934, %v961
        %963 = vmatmul.bf16.gmra.mxu0 %v533
        %v964 = vpop.f32.mrf.mxu0
        %v965 = vadd.f32 %v937, %v964
        %v966 = vpop.f32.mrf.mxu0
        %v967 = vadd.f32 %v939, %v966
        %968 = vmatmul.bf16.gmra.mxu0 %v535
        %v969 = vpop.f32.mrf.mxu0
        %v970 = vadd.f32 %v942, %v969
        %v971 = vpop.f32.mrf.mxu0
        %v972 = vadd.f32 %v944, %v971
        %973 = vmatmul.bf16.gmra.mxu0 %v537
        %v974 = vpop.f32.mrf.mxu0
        %v975 = vadd.f32 %v947, %v974
        %v976 = vpop.f32.mrf.mxu0
        %977 = vdwg.mxu0
        %s978 = scalar_lea.vmem %s3, 256
        %v979 = vld [vmem:[%s978] sm:$0xf]
        %v980 = vld [vmem:[%s978 + $0x4] sm:$0xf]
        %v981 = vld [vmem:[%s978 + $0x8] sm:$0xf]
        %v982 = vld [vmem:[%s978 + $0xc] sm:$0xf]
        %v983 = vld [vmem:[%s978 + $0x10] sm:$0xf]
        %v984 = vld [vmem:[%s978 + $0x14] sm:$0xf]
        %v985 = vld [vmem:[%s978 + $0x18] sm:$0xf]
        %v986 = vld [vmem:[%s978 + $0x1c] sm:$0xf]
        %v987 = vld [vmem:[%s978 + $0x20] sm:$0xf]
        %v988 = vld [vmem:[%s978 + $0x24] sm:$0xf]
        %v989 = vld [vmem:[%s978 + $0x28] sm:$0xf]
        %v990 = vld [vmem:[%s978 + $0x2c] sm:$0xf]
        %v991 = vld [vmem:[%s978 + $0x30] sm:$0xf]
        %v992 = vld [vmem:[%s978 + $0x34] sm:$0xf]
        %v993 = vld [vmem:[%s978 + $0x38] sm:$0xf]
        %v994 = vld [vmem:[%s978 + $0x3c] sm:$0xf]
        %v995 = vld [vmem:[%s978 + $0x40] sm:$0xf]
        %v996 = vld [vmem:[%s978 + $0x44] sm:$0xf]
        %v997 = vld [vmem:[%s978 + $0x48] sm:$0xf]
        %v998 = vld [vmem:[%s978 + $0x4c] sm:$0xf]
        %v999 = vld [vmem:[%s978 + $0x50] sm:$0xf]
        %v1000 = vld [vmem:[%s978 + $0x54] sm:$0xf]
        %v1001 = vld [vmem:[%s978 + $0x58] sm:$0xf]
        %v1002 = vld [vmem:[%s978 + $0x5c] sm:$0xf]
        %v1003 = vld [vmem:[%s978 + $0x60] sm:$0xf]
        %v1004 = vld [vmem:[%s978 + $0x64] sm:$0xf]
        %v1005 = vld [vmem:[%s978 + $0x68] sm:$0xf]
        %v1006 = vld [vmem:[%s978 + $0x6c] sm:$0xf]
        %v1007 = vld [vmem:[%s978 + $0x70] sm:$0xf]
        %v1008 = vld [vmem:[%s978 + $0x74] sm:$0xf]
        %v1009 = vld [vmem:[%s978 + $0x78] sm:$0xf]
        %v1010 = vld [vmem:[%s978 + $0x7c] sm:$0xf]
        %vm1019 = vcmask 1046528
        %v1020 = vrot.slane %v530, 1
        %v1021 = vrot.slane %v532, 1
        %v1022 = vsel %vm1019, %v1020, %v1021
        %v1023 = vrot.slane %v531, 1
        %v1024 = vrot.slane %v533, 1
        %v1025 = vsel %vm1019, %v1023, %v1024
        %v1026 = vrot.slane %v534, 1
        %v1027 = vsel %vm1019, %v1021, %v1026
        %v1028 = vrot.slane %v535, 1
        %v1029 = vsel %vm1019, %v1024, %v1028
        %v1030 = vrot.slane %v536, 1
        %v1031 = vsel %vm1019, %v1026, %v1030
        %v1032 = vrot.slane %v537, 1
        %v1033 = vsel %vm1019, %v1028, %v1032
        %v1074 = vunpack.c.l.b16 %v979
        %v1075 = vunpack.c.l.b16 %v980
        %v1076 = vunpack.c.l.b16 %v981
        %v1077 = vunpack.c.l.b16 %v982
        %v1078 = vunpack.c.l.b16 %v983
        %v1079 = vunpack.c.l.b16 %v984
        %v1080 = vunpack.c.l.b16 %v985
        %v1081 = vunpack.c.l.b16 %v986
        %v1082 = vunpack.c.l.b16 %v987
        %v1083 = vunpack.c.l.b16 %v988
        %v1084 = vunpack.c.l.b16 %v989
        %v1085 = vunpack.c.l.b16 %v990
        %v1086 = vunpack.c.l.b16 %v991
        %v1087 = vunpack.c.l.b16 %v992
        %v1088 = vunpack.c.l.b16 %v993
        %v1089 = vunpack.c.l.b16 %v994
        %v1090 = vunpack.c.l.b16 %v995
        %v1091 = vunpack.c.l.b16 %v996
        %v1092 = vunpack.c.l.b16 %v997
        %v1093 = vunpack.c.l.b16 %v998
        %v1094 = vunpack.c.l.b16 %v999
        %v1095 = vunpack.c.l.b16 %v1000
        %v1096 = vunpack.c.l.b16 %v1001
        %v1097 = vunpack.c.l.b16 %v1002
        %v1098 = vunpack.c.l.b16 %v1003
        %v1099 = vunpack.c.l.b16 %v1004
        %v1100 = vunpack.c.l.b16 %v1005
        %v1101 = vunpack.c.l.b16 %v1006
        %v1102 = vunpack.c.l.b16 %v1007
        %v1103 = vunpack.c.l.b16 %v1008
        %v1104 = vunpack.c.l.b16 %v1009
        %v1105 = vunpack.c.l.b16 %v1010
        %v1106 = vpack.c.b16 %v1075, %v1074
        %v1107 = vpack.c.b16 %v1077, %v1076
        %v1108 = vpack.c.b16 %v1079, %v1078
        %v1109 = vpack.c.b16 %v1081, %v1080
        %v1110 = vpack.c.b16 %v1083, %v1082
        %v1111 = vpack.c.b16 %v1085, %v1084
        %v1112 = vpack.c.b16 %v1087, %v1086
        %v1113 = vpack.c.b16 %v1089, %v1088
        %v1114 = vpack.c.b16 %v1091, %v1090
        %v1115 = vpack.c.b16 %v1093, %v1092
        %v1116 = vpack.c.b16 %v1095, %v1094
        %v1117 = vpack.c.b16 %v1097, %v1096
        %v1118 = vpack.c.b16 %v1099, %v1098
        %v1119 = vpack.c.b16 %v1101, %v1100
        %v1120 = vpack.c.b16 %v1103, %v1102
        %v1121 = vpack.c.b16 %v1105, %v1104
        %1138 = vmatpush.bf16.msra.mxu0 %v1113
        %1139 = vmatpush.bf16.msra.mxu0 %v1112
        %1140 = vmatpush.bf16.msra.mxu0 %v1111
        %1141 = vmatpush.bf16.msra.mxu0 %v1110
        %1142 = vmatpush.bf16.msra.mxu0 %v1109
        %1143 = vmatpush.bf16.msra.mxu0 %v1108
        %1144 = vmatpush.bf16.msra.mxu0 %v1107
        %1145 = vmatpush.bf16.msra.mxu0 %v1106
        %1146 = vmatmul.bf16.gmra.mxu0 %v1022
        %v1147 = vpop.f32.mrf.mxu0
        %v1148 = vadd.f32 0.0, %v1147
        %v1149 = vpop.f32.mrf.mxu0
        %v1150 = vadd.f32 0.0, %v1149
        %1151 = vmatmul.bf16.gmra.mxu0 %v1027
        %v1152 = vpop.f32.mrf.mxu0
        %v1153 = vadd.f32 0.0, %v1152
        %v1154 = vpop.f32.mrf.mxu0
        %v1155 = vadd.f32 0.0, %v1154
        %1156 = vmatmul.bf16.gmra.mxu0 %v1031
        %v1157 = vpop.f32.mrf.mxu0
        %v1158 = vadd.f32 0.0, %v1157
        %v1159 = vpop.f32.mrf.mxu0
        %v1160 = vadd.f32 0.0, %v1159
        %1161 = vmatmul.bf16.gmra.mxu0 %v1030
        %v1162 = vpop.f32.mrf.mxu0
        %v1163 = vadd.f32 0.0, %v1162
        %v1164 = vpop.f32.mrf.mxu0
        %1165 = vdwg.mxu0
        %1166 = vmatpush.bf16.msra.mxu0 %v1121
        %1167 = vmatpush.bf16.msra.mxu0 %v1120
        %1168 = vmatpush.bf16.msra.mxu0 %v1119
        %1169 = vmatpush.bf16.msra.mxu0 %v1118
        %1170 = vmatpush.bf16.msra.mxu0 %v1117
        %1171 = vmatpush.bf16.msra.mxu0 %v1116
        %1172 = vmatpush.bf16.msra.mxu0 %v1115
        %1173 = vmatpush.bf16.msra.mxu0 %v1114
        %1174 = vmatmul.bf16.gmra.mxu0 %v1025
        %v1175 = vpop.f32.mrf.mxu0
        %v1176 = vadd.f32 %v1148, %v1175
        %v1177 = vpop.f32.mrf.mxu0
        %v1178 = vadd.f32 %v1150, %v1177
        %1179 = vmatmul.bf16.gmra.mxu0 %v1029
        %v1180 = vpop.f32.mrf.mxu0
        %v1181 = vadd.f32 %v1153, %v1180
        %v1182 = vpop.f32.mrf.mxu0
        %v1183 = vadd.f32 %v1155, %v1182
        %1184 = vmatmul.bf16.gmra.mxu0 %v1033
        %v1185 = vpop.f32.mrf.mxu0
        %v1186 = vadd.f32 %v1158, %v1185
        %v1187 = vpop.f32.mrf.mxu0
        %v1188 = vadd.f32 %v1160, %v1187
        %1189 = vmatmul.bf16.gmra.mxu0 %v1032
        %v1190 = vpop.f32.mrf.mxu0
        %v1191 = vadd.f32 %v1163, %v1190
        %v1192 = vpop.f32.mrf.mxu0
        %1193 = vdwg.mxu0
        %v1194 = vadd.f32 %v960, %v1176
        %v1195 = vadd.f32 %v962, %v1178
        %v1196 = vadd.f32 %v965, %v1181
        %v1197 = vadd.f32 %v967, %v1183
        %v1198 = vadd.f32 %v970, %v1186
        %v1199 = vadd.f32 %v972, %v1188
        %v1200 = vadd.f32 %v975, %v1191
        %s1201 = sadd.s32 %s508, 1
        %s1202 = smul.u32 %s1201, 14
        %s1203 = smul.addr %s1202, 8
        %s1204 = scalar_lea.vmem [#allocation2], %s1203
        %v1205 = vld [vmem:[%s1204] sm:$0xff]
        %v1206 = vld [vmem:[%s1204 + $0x8] sm:$0xff]
        %v1207 = vld [vmem:[%s1204 + $0x10] sm:$0xff]
        %v1208 = vld [vmem:[%s1204 + $0x18] sm:$0xff]
        %v1209 = vld [vmem:[%s1204 + $0x20] sm:$0xff]
        %v1210 = vld [vmem:[%s1204 + $0x28] sm:$0xff]
        %v1211 = vld [vmem:[%s1204 + $0x30] sm:$0xff]
        %v1212 = vld [vmem:[%s1204 + $0x38] sm:$0xff]
        %v1213 = vld [vmem:[%s1204 + $0x40] sm:$0xff]
        %v1214 = vld [vmem:[%s1204 + $0x48] sm:$0xff]
        %v1215 = vld [vmem:[%s1204 + $0x50] sm:$0xff]
        %v1216 = vld [vmem:[%s1204 + $0x58] sm:$0xff]
        %v1217 = vld [vmem:[%s1204 + $0x60] sm:$0xf]
        %v1218 = vld [vmem:[%s1204 + $0x68] sm:$0xf]
        %v1219 = vpack.c.bf16 %v1207, %v1205
        %v1220 = vpack.c.bf16 %v1208, %v1206
        %v1221 = vpack.c.bf16 %v1211, %v1209
        %v1222 = vpack.c.bf16 %v1212, %v1210
        %v1223 = vpack.c.bf16 %v1215, %v1213
        %v1224 = vpack.c.bf16 %v1216, %v1214
        %v1225 = vpack.c.bf16 %v1217, %v1217
        %v1226 = vpack.c.bf16 %v1218, %v1218
        %s1227 = scalar_lea.vmem %s3, 384
        %v1228 = vld [vmem:[%s1227] sm:$0xf]
        %v1229 = vld [vmem:[%s1227 + $0x4] sm:$0xf]
        %v1230 = vld [vmem:[%s1227 + $0x8] sm:$0xf]
        %v1231 = vld [vmem:[%s1227 + $0xc] sm:$0xf]
        %v1232 = vld [vmem:[%s1227 + $0x10] sm:$0xf]
        %v1233 = vld [vmem:[%s1227 + $0x14] sm:$0xf]
        %v1234 = vld [vmem:[%s1227 + $0x18] sm:$0xf]
        %v1235 = vld [vmem:[%s1227 + $0x1c] sm:$0xf]
        %v1236 = vld [vmem:[%s1227 + $0x20] sm:$0xf]
        %v1237 = vld [vmem:[%s1227 + $0x24] sm:$0xf]
        %v1238 = vld [vmem:[%s1227 + $0x28] sm:$0xf]
        %v1239 = vld [vmem:[%s1227 + $0x2c] sm:$0xf]
        %v1240 = vld [vmem:[%s1227 + $0x30] sm:$0xf]
        %v1241 = vld [vmem:[%s1227 + $0x34] sm:$0xf]
        %v1242 = vld [vmem:[%s1227 + $0x38] sm:$0xf]
        %v1243 = vld [vmem:[%s1227 + $0x3c] sm:$0xf]
        %v1244 = vld [vmem:[%s1227 + $0x40] sm:$0xf]
        %v1245 = vld [vmem:[%s1227 + $0x44] sm:$0xf]
        %v1246 = vld [vmem:[%s1227 + $0x48] sm:$0xf]
        %v1247 = vld [vmem:[%s1227 + $0x4c] sm:$0xf]
        %v1248 = vld [vmem:[%s1227 + $0x50] sm:$0xf]
        %v1249 = vld [vmem:[%s1227 + $0x54] sm:$0xf]
        %v1250 = vld [vmem:[%s1227 + $0x58] sm:$0xf]
        %v1251 = vld [vmem:[%s1227 + $0x5c] sm:$0xf]
        %v1252 = vld [vmem:[%s1227 + $0x60] sm:$0xf]
        %v1253 = vld [vmem:[%s1227 + $0x64] sm:$0xf]
        %v1254 = vld [vmem:[%s1227 + $0x68] sm:$0xf]
        %v1255 = vld [vmem:[%s1227 + $0x6c] sm:$0xf]
        %v1256 = vld [vmem:[%s1227 + $0x70] sm:$0xf]
        %v1257 = vld [vmem:[%s1227 + $0x74] sm:$0xf]
        %v1258 = vld [vmem:[%s1227 + $0x78] sm:$0xf]
        %v1259 = vld [vmem:[%s1227 + $0x7c] sm:$0xf]
        %v1292 = vunpack.c.l.b16 %v1228
        %v1293 = vunpack.c.l.b16 %v1229
        %v1294 = vunpack.c.l.b16 %v1230
        %v1295 = vunpack.c.l.b16 %v1231
        %v1296 = vunpack.c.l.b16 %v1232
        %v1297 = vunpack.c.l.b16 %v1233
        %v1298 = vunpack.c.l.b16 %v1234
        %v1299 = vunpack.c.l.b16 %v1235
        %v1300 = vunpack.c.l.b16 %v1236
        %v1301 = vunpack.c.l.b16 %v1237
        %v1302 = vunpack.c.l.b16 %v1238
        %v1303 = vunpack.c.l.b16 %v1239
        %v1304 = vunpack.c.l.b16 %v1240
        %v1305 = vunpack.c.l.b16 %v1241
        %v1306 = vunpack.c.l.b16 %v1242
        %v1307 = vunpack.c.l.b16 %v1243
        %v1308 = vunpack.c.l.b16 %v1244
        %v1309 = vunpack.c.l.b16 %v1245
        %v1310 = vunpack.c.l.b16 %v1246
        %v1311 = vunpack.c.l.b16 %v1247
        %v1312 = vunpack.c.l.b16 %v1248
        %v1313 = vunpack.c.l.b16 %v1249
        %v1314 = vunpack.c.l.b16 %v1250
        %v1315 = vunpack.c.l.b16 %v1251
        %v1316 = vunpack.c.l.b16 %v1252
        %v1317 = vunpack.c.l.b16 %v1253
        %v1318 = vunpack.c.l.b16 %v1254
        %v1319 = vunpack.c.l.b16 %v1255
        %v1320 = vunpack.c.l.b16 %v1256
        %v1321 = vunpack.c.l.b16 %v1257
        %v1322 = vunpack.c.l.b16 %v1258
        %v1323 = vunpack.c.l.b16 %v1259
        %v1324 = vpack.c.b16 %v1293, %v1292
        %v1325 = vpack.c.b16 %v1295, %v1294
        %v1326 = vpack.c.b16 %v1297, %v1296
        %v1327 = vpack.c.b16 %v1299, %v1298
        %v1328 = vpack.c.b16 %v1301, %v1300
        %v1329 = vpack.c.b16 %v1303, %v1302
        %v1330 = vpack.c.b16 %v1305, %v1304
        %v1331 = vpack.c.b16 %v1307, %v1306
        %v1332 = vpack.c.b16 %v1309, %v1308
        %v1333 = vpack.c.b16 %v1311, %v1310
        %v1334 = vpack.c.b16 %v1313, %v1312
        %v1335 = vpack.c.b16 %v1315, %v1314
        %v1336 = vpack.c.b16 %v1317, %v1316
        %v1337 = vpack.c.b16 %v1319, %v1318
        %v1338 = vpack.c.b16 %v1321, %v1320
        %v1339 = vpack.c.b16 %v1323, %v1322
        %1356 = vmatpush.bf16.msra.mxu0 %v1331
        %1357 = vmatpush.bf16.msra.mxu0 %v1330
        %1358 = vmatpush.bf16.msra.mxu0 %v1329
        %1359 = vmatpush.bf16.msra.mxu0 %v1328
        %1360 = vmatpush.bf16.msra.mxu0 %v1327
        %1361 = vmatpush.bf16.msra.mxu0 %v1326
        %1362 = vmatpush.bf16.msra.mxu0 %v1325
        %1363 = vmatpush.bf16.msra.mxu0 %v1324
        %1364 = vmatmul.bf16.gmra.mxu0 %v1219
        %v1365 = vpop.f32.mrf.mxu0
        %v1366 = vadd.f32 0.0, %v1365
        %v1367 = vpop.f32.mrf.mxu0
        %v1368 = vadd.f32 0.0, %v1367
        %1369 = vmatmul.bf16.gmra.mxu0 %v1221
        %v1370 = vpop.f32.mrf.mxu0
        %v1371 = vadd.f32 0.0, %v1370
        %v1372 = vpop.f32.mrf.mxu0
        %v1373 = vadd.f32 0.0, %v1372
        %1374 = vmatmul.bf16.gmra.mxu0 %v1223
        %v1375 = vpop.f32.mrf.mxu0
        %v1376 = vadd.f32 0.0, %v1375
        %v1377 = vpop.f32.mrf.mxu0
        %v1378 = vadd.f32 0.0, %v1377
        %1379 = vmatmul.bf16.gmra.mxu0 %v1225
        %v1380 = vpop.f32.mrf.mxu0
        %v1381 = vadd.f32 0.0, %v1380
        %v1382 = vpop.f32.mrf.mxu0
        %1383 = vdwg.mxu0
        %1384 = vmatpush.bf16.msra.mxu0 %v1339
        %1385 = vmatpush.bf16.msra.mxu0 %v1338
        %1386 = vmatpush.bf16.msra.mxu0 %v1337
        %1387 = vmatpush.bf16.msra.mxu0 %v1336
        %1388 = vmatpush.bf16.msra.mxu0 %v1335
        %1389 = vmatpush.bf16.msra.mxu0 %v1334
        %1390 = vmatpush.bf16.msra.mxu0 %v1333
        %1391 = vmatpush.bf16.msra.mxu0 %v1332
        %1392 = vmatmul.bf16.gmra.mxu0 %v1220
        %v1393 = vpop.f32.mrf.mxu0
        %v1394 = vadd.f32 %v1366, %v1393
        %v1395 = vpop.f32.mrf.mxu0
        %v1396 = vadd.f32 %v1368, %v1395
        %1397 = vmatmul.bf16.gmra.mxu0 %v1222
        %v1398 = vpop.f32.mrf.mxu0
        %v1399 = vadd.f32 %v1371, %v1398
        %v1400 = vpop.f32.mrf.mxu0
        %v1401 = vadd.f32 %v1373, %v1400
        %1402 = vmatmul.bf16.gmra.mxu0 %v1224
        %v1403 = vpop.f32.mrf.mxu0
        %v1404 = vadd.f32 %v1376, %v1403
        %v1405 = vpop.f32.mrf.mxu0
        %v1406 = vadd.f32 %v1378, %v1405
        %1407 = vmatmul.bf16.gmra.mxu0 %v1226
        %v1408 = vpop.f32.mrf.mxu0
        %v1409 = vadd.f32 %v1381, %v1408
        %v1410 = vpop.f32.mrf.mxu0
        %1411 = vdwg.mxu0
        %v1412 = vadd.f32 %v1194, %v1394
        %v1413 = vadd.f32 %v1195, %v1396
        %v1414 = vadd.f32 %v1196, %v1399
        %v1415 = vadd.f32 %v1197, %v1401
        %v1416 = vadd.f32 %v1198, %v1404
        %v1417 = vadd.f32 %v1199, %v1406
        %v1418 = vadd.f32 %v1200, %v1409
        %s1419 = scalar_lea.vmem %s3, 512
        %v1420 = vld [vmem:[%s1419] sm:$0xf]
        %v1421 = vld [vmem:[%s1419 + $0x4] sm:$0xf]
        %v1422 = vld [vmem:[%s1419 + $0x8] sm:$0xf]
        %v1423 = vld [vmem:[%s1419 + $0xc] sm:$0xf]
        %v1424 = vld [vmem:[%s1419 + $0x10] sm:$0xf]
        %v1425 = vld [vmem:[%s1419 + $0x14] sm:$0xf]
        %v1426 = vld [vmem:[%s1419 + $0x18] sm:$0xf]
        %v1427 = vld [vmem:[%s1419 + $0x1c] sm:$0xf]
        %v1428 = vld [vmem:[%s1419 + $0x20] sm:$0xf]
        %v1429 = vld [vmem:[%s1419 + $0x24] sm:$0xf]
        %v1430 = vld [vmem:[%s1419 + $0x28] sm:$0xf]
        %v1431 = vld [vmem:[%s1419 + $0x2c] sm:$0xf]
        %v1432 = vld [vmem:[%s1419 + $0x30] sm:$0xf]
        %v1433 = vld [vmem:[%s1419 + $0x34] sm:$0xf]
        %v1434 = vld [vmem:[%s1419 + $0x38] sm:$0xf]
        %v1435 = vld [vmem:[%s1419 + $0x3c] sm:$0xf]
        %v1436 = vld [vmem:[%s1419 + $0x40] sm:$0xf]
        %v1437 = vld [vmem:[%s1419 + $0x44] sm:$0xf]
        %v1438 = vld [vmem:[%s1419 + $0x48] sm:$0xf]
        %v1439 = vld [vmem:[%s1419 + $0x4c] sm:$0xf]
        %v1440 = vld [vmem:[%s1419 + $0x50] sm:$0xf]
        %v1441 = vld [vmem:[%s1419 + $0x54] sm:$0xf]
        %v1442 = vld [vmem:[%s1419 + $0x58] sm:$0xf]
        %v1443 = vld [vmem:[%s1419 + $0x5c] sm:$0xf]
        %v1444 = vld [vmem:[%s1419 + $0x60] sm:$0xf]
        %v1445 = vld [vmem:[%s1419 + $0x64] sm:$0xf]
        %v1446 = vld [vmem:[%s1419 + $0x68] sm:$0xf]
        %v1447 = vld [vmem:[%s1419 + $0x6c] sm:$0xf]
        %v1448 = vld [vmem:[%s1419 + $0x70] sm:$0xf]
        %v1449 = vld [vmem:[%s1419 + $0x74] sm:$0xf]
        %v1450 = vld [vmem:[%s1419 + $0x78] sm:$0xf]
        %v1451 = vld [vmem:[%s1419 + $0x7c] sm:$0xf]
        %v1453 = vshrl.u32 %v1219, 16
        %v1455 = vshll.u32 %v1219, 16
        %v1457 = vrot.slane %v1455, 1
        %v1458 = vor.u32 %v1453, %v1457
        %v1460 = vshll.u32 %v1221, 16
        %v1462 = vrot.slane %v1460, 1
        %v1463 = vsel %vm603, %v1458, %v1462
        %v1465 = vshrl.u32 %v1220, 16
        %v1467 = vshll.u32 %v1220, 16
        %v1469 = vrot.slane %v1467, 1
        %v1470 = vor.u32 %v1465, %v1469
        %v1472 = vshll.u32 %v1222, 16
        %v1474 = vrot.slane %v1472, 1
        %v1475 = vsel %vm603, %v1470, %v1474
        %v1476 = vshrl.u32 %v1221, 16
        %v1478 = vor.u32 %v1476, %v1462
        %v1480 = vshll.u32 %v1223, 16
        %v1482 = vrot.slane %v1480, 1
        %v1483 = vsel %vm603, %v1478, %v1482
        %v1484 = vshrl.u32 %v1222, 16
        %v1486 = vor.u32 %v1484, %v1474
        %v1488 = vshll.u32 %v1224, 16
        %v1490 = vrot.slane %v1488, 1
        %v1491 = vsel %vm603, %v1486, %v1490
        %v1492 = vshrl.u32 %v1223, 16
        %v1494 = vor.u32 %v1492, %v1482
        %v1496 = vshll.u32 %v1225, 16
        %v1498 = vrot.slane %v1496, 1
        %v1499 = vsel %vm603, %v1494, %v1498
        %v1500 = vshrl.u32 %v1224, 16
        %v1502 = vor.u32 %v1500, %v1490
        %v1504 = vshll.u32 %v1226, 16
        %v1506 = vrot.slane %v1504, 1
        %v1507 = vsel %vm603, %v1502, %v1506
        %v1508 = vshrl.u32 %v1225, 16
        %v1510 = vor.u32 %v1508, %v1498
        %v1511 = vshrl.u32 %v1226, 16
        %v1513 = vor.u32 %v1511, %v1506
        %v1554 = vunpack.c.l.b16 %v1420
        %v1555 = vunpack.c.l.b16 %v1421
        %v1556 = vunpack.c.l.b16 %v1422
        %v1557 = vunpack.c.l.b16 %v1423
        %v1558 = vunpack.c.l.b16 %v1424
        %v1559 = vunpack.c.l.b16 %v1425
        %v1560 = vunpack.c.l.b16 %v1426
        %v1561 = vunpack.c.l.b16 %v1427
        %v1562 = vunpack.c.l.b16 %v1428
        %v1563 = vunpack.c.l.b16 %v1429
        %v1564 = vunpack.c.l.b16 %v1430
        %v1565 = vunpack.c.l.b16 %v1431
        %v1566 = vunpack.c.l.b16 %v1432
        %v1567 = vunpack.c.l.b16 %v1433
        %v1568 = vunpack.c.l.b16 %v1434
        %v1569 = vunpack.c.l.b16 %v1435
        %v1570 = vunpack.c.l.b16 %v1436
        %v1571 = vunpack.c.l.b16 %v1437
        %v1572 = vunpack.c.l.b16 %v1438
        %v1573 = vunpack.c.l.b16 %v1439
        %v1574 = vunpack.c.l.b16 %v1440
        %v1575 = vunpack.c.l.b16 %v1441
        %v1576 = vunpack.c.l.b16 %v1442
        %v1577 = vunpack.c.l.b16 %v1443
        %v1578 = vunpack.c.l.b16 %v1444
        %v1579 = vunpack.c.l.b16 %v1445
        %v1580 = vunpack.c.l.b16 %v1446
        %v1581 = vunpack.c.l.b16 %v1447
        %v1582 = vunpack.c.l.b16 %v1448
        %v1583 = vunpack.c.l.b16 %v1449
        %v1584 = vunpack.c.l.b16 %v1450
        %v1585 = vunpack.c.l.b16 %v1451
        %v1586 = vpack.c.b16 %v1555, %v1554
        %v1587 = vpack.c.b16 %v1557, %v1556
        %v1588 = vpack.c.b16 %v1559, %v1558
        %v1589 = vpack.c.b16 %v1561, %v1560
        %v1590 = vpack.c.b16 %v1563, %v1562
        %v1591 = vpack.c.b16 %v1565, %v1564
        %v1592 = vpack.c.b16 %v1567, %v1566
        %v1593 = vpack.c.b16 %v1569, %v1568
        %v1594 = vpack.c.b16 %v1571, %v1570
        %v1595 = vpack.c.b16 %v1573, %v1572
        %v1596 = vpack.c.b16 %v1575, %v1574
        %v1597 = vpack.c.b16 %v1577, %v1576
        %v1598 = vpack.c.b16 %v1579, %v1578
        %v1599 = vpack.c.b16 %v1581, %v1580
        %v1600 = vpack.c.b16 %v1583, %v1582
        %v1601 = vpack.c.b16 %v1585, %v1584
        %1618 = vmatpush.bf16.msra.mxu0 %v1593
        %1619 = vmatpush.bf16.msra.mxu0 %v1592
        %1620 = vmatpush.bf16.msra.mxu0 %v1591
        %1621 = vmatpush.bf16.msra.mxu0 %v1590
        %1622 = vmatpush.bf16.msra.mxu0 %v1589
        %1623 = vmatpush.bf16.msra.mxu0 %v1588
        %1624 = vmatpush.bf16.msra.mxu0 %v1587
        %1625 = vmatpush.bf16.msra.mxu0 %v1586
        %1626 = vmatmul.bf16.gmra.mxu0 %v1463
        %v1627 = vpop.f32.mrf.mxu0
        %v1628 = vadd.f32 0.0, %v1627
        %v1629 = vpop.f32.mrf.mxu0
        %v1630 = vadd.f32 0.0, %v1629
        %1631 = vmatmul.bf16.gmra.mxu0 %v1483
        %v1632 = vpop.f32.mrf.mxu0
        %v1633 = vadd.f32 0.0, %v1632
        %v1634 = vpop.f32.mrf.mxu0
        %v1635 = vadd.f32 0.0, %v1634
        %1636 = vmatmul.bf16.gmra.mxu0 %v1499
        %v1637 = vpop.f32.mrf.mxu0
        %v1638 = vadd.f32 0.0, %v1637
        %v1639 = vpop.f32.mrf.mxu0
        %v1640 = vadd.f32 0.0, %v1639
        %1641 = vmatmul.bf16.gmra.mxu0 %v1510
        %v1642 = vpop.f32.mrf.mxu0
        %v1643 = vadd.f32 0.0, %v1642
        %v1644 = vpop.f32.mrf.mxu0
        %1645 = vdwg.mxu0
        %1646 = vmatpush.bf16.msra.mxu0 %v1601
        %1647 = vmatpush.bf16.msra.mxu0 %v1600
        %1648 = vmatpush.bf16.msra.mxu0 %v1599
        %1649 = vmatpush.bf16.msra.mxu0 %v1598
        %1650 = vmatpush.bf16.msra.mxu0 %v1597
        %1651 = vmatpush.bf16.msra.mxu0 %v1596
        %1652 = vmatpush.bf16.msra.mxu0 %v1595
        %1653 = vmatpush.bf16.msra.mxu0 %v1594
        %1654 = vmatmul.bf16.gmra.mxu0 %v1475
        %v1655 = vpop.f32.mrf.mxu0
        %v1656 = vadd.f32 %v1628, %v1655
        %v1657 = vpop.f32.mrf.mxu0
        %v1658 = vadd.f32 %v1630, %v1657
        %1659 = vmatmul.bf16.gmra.mxu0 %v1491
        %v1660 = vpop.f32.mrf.mxu0
        %v1661 = vadd.f32 %v1633, %v1660
        %v1662 = vpop.f32.mrf.mxu0
        %v1663 = vadd.f32 %v1635, %v1662
        %1664 = vmatmul.bf16.gmra.mxu0 %v1507
        %v1665 = vpop.f32.mrf.mxu0
        %v1666 = vadd.f32 %v1638, %v1665
        %v1667 = vpop.f32.mrf.mxu0
        %v1668 = vadd.f32 %v1640, %v1667
        %1669 = vmatmul.bf16.gmra.mxu0 %v1513
        %v1670 = vpop.f32.mrf.mxu0
        %v1671 = vadd.f32 %v1643, %v1670
        %v1672 = vpop.f32.mrf.mxu0
        %1673 = vdwg.mxu0
        %v1674 = vadd.f32 %v1412, %v1656
        %v1675 = vadd.f32 %v1413, %v1658
        %v1676 = vadd.f32 %v1414, %v1661
        %v1677 = vadd.f32 %v1415, %v1663
        %v1678 = vadd.f32 %v1416, %v1666
        %v1679 = vadd.f32 %v1417, %v1668
        %v1680 = vadd.f32 %v1418, %v1671
        %s1681 = scalar_lea.vmem %s3, 640
        %v1682 = vld [vmem:[%s1681] sm:$0xf]
        %v1683 = vld [vmem:[%s1681 + $0x4] sm:$0xf]
        %v1684 = vld [vmem:[%s1681 + $0x8] sm:$0xf]
        %v1685 = vld [vmem:[%s1681 + $0xc] sm:$0xf]
        %v1686 = vld [vmem:[%s1681 + $0x10] sm:$0xf]
        %v1687 = vld [vmem:[%s1681 + $0x14] sm:$0xf]
        %v1688 = vld [vmem:[%s1681 + $0x18] sm:$0xf]
        %v1689 = vld [vmem:[%s1681 + $0x1c] sm:$0xf]
        %v1690 = vld [vmem:[%s1681 + $0x20] sm:$0xf]
        %v1691 = vld [vmem:[%s1681 + $0x24] sm:$0xf]
        %v1692 = vld [vmem:[%s1681 + $0x28] sm:$0xf]
        %v1693 = vld [vmem:[%s1681 + $0x2c] sm:$0xf]
        %v1694 = vld [vmem:[%s1681 + $0x30] sm:$0xf]
        %v1695 = vld [vmem:[%s1681 + $0x34] sm:$0xf]
        %v1696 = vld [vmem:[%s1681 + $0x38] sm:$0xf]
        %v1697 = vld [vmem:[%s1681 + $0x3c] sm:$0xf]
        %v1698 = vld [vmem:[%s1681 + $0x40] sm:$0xf]
        %v1699 = vld [vmem:[%s1681 + $0x44] sm:$0xf]
        %v1700 = vld [vmem:[%s1681 + $0x48] sm:$0xf]
        %v1701 = vld [vmem:[%s1681 + $0x4c] sm:$0xf]
        %v1702 = vld [vmem:[%s1681 + $0x50] sm:$0xf]
        %v1703 = vld [vmem:[%s1681 + $0x54] sm:$0xf]
        %v1704 = vld [vmem:[%s1681 + $0x58] sm:$0xf]
        %v1705 = vld [vmem:[%s1681 + $0x5c] sm:$0xf]
        %v1706 = vld [vmem:[%s1681 + $0x60] sm:$0xf]
        %v1707 = vld [vmem:[%s1681 + $0x64] sm:$0xf]
        %v1708 = vld [vmem:[%s1681 + $0x68] sm:$0xf]
        %v1709 = vld [vmem:[%s1681 + $0x6c] sm:$0xf]
        %v1710 = vld [vmem:[%s1681 + $0x70] sm:$0xf]
        %v1711 = vld [vmem:[%s1681 + $0x74] sm:$0xf]
        %v1712 = vld [vmem:[%s1681 + $0x78] sm:$0xf]
        %v1713 = vld [vmem:[%s1681 + $0x7c] sm:$0xf]
        %v1722 = vrot.slane %v1219, 1
        %v1723 = vrot.slane %v1221, 1
        %v1724 = vsel %vm1019, %v1722, %v1723
        %v1725 = vrot.slane %v1220, 1
        %v1726 = vrot.slane %v1222, 1
        %v1727 = vsel %vm1019, %v1725, %v1726
        %v1728 = vrot.slane %v1223, 1
        %v1729 = vsel %vm1019, %v1723, %v1728
        %v1730 = vrot.slane %v1224, 1
        %v1731 = vsel %vm1019, %v1726, %v1730
        %v1732 = vrot.slane %v1225, 1
        %v1733 = vsel %vm1019, %v1728, %v1732
        %v1734 = vrot.slane %v1226, 1
        %v1735 = vsel %vm1019, %v1730, %v1734
        %v1776 = vunpack.c.l.b16 %v1682
        %v1777 = vunpack.c.l.b16 %v1683
        %v1778 = vunpack.c.l.b16 %v1684
        %v1779 = vunpack.c.l.b16 %v1685
        %v1780 = vunpack.c.l.b16 %v1686
        %v1781 = vunpack.c.l.b16 %v1687
        %v1782 = vunpack.c.l.b16 %v1688
        %v1783 = vunpack.c.l.b16 %v1689
        %v1784 = vunpack.c.l.b16 %v1690
        %v1785 = vunpack.c.l.b16 %v1691
        %v1786 = vunpack.c.l.b16 %v1692
        %v1787 = vunpack.c.l.b16 %v1693
        %v1788 = vunpack.c.l.b16 %v1694
        %v1789 = vunpack.c.l.b16 %v1695
        %v1790 = vunpack.c.l.b16 %v1696
        %v1791 = vunpack.c.l.b16 %v1697
        %v1792 = vunpack.c.l.b16 %v1698
        %v1793 = vunpack.c.l.b16 %v1699
        %v1794 = vunpack.c.l.b16 %v1700
        %v1795 = vunpack.c.l.b16 %v1701
        %v1796 = vunpack.c.l.b16 %v1702
        %v1797 = vunpack.c.l.b16 %v1703
        %v1798 = vunpack.c.l.b16 %v1704
        %v1799 = vunpack.c.l.b16 %v1705
        %v1800 = vunpack.c.l.b16 %v1706
        %v1801 = vunpack.c.l.b16 %v1707
        %v1802 = vunpack.c.l.b16 %v1708
        %v1803 = vunpack.c.l.b16 %v1709
        %v1804 = vunpack.c.l.b16 %v1710
        %v1805 = vunpack.c.l.b16 %v1711
        %v1806 = vunpack.c.l.b16 %v1712
        %v1807 = vunpack.c.l.b16 %v1713
        %v1808 = vpack.c.b16 %v1777, %v1776
        %v1809 = vpack.c.b16 %v1779, %v1778
        %v1810 = vpack.c.b16 %v1781, %v1780
        %v1811 = vpack.c.b16 %v1783, %v1782
        %v1812 = vpack.c.b16 %v1785, %v1784
        %v1813 = vpack.c.b16 %v1787, %v1786
        %v1814 = vpack.c.b16 %v1789, %v1788
        %v1815 = vpack.c.b16 %v1791, %v1790
        %v1816 = vpack.c.b16 %v1793, %v1792
        %v1817 = vpack.c.b16 %v1795, %v1794
        %v1818 = vpack.c.b16 %v1797, %v1796
        %v1819 = vpack.c.b16 %v1799, %v1798
        %v1820 = vpack.c.b16 %v1801, %v1800
        %v1821 = vpack.c.b16 %v1803, %v1802
        %v1822 = vpack.c.b16 %v1805, %v1804
        %v1823 = vpack.c.b16 %v1807, %v1806
        %1840 = vmatpush.bf16.msra.mxu0 %v1815
        %1841 = vmatpush.bf16.msra.mxu0 %v1814
        %1842 = vmatpush.bf16.msra.mxu0 %v1813
        %1843 = vmatpush.bf16.msra.mxu0 %v1812
        %1844 = vmatpush.bf16.msra.mxu0 %v1811
        %1845 = vmatpush.bf16.msra.mxu0 %v1810
        %1846 = vmatpush.bf16.msra.mxu0 %v1809
        %1847 = vmatpush.bf16.msra.mxu0 %v1808
        %1848 = vmatmul.bf16.gmra.mxu0 %v1724
        %v1849 = vpop.f32.mrf.mxu0
        %v1850 = vadd.f32 0.0, %v1849
        %v1851 = vpop.f32.mrf.mxu0
        %v1852 = vadd.f32 0.0, %v1851
        %1853 = vmatmul.bf16.gmra.mxu0 %v1729
        %v1854 = vpop.f32.mrf.mxu0
        %v1855 = vadd.f32 0.0, %v1854
        %v1856 = vpop.f32.mrf.mxu0
        %v1857 = vadd.f32 0.0, %v1856
        %1858 = vmatmul.bf16.gmra.mxu0 %v1733
        %v1859 = vpop.f32.mrf.mxu0
        %v1860 = vadd.f32 0.0, %v1859
        %v1861 = vpop.f32.mrf.mxu0
        %v1862 = vadd.f32 0.0, %v1861
        %1863 = vmatmul.bf16.gmra.mxu0 %v1732
        %v1864 = vpop.f32.mrf.mxu0
        %v1865 = vadd.f32 0.0, %v1864
        %v1866 = vpop.f32.mrf.mxu0
        %1867 = vdwg.mxu0
        %1868 = vmatpush.bf16.msra.mxu0 %v1823
        %1869 = vmatpush.bf16.msra.mxu0 %v1822
        %1870 = vmatpush.bf16.msra.mxu0 %v1821
        %1871 = vmatpush.bf16.msra.mxu0 %v1820
        %1872 = vmatpush.bf16.msra.mxu0 %v1819
        %1873 = vmatpush.bf16.msra.mxu0 %v1818
        %1874 = vmatpush.bf16.msra.mxu0 %v1817
        %1875 = vmatpush.bf16.msra.mxu0 %v1816
        %1876 = vmatmul.bf16.gmra.mxu0 %v1727
        %v1877 = vpop.f32.mrf.mxu0
        %v1878 = vadd.f32 %v1850, %v1877
        %v1879 = vpop.f32.mrf.mxu0
        %v1880 = vadd.f32 %v1852, %v1879
        %1881 = vmatmul.bf16.gmra.mxu0 %v1731
        %v1882 = vpop.f32.mrf.mxu0
        %v1883 = vadd.f32 %v1855, %v1882
        %v1884 = vpop.f32.mrf.mxu0
        %v1885 = vadd.f32 %v1857, %v1884
        %1886 = vmatmul.bf16.gmra.mxu0 %v1735
        %v1887 = vpop.f32.mrf.mxu0
        %v1888 = vadd.f32 %v1860, %v1887
        %v1889 = vpop.f32.mrf.mxu0
        %v1890 = vadd.f32 %v1862, %v1889
        %1891 = vmatmul.bf16.gmra.mxu0 %v1734
        %v1892 = vpop.f32.mrf.mxu0
        %v1893 = vadd.f32 %v1865, %v1892
        %v1894 = vpop.f32.mrf.mxu0
        %1895 = vdwg.mxu0
        %v1896 = vadd.f32 %v1674, %v1878
        %v1897 = vadd.f32 %v1675, %v1880
        %v1898 = vadd.f32 %v1676, %v1883
        %v1899 = vadd.f32 %v1677, %v1885
        %v1900 = vadd.f32 %v1678, %v1888
        %v1901 = vadd.f32 %v1679, %v1890
        %v1902 = vadd.f32 %v1680, %v1893
        %s1903 = sadd.s32 %s508, 2
        %s1904 = smul.u32 %s1903, 14
        %s1905 = smul.addr %s1904, 8
        %s1906 = scalar_lea.vmem [#allocation2], %s1905
        %v1907 = vld [vmem:[%s1906] sm:$0xff]
        %v1908 = vld [vmem:[%s1906 + $0x8] sm:$0xff]
        %v1909 = vld [vmem:[%s1906 + $0x10] sm:$0xff]
        %v1910 = vld [vmem:[%s1906 + $0x18] sm:$0xff]
        %v1911 = vld [vmem:[%s1906 + $0x20] sm:$0xff]
        %v1912 = vld [vmem:[%s1906 + $0x28] sm:$0xff]
        %v1913 = vld [vmem:[%s1906 + $0x30] sm:$0xff]
        %v1914 = vld [vmem:[%s1906 + $0x38] sm:$0xff]
        %v1915 = vld [vmem:[%s1906 + $0x40] sm:$0xff]
        %v1916 = vld [vmem:[%s1906 + $0x48] sm:$0xff]
        %v1917 = vld [vmem:[%s1906 + $0x50] sm:$0xff]
        %v1918 = vld [vmem:[%s1906 + $0x58] sm:$0xff]
        %v1919 = vld [vmem:[%s1906 + $0x60] sm:$0xf]
        %v1920 = vld [vmem:[%s1906 + $0x68] sm:$0xf]
        %v1921 = vpack.c.bf16 %v1909, %v1907
        %v1922 = vpack.c.bf16 %v1910, %v1908
        %v1923 = vpack.c.bf16 %v1913, %v1911
        %v1924 = vpack.c.bf16 %v1914, %v1912
        %v1925 = vpack.c.bf16 %v1917, %v1915
        %v1926 = vpack.c.bf16 %v1918, %v1916
        %v1927 = vpack.c.bf16 %v1919, %v1919
        %v1928 = vpack.c.bf16 %v1920, %v1920
        %s1929 = scalar_lea.vmem %s3, 768
        %v1930 = vld [vmem:[%s1929] sm:$0xf]
        %v1931 = vld [vmem:[%s1929 + $0x4] sm:$0xf]
        %v1932 = vld [vmem:[%s1929 + $0x8] sm:$0xf]
        %v1933 = vld [vmem:[%s1929 + $0xc] sm:$0xf]
        %v1934 = vld [vmem:[%s1929 + $0x10] sm:$0xf]
        %v1935 = vld [vmem:[%s1929 + $0x14] sm:$0xf]
        %v1936 = vld [vmem:[%s1929 + $0x18] sm:$0xf]
        %v1937 = vld [vmem:[%s1929 + $0x1c] sm:$0xf]
        %v1938 = vld [vmem:[%s1929 + $0x20] sm:$0xf]
        %v1939 = vld [vmem:[%s1929 + $0x24] sm:$0xf]
        %v1940 = vld [vmem:[%s1929 + $0x28] sm:$0xf]
        %v1941 = vld [vmem:[%s1929 + $0x2c] sm:$0xf]
        %v1942 = vld [vmem:[%s1929 + $0x30] sm:$0xf]
        %v1943 = vld [vmem:[%s1929 + $0x34] sm:$0xf]
        %v1944 = vld [vmem:[%s1929 + $0x38] sm:$0xf]
        %v1945 = vld [vmem:[%s1929 + $0x3c] sm:$0xf]
        %v1946 = vld [vmem:[%s1929 + $0x40] sm:$0xf]
        %v1947 = vld [vmem:[%s1929 + $0x44] sm:$0xf]
        %v1948 = vld [vmem:[%s1929 + $0x48] sm:$0xf]
        %v1949 = vld [vmem:[%s1929 + $0x4c] sm:$0xf]
        %v1950 = vld [vmem:[%s1929 + $0x50] sm:$0xf]
        %v1951 = vld [vmem:[%s1929 + $0x54] sm:$0xf]
        %v1952 = vld [vmem:[%s1929 + $0x58] sm:$0xf]
        %v1953 = vld [vmem:[%s1929 + $0x5c] sm:$0xf]
        %v1954 = vld [vmem:[%s1929 + $0x60] sm:$0xf]
        %v1955 = vld [vmem:[%s1929 + $0x64] sm:$0xf]
        %v1956 = vld [vmem:[%s1929 + $0x68] sm:$0xf]
        %v1957 = vld [vmem:[%s1929 + $0x6c] sm:$0xf]
        %v1958 = vld [vmem:[%s1929 + $0x70] sm:$0xf]
        %v1959 = vld [vmem:[%s1929 + $0x74] sm:$0xf]
        %v1960 = vld [vmem:[%s1929 + $0x78] sm:$0xf]
        %v1961 = vld [vmem:[%s1929 + $0x7c] sm:$0xf]
        %v1994 = vunpack.c.l.b16 %v1930
        %v1995 = vunpack.c.l.b16 %v1931
        %v1996 = vunpack.c.l.b16 %v1932
        %v1997 = vunpack.c.l.b16 %v1933
        %v1998 = vunpack.c.l.b16 %v1934
        %v1999 = vunpack.c.l.b16 %v1935
        %v2000 = vunpack.c.l.b16 %v1936
        %v2001 = vunpack.c.l.b16 %v1937
        %v2002 = vunpack.c.l.b16 %v1938
        %v2003 = vunpack.c.l.b16 %v1939
        %v2004 = vunpack.c.l.b16 %v1940
        %v2005 = vunpack.c.l.b16 %v1941
        %v2006 = vunpack.c.l.b16 %v1942
        %v2007 = vunpack.c.l.b16 %v1943
        %v2008 = vunpack.c.l.b16 %v1944
        %v2009 = vunpack.c.l.b16 %v1945
        %v2010 = vunpack.c.l.b16 %v1946
        %v2011 = vunpack.c.l.b16 %v1947
        %v2012 = vunpack.c.l.b16 %v1948
        %v2013 = vunpack.c.l.b16 %v1949
        %v2014 = vunpack.c.l.b16 %v1950
        %v2015 = vunpack.c.l.b16 %v1951
        %v2016 = vunpack.c.l.b16 %v1952
        %v2017 = vunpack.c.l.b16 %v1953
        %v2018 = vunpack.c.l.b16 %v1954
        %v2019 = vunpack.c.l.b16 %v1955
        %v2020 = vunpack.c.l.b16 %v1956
        %v2021 = vunpack.c.l.b16 %v1957
        %v2022 = vunpack.c.l.b16 %v1958
        %v2023 = vunpack.c.l.b16 %v1959
        %v2024 = vunpack.c.l.b16 %v1960
        %v2025 = vunpack.c.l.b16 %v1961
        %v2026 = vpack.c.b16 %v1995, %v1994
        %v2027 = vpack.c.b16 %v1997, %v1996
        %v2028 = vpack.c.b16 %v1999, %v1998
        %v2029 = vpack.c.b16 %v2001, %v2000
        %v2030 = vpack.c.b16 %v2003, %v2002
        %v2031 = vpack.c.b16 %v2005, %v2004
        %v2032 = vpack.c.b16 %v2007, %v2006
        %v2033 = vpack.c.b16 %v2009, %v2008
        %v2034 = vpack.c.b16 %v2011, %v2010
        %v2035 = vpack.c.b16 %v2013, %v2012
        %v2036 = vpack.c.b16 %v2015, %v2014
        %v2037 = vpack.c.b16 %v2017, %v2016
        %v2038 = vpack.c.b16 %v2019, %v2018
        %v2039 = vpack.c.b16 %v2021, %v2020
        %v2040 = vpack.c.b16 %v2023, %v2022
        %v2041 = vpack.c.b16 %v2025, %v2024
        %2058 = vmatpush.bf16.msra.mxu0 %v2033
        %2059 = vmatpush.bf16.msra.mxu0 %v2032
        %2060 = vmatpush.bf16.msra.mxu0 %v2031
        %2061 = vmatpush.bf16.msra.mxu0 %v2030
        %2062 = vmatpush.bf16.msra.mxu0 %v2029
        %2063 = vmatpush.bf16.msra.mxu0 %v2028
        %2064 = vmatpush.bf16.msra.mxu0 %v2027
        %2065 = vmatpush.bf16.msra.mxu0 %v2026
        %2066 = vmatmul.bf16.gmra.mxu0 %v1921
        %v2067 = vpop.f32.mrf.mxu0
        %v2068 = vadd.f32 0.0, %v2067
        %v2069 = vpop.f32.mrf.mxu0
        %v2070 = vadd.f32 0.0, %v2069
        %2071 = vmatmul.bf16.gmra.mxu0 %v1923
        %v2072 = vpop.f32.mrf.mxu0
        %v2073 = vadd.f32 0.0, %v2072
        %v2074 = vpop.f32.mrf.mxu0
        %v2075 = vadd.f32 0.0, %v2074
        %2076 = vmatmul.bf16.gmra.mxu0 %v1925
        %v2077 = vpop.f32.mrf.mxu0
        %v2078 = vadd.f32 0.0, %v2077
        %v2079 = vpop.f32.mrf.mxu0
        %v2080 = vadd.f32 0.0, %v2079
        %2081 = vmatmul.bf16.gmra.mxu0 %v1927
        %v2082 = vpop.f32.mrf.mxu0
        %v2083 = vadd.f32 0.0, %v2082
        %v2084 = vpop.f32.mrf.mxu0
        %2085 = vdwg.mxu0
        %2086 = vmatpush.bf16.msra.mxu0 %v2041
        %2087 = vmatpush.bf16.msra.mxu0 %v2040
        %2088 = vmatpush.bf16.msra.mxu0 %v2039
        %2089 = vmatpush.bf16.msra.mxu0 %v2038
        %2090 = vmatpush.bf16.msra.mxu0 %v2037
        %2091 = vmatpush.bf16.msra.mxu0 %v2036
        %2092 = vmatpush.bf16.msra.mxu0 %v2035
        %2093 = vmatpush.bf16.msra.mxu0 %v2034
        %2094 = vmatmul.bf16.gmra.mxu0 %v1922
        %v2095 = vpop.f32.mrf.mxu0
        %v2096 = vadd.f32 %v2068, %v2095
        %v2097 = vpop.f32.mrf.mxu0
        %v2098 = vadd.f32 %v2070, %v2097
        %2099 = vmatmul.bf16.gmra.mxu0 %v1924
        %v2100 = vpop.f32.mrf.mxu0
        %v2101 = vadd.f32 %v2073, %v2100
        %v2102 = vpop.f32.mrf.mxu0
        %v2103 = vadd.f32 %v2075, %v2102
        %2104 = vmatmul.bf16.gmra.mxu0 %v1926
        %v2105 = vpop.f32.mrf.mxu0
        %v2106 = vadd.f32 %v2078, %v2105
        %v2107 = vpop.f32.mrf.mxu0
        %v2108 = vadd.f32 %v2080, %v2107
        %2109 = vmatmul.bf16.gmra.mxu0 %v1928
        %v2110 = vpop.f32.mrf.mxu0
        %v2111 = vadd.f32 %v2083, %v2110
        %v2112 = vpop.f32.mrf.mxu0
        %2113 = vdwg.mxu0
        %v2114 = vadd.f32 %v1896, %v2096
        %v2115 = vadd.f32 %v1897, %v2098
        %v2116 = vadd.f32 %v1898, %v2101
        %v2117 = vadd.f32 %v1899, %v2103
        %v2118 = vadd.f32 %v1900, %v2106
        %v2119 = vadd.f32 %v1901, %v2108
        %v2120 = vadd.f32 %v1902, %v2111
        %s2121 = scalar_lea.vmem %s3, 896
        %v2122 = vld [vmem:[%s2121] sm:$0xf]
        %v2123 = vld [vmem:[%s2121 + $0x4] sm:$0xf]
        %v2124 = vld [vmem:[%s2121 + $0x8] sm:$0xf]
        %v2125 = vld [vmem:[%s2121 + $0xc] sm:$0xf]
        %v2126 = vld [vmem:[%s2121 + $0x10] sm:$0xf]
        %v2127 = vld [vmem:[%s2121 + $0x14] sm:$0xf]
        %v2128 = vld [vmem:[%s2121 + $0x18] sm:$0xf]
        %v2129 = vld [vmem:[%s2121 + $0x1c] sm:$0xf]
        %v2130 = vld [vmem:[%s2121 + $0x20] sm:$0xf]
        %v2131 = vld [vmem:[%s2121 + $0x24] sm:$0xf]
        %v2132 = vld [vmem:[%s2121 + $0x28] sm:$0xf]
        %v2133 = vld [vmem:[%s2121 + $0x2c] sm:$0xf]
        %v2134 = vld [vmem:[%s2121 + $0x30] sm:$0xf]
        %v2135 = vld [vmem:[%s2121 + $0x34] sm:$0xf]
        %v2136 = vld [vmem:[%s2121 + $0x38] sm:$0xf]
        %v2137 = vld [vmem:[%s2121 + $0x3c] sm:$0xf]
        %v2138 = vld [vmem:[%s2121 + $0x40] sm:$0xf]
        %v2139 = vld [vmem:[%s2121 + $0x44] sm:$0xf]
        %v2140 = vld [vmem:[%s2121 + $0x48] sm:$0xf]
        %v2141 = vld [vmem:[%s2121 + $0x4c] sm:$0xf]
        %v2142 = vld [vmem:[%s2121 + $0x50] sm:$0xf]
        %v2143 = vld [vmem:[%s2121 + $0x54] sm:$0xf]
        %v2144 = vld [vmem:[%s2121 + $0x58] sm:$0xf]
        %v2145 = vld [vmem:[%s2121 + $0x5c] sm:$0xf]
        %v2146 = vld [vmem:[%s2121 + $0x60] sm:$0xf]
        %v2147 = vld [vmem:[%s2121 + $0x64] sm:$0xf]
        %v2148 = vld [vmem:[%s2121 + $0x68] sm:$0xf]
        %v2149 = vld [vmem:[%s2121 + $0x6c] sm:$0xf]
        %v2150 = vld [vmem:[%s2121 + $0x70] sm:$0xf]
        %v2151 = vld [vmem:[%s2121 + $0x74] sm:$0xf]
        %v2152 = vld [vmem:[%s2121 + $0x78] sm:$0xf]
        %v2153 = vld [vmem:[%s2121 + $0x7c] sm:$0xf]
        %v2155 = vshrl.u32 %v1921, 16
        %v2157 = vshll.u32 %v1921, 16
        %v2159 = vrot.slane %v2157, 1
        %v2160 = vor.u32 %v2155, %v2159
        %v2162 = vshll.u32 %v1923, 16
        %v2164 = vrot.slane %v2162, 1
        %v2165 = vsel %vm603, %v2160, %v2164
        %v2167 = vshrl.u32 %v1922, 16
        %v2169 = vshll.u32 %v1922, 16
        %v2171 = vrot.slane %v2169, 1
        %v2172 = vor.u32 %v2167, %v2171
        %v2174 = vshll.u32 %v1924, 16
        %v2176 = vrot.slane %v2174, 1
        %v2177 = vsel %vm603, %v2172, %v2176
        %v2178 = vshrl.u32 %v1923, 16
        %v2180 = vor.u32 %v2178, %v2164
        %v2182 = vshll.u32 %v1925, 16
        %v2184 = vrot.slane %v2182, 1
        %v2185 = vsel %vm603, %v2180, %v2184
        %v2186 = vshrl.u32 %v1924, 16
        %v2188 = vor.u32 %v2186, %v2176
        %v2190 = vshll.u32 %v1926, 16
        %v2192 = vrot.slane %v2190, 1
        %v2193 = vsel %vm603, %v2188, %v2192
        %v2194 = vshrl.u32 %v1925, 16
        %v2196 = vor.u32 %v2194, %v2184
        %v2198 = vshll.u32 %v1927, 16
        %v2200 = vrot.slane %v2198, 1
        %v2201 = vsel %vm603, %v2196, %v2200
        %v2202 = vshrl.u32 %v1926, 16
        %v2204 = vor.u32 %v2202, %v2192
        %v2206 = vshll.u32 %v1928, 16
        %v2208 = vrot.slane %v2206, 1
        %v2209 = vsel %vm603, %v2204, %v2208
        %v2210 = vshrl.u32 %v1927, 16
        %v2212 = vor.u32 %v2210, %v2200
        %v2213 = vshrl.u32 %v1928, 16
        %v2215 = vor.u32 %v2213, %v2208
        %v2256 = vunpack.c.l.b16 %v2122
        %v2257 = vunpack.c.l.b16 %v2123
        %v2258 = vunpack.c.l.b16 %v2124
        %v2259 = vunpack.c.l.b16 %v2125
        %v2260 = vunpack.c.l.b16 %v2126
        %v2261 = vunpack.c.l.b16 %v2127
        %v2262 = vunpack.c.l.b16 %v2128
        %v2263 = vunpack.c.l.b16 %v2129
        %v2264 = vunpack.c.l.b16 %v2130
        %v2265 = vunpack.c.l.b16 %v2131
        %v2266 = vunpack.c.l.b16 %v2132
        %v2267 = vunpack.c.l.b16 %v2133
        %v2268 = vunpack.c.l.b16 %v2134
        %v2269 = vunpack.c.l.b16 %v2135
        %v2270 = vunpack.c.l.b16 %v2136
        %v2271 = vunpack.c.l.b16 %v2137
        %v2272 = vunpack.c.l.b16 %v2138
        %v2273 = vunpack.c.l.b16 %v2139
        %v2274 = vunpack.c.l.b16 %v2140
        %v2275 = vunpack.c.l.b16 %v2141
        %v2276 = vunpack.c.l.b16 %v2142
        %v2277 = vunpack.c.l.b16 %v2143
        %v2278 = vunpack.c.l.b16 %v2144
        %v2279 = vunpack.c.l.b16 %v2145
        %v2280 = vunpack.c.l.b16 %v2146
        %v2281 = vunpack.c.l.b16 %v2147
        %v2282 = vunpack.c.l.b16 %v2148
        %v2283 = vunpack.c.l.b16 %v2149
        %v2284 = vunpack.c.l.b16 %v2150
        %v2285 = vunpack.c.l.b16 %v2151
        %v2286 = vunpack.c.l.b16 %v2152
        %v2287 = vunpack.c.l.b16 %v2153
        %v2288 = vpack.c.b16 %v2257, %v2256
        %v2289 = vpack.c.b16 %v2259, %v2258
        %v2290 = vpack.c.b16 %v2261, %v2260
        %v2291 = vpack.c.b16 %v2263, %v2262
        %v2292 = vpack.c.b16 %v2265, %v2264
        %v2293 = vpack.c.b16 %v2267, %v2266
        %v2294 = vpack.c.b16 %v2269, %v2268
        %v2295 = vpack.c.b16 %v2271, %v2270
        %v2296 = vpack.c.b16 %v2273, %v2272
        %v2297 = vpack.c.b16 %v2275, %v2274
        %v2298 = vpack.c.b16 %v2277, %v2276
        %v2299 = vpack.c.b16 %v2279, %v2278
        %v2300 = vpack.c.b16 %v2281, %v2280
        %v2301 = vpack.c.b16 %v2283, %v2282
        %v2302 = vpack.c.b16 %v2285, %v2284
        %v2303 = vpack.c.b16 %v2287, %v2286
        %2320 = vmatpush.bf16.msra.mxu0 %v2295
        %2321 = vmatpush.bf16.msra.mxu0 %v2294
        %2322 = vmatpush.bf16.msra.mxu0 %v2293
        %2323 = vmatpush.bf16.msra.mxu0 %v2292
        %2324 = vmatpush.bf16.msra.mxu0 %v2291
        %2325 = vmatpush.bf16.msra.mxu0 %v2290
        %2326 = vmatpush.bf16.msra.mxu0 %v2289
        %2327 = vmatpush.bf16.msra.mxu0 %v2288
        %2328 = vmatmul.bf16.gmra.mxu0 %v2165
        %v2329 = vpop.f32.mrf.mxu0
        %v2330 = vadd.f32 0.0, %v2329
        %v2331 = vpop.f32.mrf.mxu0
        %v2332 = vadd.f32 0.0, %v2331
        %2333 = vmatmul.bf16.gmra.mxu0 %v2185
        %v2334 = vpop.f32.mrf.mxu0
        %v2335 = vadd.f32 0.0, %v2334
        %v2336 = vpop.f32.mrf.mxu0
        %v2337 = vadd.f32 0.0, %v2336
        %2338 = vmatmul.bf16.gmra.mxu0 %v2201
        %v2339 = vpop.f32.mrf.mxu0
        %v2340 = vadd.f32 0.0, %v2339
        %v2341 = vpop.f32.mrf.mxu0
        %v2342 = vadd.f32 0.0, %v2341
        %2343 = vmatmul.bf16.gmra.mxu0 %v2212
        %v2344 = vpop.f32.mrf.mxu0
        %v2345 = vadd.f32 0.0, %v2344
        %v2346 = vpop.f32.mrf.mxu0
        %2347 = vdwg.mxu0
        %2348 = vmatpush.bf16.msra.mxu0 %v2303
        %2349 = vmatpush.bf16.msra.mxu0 %v2302
        %2350 = vmatpush.bf16.msra.mxu0 %v2301
        %2351 = vmatpush.bf16.msra.mxu0 %v2300
        %2352 = vmatpush.bf16.msra.mxu0 %v2299
        %2353 = vmatpush.bf16.msra.mxu0 %v2298
        %2354 = vmatpush.bf16.msra.mxu0 %v2297
        %2355 = vmatpush.bf16.msra.mxu0 %v2296
        %2356 = vmatmul.bf16.gmra.mxu0 %v2177
        %v2357 = vpop.f32.mrf.mxu0
        %v2358 = vadd.f32 %v2330, %v2357
        %v2359 = vpop.f32.mrf.mxu0
        %v2360 = vadd.f32 %v2332, %v2359
        %2361 = vmatmul.bf16.gmra.mxu0 %v2193
        %v2362 = vpop.f32.mrf.mxu0
        %v2363 = vadd.f32 %v2335, %v2362
        %v2364 = vpop.f32.mrf.mxu0
        %v2365 = vadd.f32 %v2337, %v2364
        %2366 = vmatmul.bf16.gmra.mxu0 %v2209
        %v2367 = vpop.f32.mrf.mxu0
        %v2368 = vadd.f32 %v2340, %v2367
        %v2369 = vpop.f32.mrf.mxu0
        %v2370 = vadd.f32 %v2342, %v2369
        %2371 = vmatmul.bf16.gmra.mxu0 %v2215
        %v2372 = vpop.f32.mrf.mxu0
        %v2373 = vadd.f32 %v2345, %v2372
        %v2374 = vpop.f32.mrf.mxu0
        %2375 = vdwg.mxu0
        %v2376 = vadd.f32 %v2114, %v2358
        %v2377 = vadd.f32 %v2115, %v2360
        %v2378 = vadd.f32 %v2116, %v2363
        %v2379 = vadd.f32 %v2117, %v2365
        %v2380 = vadd.f32 %v2118, %v2368
        %v2381 = vadd.f32 %v2119, %v2370
        %v2382 = vadd.f32 %v2120, %v2373
        %s2383 = scalar_lea.vmem %s3, 1024
        %v2384 = vld [vmem:[%s2383] sm:$0xf]
        %v2385 = vld [vmem:[%s2383 + $0x4] sm:$0xf]
        %v2386 = vld [vmem:[%s2383 + $0x8] sm:$0xf]
        %v2387 = vld [vmem:[%s2383 + $0xc] sm:$0xf]
        %v2388 = vld [vmem:[%s2383 + $0x10] sm:$0xf]
        %v2389 = vld [vmem:[%s2383 + $0x14] sm:$0xf]
        %v2390 = vld [vmem:[%s2383 + $0x18] sm:$0xf]
        %v2391 = vld [vmem:[%s2383 + $0x1c] sm:$0xf]
        %v2392 = vld [vmem:[%s2383 + $0x20] sm:$0xf]
        %v2393 = vld [vmem:[%s2383 + $0x24] sm:$0xf]
        %v2394 = vld [vmem:[%s2383 + $0x28] sm:$0xf]
        %v2395 = vld [vmem:[%s2383 + $0x2c] sm:$0xf]
        %v2396 = vld [vmem:[%s2383 + $0x30] sm:$0xf]
        %v2397 = vld [vmem:[%s2383 + $0x34] sm:$0xf]
        %v2398 = vld [vmem:[%s2383 + $0x38] sm:$0xf]
        %v2399 = vld [vmem:[%s2383 + $0x3c] sm:$0xf]
        %v2400 = vld [vmem:[%s2383 + $0x40] sm:$0xf]
        %v2401 = vld [vmem:[%s2383 + $0x44] sm:$0xf]
        %v2402 = vld [vmem:[%s2383 + $0x48] sm:$0xf]
        %v2403 = vld [vmem:[%s2383 + $0x4c] sm:$0xf]
        %v2404 = vld [vmem:[%s2383 + $0x50] sm:$0xf]
        %v2405 = vld [vmem:[%s2383 + $0x54] sm:$0xf]
        %v2406 = vld [vmem:[%s2383 + $0x58] sm:$0xf]
        %v2407 = vld [vmem:[%s2383 + $0x5c] sm:$0xf]
        %v2408 = vld [vmem:[%s2383 + $0x60] sm:$0xf]
        %v2409 = vld [vmem:[%s2383 + $0x64] sm:$0xf]
        %v2410 = vld [vmem:[%s2383 + $0x68] sm:$0xf]
        %v2411 = vld [vmem:[%s2383 + $0x6c] sm:$0xf]
        %v2412 = vld [vmem:[%s2383 + $0x70] sm:$0xf]
        %v2413 = vld [vmem:[%s2383 + $0x74] sm:$0xf]
        %v2414 = vld [vmem:[%s2383 + $0x78] sm:$0xf]
        %v2415 = vld [vmem:[%s2383 + $0x7c] sm:$0xf]
        %v2424 = vrot.slane %v1921, 1
        %v2425 = vrot.slane %v1923, 1
        %v2426 = vsel %vm1019, %v2424, %v2425
        %v2427 = vrot.slane %v1922, 1
        %v2428 = vrot.slane %v1924, 1
        %v2429 = vsel %vm1019, %v2427, %v2428
        %v2430 = vrot.slane %v1925, 1
        %v2431 = vsel %vm1019, %v2425, %v2430
        %v2432 = vrot.slane %v1926, 1
        %v2433 = vsel %vm1019, %v2428, %v2432
        %v2434 = vrot.slane %v1927, 1
        %v2435 = vsel %vm1019, %v2430, %v2434
        %v2436 = vrot.slane %v1928, 1
        %v2437 = vsel %vm1019, %v2432, %v2436
        %v2478 = vunpack.c.l.b16 %v2384
        %v2479 = vunpack.c.l.b16 %v2385
        %v2480 = vunpack.c.l.b16 %v2386
        %v2481 = vunpack.c.l.b16 %v2387
        %v2482 = vunpack.c.l.b16 %v2388
        %v2483 = vunpack.c.l.b16 %v2389
        %v2484 = vunpack.c.l.b16 %v2390
        %v2485 = vunpack.c.l.b16 %v2391
        %v2486 = vunpack.c.l.b16 %v2392
        %v2487 = vunpack.c.l.b16 %v2393
        %v2488 = vunpack.c.l.b16 %v2394
        %v2489 = vunpack.c.l.b16 %v2395
        %v2490 = vunpack.c.l.b16 %v2396
        %v2491 = vunpack.c.l.b16 %v2397
        %v2492 = vunpack.c.l.b16 %v2398
        %v2493 = vunpack.c.l.b16 %v2399
        %v2494 = vunpack.c.l.b16 %v2400
        %v2495 = vunpack.c.l.b16 %v2401
        %v2496 = vunpack.c.l.b16 %v2402
        %v2497 = vunpack.c.l.b16 %v2403
        %v2498 = vunpack.c.l.b16 %v2404
        %v2499 = vunpack.c.l.b16 %v2405
        %v2500 = vunpack.c.l.b16 %v2406
        %v2501 = vunpack.c.l.b16 %v2407
        %v2502 = vunpack.c.l.b16 %v2408
        %v2503 = vunpack.c.l.b16 %v2409
        %v2504 = vunpack.c.l.b16 %v2410
        %v2505 = vunpack.c.l.b16 %v2411
        %v2506 = vunpack.c.l.b16 %v2412
        %v2507 = vunpack.c.l.b16 %v2413
        %v2508 = vunpack.c.l.b16 %v2414
        %v2509 = vunpack.c.l.b16 %v2415
        %v2510 = vpack.c.b16 %v2479, %v2478
        %v2511 = vpack.c.b16 %v2481, %v2480
        %v2512 = vpack.c.b16 %v2483, %v2482
        %v2513 = vpack.c.b16 %v2485, %v2484
        %v2514 = vpack.c.b16 %v2487, %v2486
        %v2515 = vpack.c.b16 %v2489, %v2488
        %v2516 = vpack.c.b16 %v2491, %v2490
        %v2517 = vpack.c.b16 %v2493, %v2492
        %v2518 = vpack.c.b16 %v2495, %v2494
        %v2519 = vpack.c.b16 %v2497, %v2496
        %v2520 = vpack.c.b16 %v2499, %v2498
        %v2521 = vpack.c.b16 %v2501, %v2500
        %v2522 = vpack.c.b16 %v2503, %v2502
        %v2523 = vpack.c.b16 %v2505, %v2504
        %v2524 = vpack.c.b16 %v2507, %v2506
        %v2525 = vpack.c.b16 %v2509, %v2508
        %2542 = vmatpush.bf16.msra.mxu0 %v2517
        %2543 = vmatpush.bf16.msra.mxu0 %v2516
        %2544 = vmatpush.bf16.msra.mxu0 %v2515
        %2545 = vmatpush.bf16.msra.mxu0 %v2514
        %2546 = vmatpush.bf16.msra.mxu0 %v2513
        %2547 = vmatpush.bf16.msra.mxu0 %v2512
        %2548 = vmatpush.bf16.msra.mxu0 %v2511
        %2549 = vmatpush.bf16.msra.mxu0 %v2510
        %2550 = vmatmul.bf16.gmra.mxu0 %v2426
        %v2551 = vpop.f32.mrf.mxu0
        %v2552 = vadd.f32 0.0, %v2551
        %v2553 = vpop.f32.mrf.mxu0
        %v2554 = vadd.f32 0.0, %v2553
        %2555 = vmatmul.bf16.gmra.mxu0 %v2431
        %v2556 = vpop.f32.mrf.mxu0
        %v2557 = vadd.f32 0.0, %v2556
        %v2558 = vpop.f32.mrf.mxu0
        %v2559 = vadd.f32 0.0, %v2558
        %2560 = vmatmul.bf16.gmra.mxu0 %v2435
        %v2561 = vpop.f32.mrf.mxu0
        %v2562 = vadd.f32 0.0, %v2561
        %v2563 = vpop.f32.mrf.mxu0
        %v2564 = vadd.f32 0.0, %v2563
        %2565 = vmatmul.bf16.gmra.mxu0 %v2434
        %v2566 = vpop.f32.mrf.mxu0
        %v2567 = vadd.f32 0.0, %v2566
        %v2568 = vpop.f32.mrf.mxu0
        %2569 = vdwg.mxu0
        %2570 = vmatpush.bf16.msra.mxu0 %v2525
        %2571 = vmatpush.bf16.msra.mxu0 %v2524
        %2572 = vmatpush.bf16.msra.mxu0 %v2523
        %2573 = vmatpush.bf16.msra.mxu0 %v2522
        %2574 = vmatpush.bf16.msra.mxu0 %v2521
        %2575 = vmatpush.bf16.msra.mxu0 %v2520
        %2576 = vmatpush.bf16.msra.mxu0 %v2519
        %2577 = vmatpush.bf16.msra.mxu0 %v2518
        %2578 = vmatmul.bf16.gmra.mxu0 %v2429
        %v2579 = vpop.f32.mrf.mxu0
        %v2580 = vadd.f32 %v2552, %v2579
        %v2581 = vpop.f32.mrf.mxu0
        %v2582 = vadd.f32 %v2554, %v2581
        %2583 = vmatmul.bf16.gmra.mxu0 %v2433
        %v2584 = vpop.f32.mrf.mxu0
        %v2585 = vadd.f32 %v2557, %v2584
        %v2586 = vpop.f32.mrf.mxu0
        %v2587 = vadd.f32 %v2559, %v2586
        %2588 = vmatmul.bf16.gmra.mxu0 %v2437
        %v2589 = vpop.f32.mrf.mxu0
        %v2590 = vadd.f32 %v2562, %v2589
        %v2591 = vpop.f32.mrf.mxu0
        %v2592 = vadd.f32 %v2564, %v2591
        %2593 = vmatmul.bf16.gmra.mxu0 %v2436
        %v2594 = vpop.f32.mrf.mxu0
        %v2595 = vadd.f32 %v2567, %v2594
        %v2596 = vpop.f32.mrf.mxu0
        %2597 = vdwg.mxu0
        %v2598 = vadd.f32 %v2376, %v2580
        %v2599 = vadd.f32 %v2377, %v2582
        %v2600 = vadd.f32 %v2378, %v2585
        %v2601 = vadd.f32 %v2379, %v2587
        %v2602 = vadd.f32 %v2380, %v2590
        %v2603 = vadd.f32 %v2381, %v2592
        %v2604 = vadd.f32 %v2382, %v2595
        %v2606 = vperm.slane %v506, 0
        %v2608 = vadd.f32 %v2598, %v2606
        %v2609 = vadd.f32 %v2599, %v2606
        %v2610 = vadd.f32 %v2600, %v2606
        %v2611 = vadd.f32 %v2601, %v2606
        %v2612 = vadd.f32 %v2602, %v2606
        %v2613 = vadd.f32 %v2603, %v2606
        %v2614 = vadd.f32 %v2604, %v2606
        %v2615 = vmax.f32 %v2608, 0.0
        %v2616 = vmax.f32 %v2609, 0.0
        %v2617 = vmax.f32 %v2610, 0.0
        %v2618 = vmax.f32 %v2611, 0.0
        %v2619 = vmax.f32 %v2612, 0.0
        %v2620 = vmax.f32 %v2613, 0.0
        %v2621 = vmax.f32 %v2614, 0.0
        %s2622 = smul.u32 %s508, 56
        %s2623 = scalar_lea.vmem [#allocation3], %s2622
        %2624 = vst [vmem:[%s2623] sm:$0xff] %v2615
        %2625 = vst [vmem:[%s2623 + $0x8] sm:$0xff] %v2616
        %2626 = vst [vmem:[%s2623 + $0x10] sm:$0xff] %v2617
        %2627 = vst [vmem:[%s2623 + $0x18] sm:$0xff] %v2618
        %2628 = vst [vmem:[%s2623 + $0x20] sm:$0xff] %v2619
        %2629 = vst [vmem:[%s2623 + $0x28] sm:$0xff] %v2620
        %2630 = vst [vmem:[%s2623 + $0x30] sm:$0x3] %v2621
      $region68: #{cnn_spatial_forward.1} parent=55 // loop_footer
        %s512 = sadd.s32 1, %s508
      $region69: #{cnn_spatial_forward.1} parent=55 // loop_footer_branch
        %507 = sbr.rel target = $region65
      $region70: #{cnn_spatial_forward.1} parent=55 // loop_exit
        _
      %v2631 = vld [vmem:[%s6] sm:$0x1]
      loop: start=0, step=1, limit=25
      $region71: #{cnn_spatial_forward.1} parent=55 // loop_pre_header
        _
      $region72: #{cnn_spatial_forward.1} parent=55 // loop_header
        %s2633 = sphi 0, %s2637
        %p2634 = scmp.ge.s32.totalorder %s2633, 25
      $region73: #{cnn_spatial_forward.1} parent=55 // loop_header_branch
        %2636 = sbr.rel (%p2634) target = $region77
      $region74: #{cnn_spatial_forward.1} parent=55 // loop_body
        %s2638 = smul.u32 %s2633, 56
        %s2639 = scalar_lea.vmem [#allocation3], %s2638
        %v2640 = vld [vmem:[%s2639] sm:$0xff]
        %v2641 = vld [vmem:[%s2639 + $0x8] sm:$0xff]
        %v2642 = vld [vmem:[%s2639 + $0x10] sm:$0xff]
        %v2643 = vld [vmem:[%s2639 + $0x18] sm:$0xff]
        %v2644 = vld [vmem:[%s2639 + $0x20] sm:$0xff]
        %v2645 = vld [vmem:[%s2639 + $0x28] sm:$0xff]
        %v2646 = vld [vmem:[%s2639 + $0x30] sm:$0x3]
        %v2647 = vpack.c.bf16 %v2641, %v2640
        %v2648 = vpack.c.bf16 %v2643, %v2642
        %v2649 = vpack.c.bf16 %v2645, %v2644
        %v2650 = vld [vmem:[%s5] sm:$0xf]
        %v2651 = vld [vmem:[%s5 + $0x4] sm:$0xf]
        %v2652 = vld [vmem:[%s5 + $0x8] sm:$0xf]
        %v2653 = vld [vmem:[%s5 + $0xc] sm:$0xf]
        %v2654 = vld [vmem:[%s5 + $0x10] sm:$0xf]
        %v2655 = vld [vmem:[%s5 + $0x14] sm:$0xf]
        %v2656 = vld [vmem:[%s5 + $0x18] sm:$0xf]
        %v2657 = vld [vmem:[%s5 + $0x1c] sm:$0xf]
        %v2658 = vld [vmem:[%s5 + $0x20] sm:$0xf]
        %v2659 = vld [vmem:[%s5 + $0x24] sm:$0xf]
        %v2660 = vld [vmem:[%s5 + $0x28] sm:$0xf]
        %v2661 = vld [vmem:[%s5 + $0x2c] sm:$0xf]
        %v2662 = vld [vmem:[%s5 + $0x30] sm:$0xf]
        %v2663 = vld [vmem:[%s5 + $0x34] sm:$0xf]
        %v2664 = vld [vmem:[%s5 + $0x38] sm:$0xf]
        %v2665 = vld [vmem:[%s5 + $0x3c] sm:$0xf]
        %v2666 = vpack.c.bf16 %v2646, %v2646
        %s2667 = scalar_lea.vmem %s5, 64
        %v2668 = vld [vmem:[%s2667] sm:$0xf]
        %v2669 = vld [vmem:[%s2667 + $0x4] sm:$0xf]
        %v2670 = vld [vmem:[%s2667 + $0x8] sm:$0xf]
        %v2671 = vld [vmem:[%s2667 + $0xc] sm:$0xf]
        %v2672 = vld [vmem:[%s2667 + $0x10] sm:$0xf]
        %v2673 = vld [vmem:[%s2667 + $0x14] sm:$0xf]
        %v2674 = vld [vmem:[%s2667 + $0x18] sm:$0xf]
        %v2675 = vld [vmem:[%s2667 + $0x1c] sm:$0xf]
        %v2676 = vld [vmem:[%s2667 + $0x20] sm:$0xf]
        %v2677 = vld [vmem:[%s2667 + $0x24] sm:$0xf]
        %v2678 = vld [vmem:[%s2667 + $0x28] sm:$0xf]
        %v2679 = vld [vmem:[%s2667 + $0x2c] sm:$0xf]
        %v2680 = vld [vmem:[%s2667 + $0x30] sm:$0xf]
        %v2681 = vld [vmem:[%s2667 + $0x34] sm:$0xf]
        %v2682 = vld [vmem:[%s2667 + $0x38] sm:$0xf]
        %v2683 = vld [vmem:[%s2667 + $0x3c] sm:$0xf]
        %vm2684 = vsmask.f32 7424
        %v2686 = vshrl.u32 %v2647, 16
        %v2688 = vshll.u32 %v2647, 16
        %v2690 = vrot.slane %v2688, 1
        %v2691 = vor.u32 %v2686, %v2690
        %v2693 = vshll.u32 %v2648, 16
        %v2695 = vrot.slane %v2693, 1
        %v2696 = vsel %vm2684, %v2691, %v2695
        %v2697 = vshrl.u32 %v2648, 16
        %v2699 = vor.u32 %v2697, %v2695
        %v2701 = vshll.u32 %v2649, 16
        %v2703 = vrot.slane %v2701, 1
        %v2704 = vsel %vm2684, %v2699, %v2703
        %v2705 = vshrl.u32 %v2649, 16
        %v2707 = vor.u32 %v2705, %v2703
        %v2709 = vshll.u32 %v2666, 16
        %v2711 = vrot.slane %v2709, 1
        %v2712 = vsel %vm2684, %v2707, %v2711
        %v2732 = vunpack.c.l.b16 %v2668
        %v2733 = vunpack.c.l.b16 %v2669
        %v2734 = vunpack.c.l.b16 %v2670
        %v2735 = vunpack.c.l.b16 %v2671
        %v2736 = vunpack.c.l.b16 %v2672
        %v2737 = vunpack.c.l.b16 %v2673
        %v2738 = vunpack.c.l.b16 %v2674
        %v2739 = vunpack.c.l.b16 %v2675
        %v2740 = vunpack.c.l.b16 %v2676
        %v2741 = vunpack.c.l.b16 %v2677
        %v2742 = vunpack.c.l.b16 %v2678
        %v2743 = vunpack.c.l.b16 %v2679
        %v2744 = vunpack.c.l.b16 %v2680
        %v2745 = vunpack.c.l.b16 %v2681
        %v2746 = vunpack.c.l.b16 %v2682
        %v2747 = vunpack.c.l.b16 %v2683
        %v2748 = vpack.c.b16 %v2733, %v2732
        %v2749 = vpack.c.b16 %v2735, %v2734
        %v2750 = vpack.c.b16 %v2737, %v2736
        %v2751 = vpack.c.b16 %v2739, %v2738
        %v2752 = vpack.c.b16 %v2741, %v2740
        %v2753 = vpack.c.b16 %v2743, %v2742
        %v2754 = vpack.c.b16 %v2745, %v2744
        %v2755 = vpack.c.b16 %v2747, %v2746
        %2764 = vmatpush.bf16.msra.mxu0 %v2755
        %2765 = vmatpush.bf16.msra.mxu0 %v2754
        %2766 = vmatpush.bf16.msra.mxu0 %v2753
        %2767 = vmatpush.bf16.msra.mxu0 %v2752
        %2768 = vmatpush.bf16.msra.mxu0 %v2751
        %2769 = vmatpush.bf16.msra.mxu0 %v2750
        %2770 = vmatpush.bf16.msra.mxu0 %v2749
        %2771 = vmatpush.bf16.msra.mxu0 %v2748
        %2772 = vmatmul.bf16.gmra.mxu0 %v2696
        %v2773 = vpop.f32.mrf.mxu0
        %v2774 = vadd.f32 0.0, %v2773
        %v2775 = vpop.f32.mrf.mxu0
        %v2776 = vadd.f32 0.0, %v2775
        %2777 = vmatmul.bf16.gmra.mxu0 %v2704
        %v2778 = vpop.f32.mrf.mxu0
        %v2779 = vadd.f32 0.0, %v2778
        %v2780 = vpop.f32.mrf.mxu0
        %v2781 = vadd.f32 0.0, %v2780
        %2782 = vmatmul.bf16.gmra.mxu0 %v2712
        %v2783 = vpop.f32.mrf.mxu0
        %v2784 = vadd.f32 0.0, %v2783
        %v2785 = vpop.f32.mrf.mxu0
        %v2786 = vadd.f32 0.0, %v2785
        %2787 = vdwg.mxu0
        %v2804 = vunpack.c.l.b16 %v2650
        %v2805 = vunpack.c.l.b16 %v2651
        %v2806 = vunpack.c.l.b16 %v2652
        %v2807 = vunpack.c.l.b16 %v2653
        %v2808 = vunpack.c.l.b16 %v2654
        %v2809 = vunpack.c.l.b16 %v2655
        %v2810 = vunpack.c.l.b16 %v2656
        %v2811 = vunpack.c.l.b16 %v2657
        %v2812 = vunpack.c.l.b16 %v2658
        %v2813 = vunpack.c.l.b16 %v2659
        %v2814 = vunpack.c.l.b16 %v2660
        %v2815 = vunpack.c.l.b16 %v2661
        %v2816 = vunpack.c.l.b16 %v2662
        %v2817 = vunpack.c.l.b16 %v2663
        %v2818 = vunpack.c.l.b16 %v2664
        %v2819 = vunpack.c.l.b16 %v2665
        %v2820 = vpack.c.b16 %v2805, %v2804
        %v2821 = vpack.c.b16 %v2807, %v2806
        %v2822 = vpack.c.b16 %v2809, %v2808
        %v2823 = vpack.c.b16 %v2811, %v2810
        %v2824 = vpack.c.b16 %v2813, %v2812
        %v2825 = vpack.c.b16 %v2815, %v2814
        %v2826 = vpack.c.b16 %v2817, %v2816
        %v2827 = vpack.c.b16 %v2819, %v2818
        %2836 = vmatpush.bf16.msra.mxu0 %v2827
        %2837 = vmatpush.bf16.msra.mxu0 %v2826
        %2838 = vmatpush.bf16.msra.mxu0 %v2825
        %2839 = vmatpush.bf16.msra.mxu0 %v2824
        %2840 = vmatpush.bf16.msra.mxu0 %v2823
        %2841 = vmatpush.bf16.msra.mxu0 %v2822
        %2842 = vmatpush.bf16.msra.mxu0 %v2821
        %2843 = vmatpush.bf16.msra.mxu0 %v2820
        %2844 = vmatmul.bf16.gmra.mxu0 %v2647
        %v2845 = vpop.f32.mrf.mxu0
        %v2846 = vadd.f32 %v2774, %v2845
        %v2847 = vpop.f32.mrf.mxu0
        %v2848 = vadd.f32 %v2776, %v2847
        %2849 = vmatmul.bf16.gmra.mxu0 %v2648
        %v2850 = vpop.f32.mrf.mxu0
        %v2851 = vadd.f32 %v2779, %v2850
        %v2852 = vpop.f32.mrf.mxu0
        %v2853 = vadd.f32 %v2781, %v2852
        %2854 = vmatmul.bf16.gmra.mxu0 %v2649
        %v2855 = vpop.f32.mrf.mxu0
        %v2856 = vadd.f32 %v2784, %v2855
        %v2857 = vpop.f32.mrf.mxu0
        %v2858 = vadd.f32 %v2786, %v2857
        %2859 = vdwg.mxu0
        %s2860 = scalar_lea.vmem %s5, 128
        %v2861 = vld [vmem:[%s2860] sm:$0xf]
        %v2862 = vld [vmem:[%s2860 + $0x4] sm:$0xf]
        %v2863 = vld [vmem:[%s2860 + $0x8] sm:$0xf]
        %v2864 = vld [vmem:[%s2860 + $0xc] sm:$0xf]
        %v2865 = vld [vmem:[%s2860 + $0x10] sm:$0xf]
        %v2866 = vld [vmem:[%s2860 + $0x14] sm:$0xf]
        %v2867 = vld [vmem:[%s2860 + $0x18] sm:$0xf]
        %v2868 = vld [vmem:[%s2860 + $0x1c] sm:$0xf]
        %v2869 = vld [vmem:[%s2860 + $0x20] sm:$0xf]
        %v2870 = vld [vmem:[%s2860 + $0x24] sm:$0xf]
        %v2871 = vld [vmem:[%s2860 + $0x28] sm:$0xf]
        %v2872 = vld [vmem:[%s2860 + $0x2c] sm:$0xf]
        %v2873 = vld [vmem:[%s2860 + $0x30] sm:$0xf]
        %v2874 = vld [vmem:[%s2860 + $0x34] sm:$0xf]
        %v2875 = vld [vmem:[%s2860 + $0x38] sm:$0xf]
        %v2876 = vld [vmem:[%s2860 + $0x3c] sm:$0xf]
        %vm2881 = vcmask 1046528
        %v2882 = vrot.slane %v2647, 1
        %v2883 = vrot.slane %v2648, 1
        %v2884 = vsel %vm2881, %v2882, %v2883
        %v2885 = vrot.slane %v2649, 1
        %v2886 = vsel %vm2881, %v2883, %v2885
        %v2887 = vrot.slane %v2666, 1
        %v2888 = vsel %vm2881, %v2885, %v2887
        %v2908 = vunpack.c.l.b16 %v2861
        %v2909 = vunpack.c.l.b16 %v2862
        %v2910 = vunpack.c.l.b16 %v2863
        %v2911 = vunpack.c.l.b16 %v2864
        %v2912 = vunpack.c.l.b16 %v2865
        %v2913 = vunpack.c.l.b16 %v2866
        %v2914 = vunpack.c.l.b16 %v2867
        %v2915 = vunpack.c.l.b16 %v2868
        %v2916 = vunpack.c.l.b16 %v2869
        %v2917 = vunpack.c.l.b16 %v2870
        %v2918 = vunpack.c.l.b16 %v2871
        %v2919 = vunpack.c.l.b16 %v2872
        %v2920 = vunpack.c.l.b16 %v2873
        %v2921 = vunpack.c.l.b16 %v2874
        %v2922 = vunpack.c.l.b16 %v2875
        %v2923 = vunpack.c.l.b16 %v2876
        %v2924 = vpack.c.b16 %v2909, %v2908
        %v2925 = vpack.c.b16 %v2911, %v2910
        %v2926 = vpack.c.b16 %v2913, %v2912
        %v2927 = vpack.c.b16 %v2915, %v2914
        %v2928 = vpack.c.b16 %v2917, %v2916
        %v2929 = vpack.c.b16 %v2919, %v2918
        %v2930 = vpack.c.b16 %v2921, %v2920
        %v2931 = vpack.c.b16 %v2923, %v2922
        %2940 = vmatpush.bf16.msra.mxu0 %v2931
        %2941 = vmatpush.bf16.msra.mxu0 %v2930
        %2942 = vmatpush.bf16.msra.mxu0 %v2929
        %2943 = vmatpush.bf16.msra.mxu0 %v2928
        %2944 = vmatpush.bf16.msra.mxu0 %v2927
        %2945 = vmatpush.bf16.msra.mxu0 %v2926
        %2946 = vmatpush.bf16.msra.mxu0 %v2925
        %2947 = vmatpush.bf16.msra.mxu0 %v2924
        %2948 = vmatmul.bf16.gmra.mxu0 %v2884
        %v2949 = vpop.f32.mrf.mxu0
        %v2950 = vadd.f32 0.0, %v2949
        %v2951 = vpop.f32.mrf.mxu0
        %v2952 = vadd.f32 0.0, %v2951
        %2953 = vmatmul.bf16.gmra.mxu0 %v2886
        %v2954 = vpop.f32.mrf.mxu0
        %v2955 = vadd.f32 0.0, %v2954
        %v2956 = vpop.f32.mrf.mxu0
        %v2957 = vadd.f32 0.0, %v2956
        %2958 = vmatmul.bf16.gmra.mxu0 %v2888
        %v2959 = vpop.f32.mrf.mxu0
        %v2960 = vadd.f32 0.0, %v2959
        %v2961 = vpop.f32.mrf.mxu0
        %v2962 = vadd.f32 0.0, %v2961
        %2963 = vdwg.mxu0
        %v2964 = vadd.f32 %v2846, %v2950
        %v2965 = vadd.f32 %v2848, %v2952
        %v2966 = vadd.f32 %v2851, %v2955
        %v2967 = vadd.f32 %v2853, %v2957
        %v2968 = vadd.f32 %v2856, %v2960
        %v2969 = vadd.f32 %v2858, %v2962
        %s2970 = sadd.s32 %s2633, 1
        %s2971 = smul.u32 %s2970, 56
        %s2972 = scalar_lea.vmem [#allocation3], %s2971
        %v2973 = vld [vmem:[%s2972] sm:$0xff]
        %v2974 = vld [vmem:[%s2972 + $0x8] sm:$0xff]
        %v2975 = vld [vmem:[%s2972 + $0x10] sm:$0xff]
        %v2976 = vld [vmem:[%s2972 + $0x18] sm:$0xff]
        %v2977 = vld [vmem:[%s2972 + $0x20] sm:$0xff]
        %v2978 = vld [vmem:[%s2972 + $0x28] sm:$0xff]
        %v2979 = vld [vmem:[%s2972 + $0x30] sm:$0x3]
        %v2980 = vpack.c.bf16 %v2974, %v2973
        %v2981 = vpack.c.bf16 %v2976, %v2975
        %v2982 = vpack.c.bf16 %v2978, %v2977
        %s2983 = scalar_lea.vmem %s5, 192
        %v2984 = vld [vmem:[%s2983] sm:$0xf]
        %v2985 = vld [vmem:[%s2983 + $0x4] sm:$0xf]
        %v2986 = vld [vmem:[%s2983 + $0x8] sm:$0xf]
        %v2987 = vld [vmem:[%s2983 + $0xc] sm:$0xf]
        %v2988 = vld [vmem:[%s2983 + $0x10] sm:$0xf]
        %v2989 = vld [vmem:[%s2983 + $0x14] sm:$0xf]
        %v2990 = vld [vmem:[%s2983 + $0x18] sm:$0xf]
        %v2991 = vld [vmem:[%s2983 + $0x1c] sm:$0xf]
        %v2992 = vld [vmem:[%s2983 + $0x20] sm:$0xf]
        %v2993 = vld [vmem:[%s2983 + $0x24] sm:$0xf]
        %v2994 = vld [vmem:[%s2983 + $0x28] sm:$0xf]
        %v2995 = vld [vmem:[%s2983 + $0x2c] sm:$0xf]
        %v2996 = vld [vmem:[%s2983 + $0x30] sm:$0xf]
        %v2997 = vld [vmem:[%s2983 + $0x34] sm:$0xf]
        %v2998 = vld [vmem:[%s2983 + $0x38] sm:$0xf]
        %v2999 = vld [vmem:[%s2983 + $0x3c] sm:$0xf]
        %v3016 = vunpack.c.l.b16 %v2984
        %v3017 = vunpack.c.l.b16 %v2985
        %v3018 = vunpack.c.l.b16 %v2986
        %v3019 = vunpack.c.l.b16 %v2987
        %v3020 = vunpack.c.l.b16 %v2988
        %v3021 = vunpack.c.l.b16 %v2989
        %v3022 = vunpack.c.l.b16 %v2990
        %v3023 = vunpack.c.l.b16 %v2991
        %v3024 = vunpack.c.l.b16 %v2992
        %v3025 = vunpack.c.l.b16 %v2993
        %v3026 = vunpack.c.l.b16 %v2994
        %v3027 = vunpack.c.l.b16 %v2995
        %v3028 = vunpack.c.l.b16 %v2996
        %v3029 = vunpack.c.l.b16 %v2997
        %v3030 = vunpack.c.l.b16 %v2998
        %v3031 = vunpack.c.l.b16 %v2999
        %v3032 = vpack.c.b16 %v3017, %v3016
        %v3033 = vpack.c.b16 %v3019, %v3018
        %v3034 = vpack.c.b16 %v3021, %v3020
        %v3035 = vpack.c.b16 %v3023, %v3022
        %v3036 = vpack.c.b16 %v3025, %v3024
        %v3037 = vpack.c.b16 %v3027, %v3026
        %v3038 = vpack.c.b16 %v3029, %v3028
        %v3039 = vpack.c.b16 %v3031, %v3030
        %3048 = vmatpush.bf16.msra.mxu0 %v3039
        %3049 = vmatpush.bf16.msra.mxu0 %v3038
        %3050 = vmatpush.bf16.msra.mxu0 %v3037
        %3051 = vmatpush.bf16.msra.mxu0 %v3036
        %3052 = vmatpush.bf16.msra.mxu0 %v3035
        %3053 = vmatpush.bf16.msra.mxu0 %v3034
        %3054 = vmatpush.bf16.msra.mxu0 %v3033
        %3055 = vmatpush.bf16.msra.mxu0 %v3032
        %3056 = vmatmul.bf16.gmra.mxu0 %v2980
        %v3057 = vpop.f32.mrf.mxu0
        %v3058 = vadd.f32 0.0, %v3057
        %v3059 = vpop.f32.mrf.mxu0
        %v3060 = vadd.f32 0.0, %v3059
        %3061 = vmatmul.bf16.gmra.mxu0 %v2981
        %v3062 = vpop.f32.mrf.mxu0
        %v3063 = vadd.f32 0.0, %v3062
        %v3064 = vpop.f32.mrf.mxu0
        %v3065 = vadd.f32 0.0, %v3064
        %3066 = vmatmul.bf16.gmra.mxu0 %v2982
        %v3067 = vpop.f32.mrf.mxu0
        %v3068 = vadd.f32 0.0, %v3067
        %v3069 = vpop.f32.mrf.mxu0
        %v3070 = vadd.f32 0.0, %v3069
        %3071 = vdwg.mxu0
        %v3072 = vadd.f32 %v2964, %v3058
        %v3073 = vadd.f32 %v2965, %v3060
        %v3074 = vadd.f32 %v2966, %v3063
        %v3075 = vadd.f32 %v2967, %v3065
        %v3076 = vadd.f32 %v2968, %v3068
        %v3077 = vadd.f32 %v2969, %v3070
        %v3078 = vpack.c.bf16 %v2979, %v2979
        %s3079 = scalar_lea.vmem %s5, 256
        %v3080 = vld [vmem:[%s3079] sm:$0xf]
        %v3081 = vld [vmem:[%s3079 + $0x4] sm:$0xf]
        %v3082 = vld [vmem:[%s3079 + $0x8] sm:$0xf]
        %v3083 = vld [vmem:[%s3079 + $0xc] sm:$0xf]
        %v3084 = vld [vmem:[%s3079 + $0x10] sm:$0xf]
        %v3085 = vld [vmem:[%s3079 + $0x14] sm:$0xf]
        %v3086 = vld [vmem:[%s3079 + $0x18] sm:$0xf]
        %v3087 = vld [vmem:[%s3079 + $0x1c] sm:$0xf]
        %v3088 = vld [vmem:[%s3079 + $0x20] sm:$0xf]
        %v3089 = vld [vmem:[%s3079 + $0x24] sm:$0xf]
        %v3090 = vld [vmem:[%s3079 + $0x28] sm:$0xf]
        %v3091 = vld [vmem:[%s3079 + $0x2c] sm:$0xf]
        %v3092 = vld [vmem:[%s3079 + $0x30] sm:$0xf]
        %v3093 = vld [vmem:[%s3079 + $0x34] sm:$0xf]
        %v3094 = vld [vmem:[%s3079 + $0x38] sm:$0xf]
        %v3095 = vld [vmem:[%s3079 + $0x3c] sm:$0xf]
        %v3097 = vshrl.u32 %v2980, 16
        %v3099 = vshll.u32 %v2980, 16
        %v3101 = vrot.slane %v3099, 1
        %v3102 = vor.u32 %v3097, %v3101
        %v3104 = vshll.u32 %v2981, 16
        %v3106 = vrot.slane %v3104, 1
        %v3107 = vsel %vm2684, %v3102, %v3106
        %v3108 = vshrl.u32 %v2981, 16
        %v3110 = vor.u32 %v3108, %v3106
        %v3112 = vshll.u32 %v2982, 16
        %v3114 = vrot.slane %v3112, 1
        %v3115 = vsel %vm2684, %v3110, %v3114
        %v3116 = vshrl.u32 %v2982, 16
        %v3118 = vor.u32 %v3116, %v3114
        %v3120 = vshll.u32 %v3078, 16
        %v3122 = vrot.slane %v3120, 1
        %v3123 = vsel %vm2684, %v3118, %v3122
        %v3143 = vunpack.c.l.b16 %v3080
        %v3144 = vunpack.c.l.b16 %v3081
        %v3145 = vunpack.c.l.b16 %v3082
        %v3146 = vunpack.c.l.b16 %v3083
        %v3147 = vunpack.c.l.b16 %v3084
        %v3148 = vunpack.c.l.b16 %v3085
        %v3149 = vunpack.c.l.b16 %v3086
        %v3150 = vunpack.c.l.b16 %v3087
        %v3151 = vunpack.c.l.b16 %v3088
        %v3152 = vunpack.c.l.b16 %v3089
        %v3153 = vunpack.c.l.b16 %v3090
        %v3154 = vunpack.c.l.b16 %v3091
        %v3155 = vunpack.c.l.b16 %v3092
        %v3156 = vunpack.c.l.b16 %v3093
        %v3157 = vunpack.c.l.b16 %v3094
        %v3158 = vunpack.c.l.b16 %v3095
        %v3159 = vpack.c.b16 %v3144, %v3143
        %v3160 = vpack.c.b16 %v3146, %v3145
        %v3161 = vpack.c.b16 %v3148, %v3147
        %v3162 = vpack.c.b16 %v3150, %v3149
        %v3163 = vpack.c.b16 %v3152, %v3151
        %v3164 = vpack.c.b16 %v3154, %v3153
        %v3165 = vpack.c.b16 %v3156, %v3155
        %v3166 = vpack.c.b16 %v3158, %v3157
        %3175 = vmatpush.bf16.msra.mxu0 %v3166
        %3176 = vmatpush.bf16.msra.mxu0 %v3165
        %3177 = vmatpush.bf16.msra.mxu0 %v3164
        %3178 = vmatpush.bf16.msra.mxu0 %v3163
        %3179 = vmatpush.bf16.msra.mxu0 %v3162
        %3180 = vmatpush.bf16.msra.mxu0 %v3161
        %3181 = vmatpush.bf16.msra.mxu0 %v3160
        %3182 = vmatpush.bf16.msra.mxu0 %v3159
        %3183 = vmatmul.bf16.gmra.mxu0 %v3107
        %v3184 = vpop.f32.mrf.mxu0
        %v3185 = vadd.f32 0.0, %v3184
        %v3186 = vpop.f32.mrf.mxu0
        %v3187 = vadd.f32 0.0, %v3186
        %3188 = vmatmul.bf16.gmra.mxu0 %v3115
        %v3189 = vpop.f32.mrf.mxu0
        %v3190 = vadd.f32 0.0, %v3189
        %v3191 = vpop.f32.mrf.mxu0
        %v3192 = vadd.f32 0.0, %v3191
        %3193 = vmatmul.bf16.gmra.mxu0 %v3123
        %v3194 = vpop.f32.mrf.mxu0
        %v3195 = vadd.f32 0.0, %v3194
        %v3196 = vpop.f32.mrf.mxu0
        %v3197 = vadd.f32 0.0, %v3196
        %3198 = vdwg.mxu0
        %v3199 = vadd.f32 %v3072, %v3185
        %v3200 = vadd.f32 %v3073, %v3187
        %v3201 = vadd.f32 %v3074, %v3190
        %v3202 = vadd.f32 %v3075, %v3192
        %v3203 = vadd.f32 %v3076, %v3195
        %v3204 = vadd.f32 %v3077, %v3197
        %s3205 = scalar_lea.vmem %s5, 320
        %v3206 = vld [vmem:[%s3205] sm:$0xf]
        %v3207 = vld [vmem:[%s3205 + $0x4] sm:$0xf]
        %v3208 = vld [vmem:[%s3205 + $0x8] sm:$0xf]
        %v3209 = vld [vmem:[%s3205 + $0xc] sm:$0xf]
        %v3210 = vld [vmem:[%s3205 + $0x10] sm:$0xf]
        %v3211 = vld [vmem:[%s3205 + $0x14] sm:$0xf]
        %v3212 = vld [vmem:[%s3205 + $0x18] sm:$0xf]
        %v3213 = vld [vmem:[%s3205 + $0x1c] sm:$0xf]
        %v3214 = vld [vmem:[%s3205 + $0x20] sm:$0xf]
        %v3215 = vld [vmem:[%s3205 + $0x24] sm:$0xf]
        %v3216 = vld [vmem:[%s3205 + $0x28] sm:$0xf]
        %v3217 = vld [vmem:[%s3205 + $0x2c] sm:$0xf]
        %v3218 = vld [vmem:[%s3205 + $0x30] sm:$0xf]
        %v3219 = vld [vmem:[%s3205 + $0x34] sm:$0xf]
        %v3220 = vld [vmem:[%s3205 + $0x38] sm:$0xf]
        %v3221 = vld [vmem:[%s3205 + $0x3c] sm:$0xf]
        %v3226 = vrot.slane %v2980, 1
        %v3227 = vrot.slane %v2981, 1
        %v3228 = vsel %vm2881, %v3226, %v3227
        %v3229 = vrot.slane %v2982, 1
        %v3230 = vsel %vm2881, %v3227, %v3229
        %v3231 = vrot.slane %v3078, 1
        %v3232 = vsel %vm2881, %v3229, %v3231
        %v3252 = vunpack.c.l.b16 %v3206
        %v3253 = vunpack.c.l.b16 %v3207
        %v3254 = vunpack.c.l.b16 %v3208
        %v3255 = vunpack.c.l.b16 %v3209
        %v3256 = vunpack.c.l.b16 %v3210
        %v3257 = vunpack.c.l.b16 %v3211
        %v3258 = vunpack.c.l.b16 %v3212
        %v3259 = vunpack.c.l.b16 %v3213
        %v3260 = vunpack.c.l.b16 %v3214
        %v3261 = vunpack.c.l.b16 %v3215
        %v3262 = vunpack.c.l.b16 %v3216
        %v3263 = vunpack.c.l.b16 %v3217
        %v3264 = vunpack.c.l.b16 %v3218
        %v3265 = vunpack.c.l.b16 %v3219
        %v3266 = vunpack.c.l.b16 %v3220
        %v3267 = vunpack.c.l.b16 %v3221
        %v3268 = vpack.c.b16 %v3253, %v3252
        %v3269 = vpack.c.b16 %v3255, %v3254
        %v3270 = vpack.c.b16 %v3257, %v3256
        %v3271 = vpack.c.b16 %v3259, %v3258
        %v3272 = vpack.c.b16 %v3261, %v3260
        %v3273 = vpack.c.b16 %v3263, %v3262
        %v3274 = vpack.c.b16 %v3265, %v3264
        %v3275 = vpack.c.b16 %v3267, %v3266
        %3284 = vmatpush.bf16.msra.mxu0 %v3275
        %3285 = vmatpush.bf16.msra.mxu0 %v3274
        %3286 = vmatpush.bf16.msra.mxu0 %v3273
        %3287 = vmatpush.bf16.msra.mxu0 %v3272
        %3288 = vmatpush.bf16.msra.mxu0 %v3271
        %3289 = vmatpush.bf16.msra.mxu0 %v3270
        %3290 = vmatpush.bf16.msra.mxu0 %v3269
        %3291 = vmatpush.bf16.msra.mxu0 %v3268
        %3292 = vmatmul.bf16.gmra.mxu0 %v3228
        %v3293 = vpop.f32.mrf.mxu0
        %v3294 = vadd.f32 0.0, %v3293
        %v3295 = vpop.f32.mrf.mxu0
        %v3296 = vadd.f32 0.0, %v3295
        %3297 = vmatmul.bf16.gmra.mxu0 %v3230
        %v3298 = vpop.f32.mrf.mxu0
        %v3299 = vadd.f32 0.0, %v3298
        %v3300 = vpop.f32.mrf.mxu0
        %v3301 = vadd.f32 0.0, %v3300
        %3302 = vmatmul.bf16.gmra.mxu0 %v3232
        %v3303 = vpop.f32.mrf.mxu0
        %v3304 = vadd.f32 0.0, %v3303
        %v3305 = vpop.f32.mrf.mxu0
        %v3306 = vadd.f32 0.0, %v3305
        %3307 = vdwg.mxu0
        %v3308 = vadd.f32 %v3199, %v3294
        %v3309 = vadd.f32 %v3200, %v3296
        %v3310 = vadd.f32 %v3201, %v3299
        %v3311 = vadd.f32 %v3202, %v3301
        %v3312 = vadd.f32 %v3203, %v3304
        %v3313 = vadd.f32 %v3204, %v3306
        %s3314 = sadd.s32 %s2633, 2
        %s3315 = smul.u32 %s3314, 56
        %s3316 = scalar_lea.vmem [#allocation3], %s3315
        %v3317 = vld [vmem:[%s3316] sm:$0xff]
        %v3318 = vld [vmem:[%s3316 + $0x8] sm:$0xff]
        %v3319 = vld [vmem:[%s3316 + $0x10] sm:$0xff]
        %v3320 = vld [vmem:[%s3316 + $0x18] sm:$0xff]
        %v3321 = vld [vmem:[%s3316 + $0x20] sm:$0xff]
        %v3322 = vld [vmem:[%s3316 + $0x28] sm:$0xff]
        %v3323 = vld [vmem:[%s3316 + $0x30] sm:$0x3]
        %v3324 = vpack.c.bf16 %v3318, %v3317
        %v3325 = vpack.c.bf16 %v3320, %v3319
        %v3326 = vpack.c.bf16 %v3322, %v3321
        %s3327 = scalar_lea.vmem %s5, 384
        %v3328 = vld [vmem:[%s3327] sm:$0xf]
        %v3329 = vld [vmem:[%s3327 + $0x4] sm:$0xf]
        %v3330 = vld [vmem:[%s3327 + $0x8] sm:$0xf]
        %v3331 = vld [vmem:[%s3327 + $0xc] sm:$0xf]
        %v3332 = vld [vmem:[%s3327 + $0x10] sm:$0xf]
        %v3333 = vld [vmem:[%s3327 + $0x14] sm:$0xf]
        %v3334 = vld [vmem:[%s3327 + $0x18] sm:$0xf]
        %v3335 = vld [vmem:[%s3327 + $0x1c] sm:$0xf]
        %v3336 = vld [vmem:[%s3327 + $0x20] sm:$0xf]
        %v3337 = vld [vmem:[%s3327 + $0x24] sm:$0xf]
        %v3338 = vld [vmem:[%s3327 + $0x28] sm:$0xf]
        %v3339 = vld [vmem:[%s3327 + $0x2c] sm:$0xf]
        %v3340 = vld [vmem:[%s3327 + $0x30] sm:$0xf]
        %v3341 = vld [vmem:[%s3327 + $0x34] sm:$0xf]
        %v3342 = vld [vmem:[%s3327 + $0x38] sm:$0xf]
        %v3343 = vld [vmem:[%s3327 + $0x3c] sm:$0xf]
        %v3360 = vunpack.c.l.b16 %v3328
        %v3361 = vunpack.c.l.b16 %v3329
        %v3362 = vunpack.c.l.b16 %v3330
        %v3363 = vunpack.c.l.b16 %v3331
        %v3364 = vunpack.c.l.b16 %v3332
        %v3365 = vunpack.c.l.b16 %v3333
        %v3366 = vunpack.c.l.b16 %v3334
        %v3367 = vunpack.c.l.b16 %v3335
        %v3368 = vunpack.c.l.b16 %v3336
        %v3369 = vunpack.c.l.b16 %v3337
        %v3370 = vunpack.c.l.b16 %v3338
        %v3371 = vunpack.c.l.b16 %v3339
        %v3372 = vunpack.c.l.b16 %v3340
        %v3373 = vunpack.c.l.b16 %v3341
        %v3374 = vunpack.c.l.b16 %v3342
        %v3375 = vunpack.c.l.b16 %v3343
        %v3376 = vpack.c.b16 %v3361, %v3360
        %v3377 = vpack.c.b16 %v3363, %v3362
        %v3378 = vpack.c.b16 %v3365, %v3364
        %v3379 = vpack.c.b16 %v3367, %v3366
        %v3380 = vpack.c.b16 %v3369, %v3368
        %v3381 = vpack.c.b16 %v3371, %v3370
        %v3382 = vpack.c.b16 %v3373, %v3372
        %v3383 = vpack.c.b16 %v3375, %v3374
        %3392 = vmatpush.bf16.msra.mxu0 %v3383
        %3393 = vmatpush.bf16.msra.mxu0 %v3382
        %3394 = vmatpush.bf16.msra.mxu0 %v3381
        %3395 = vmatpush.bf16.msra.mxu0 %v3380
        %3396 = vmatpush.bf16.msra.mxu0 %v3379
        %3397 = vmatpush.bf16.msra.mxu0 %v3378
        %3398 = vmatpush.bf16.msra.mxu0 %v3377
        %3399 = vmatpush.bf16.msra.mxu0 %v3376
        %3400 = vmatmul.bf16.gmra.mxu0 %v3324
        %v3401 = vpop.f32.mrf.mxu0
        %v3402 = vadd.f32 0.0, %v3401
        %v3403 = vpop.f32.mrf.mxu0
        %v3404 = vadd.f32 0.0, %v3403
        %3405 = vmatmul.bf16.gmra.mxu0 %v3325
        %v3406 = vpop.f32.mrf.mxu0
        %v3407 = vadd.f32 0.0, %v3406
        %v3408 = vpop.f32.mrf.mxu0
        %v3409 = vadd.f32 0.0, %v3408
        %3410 = vmatmul.bf16.gmra.mxu0 %v3326
        %v3411 = vpop.f32.mrf.mxu0
        %v3412 = vadd.f32 0.0, %v3411
        %v3413 = vpop.f32.mrf.mxu0
        %v3414 = vadd.f32 0.0, %v3413
        %3415 = vdwg.mxu0
        %v3416 = vadd.f32 %v3308, %v3402
        %v3417 = vadd.f32 %v3309, %v3404
        %v3418 = vadd.f32 %v3310, %v3407
        %v3419 = vadd.f32 %v3311, %v3409
        %v3420 = vadd.f32 %v3312, %v3412
        %v3421 = vadd.f32 %v3313, %v3414
        %v3422 = vpack.c.bf16 %v3323, %v3323
        %s3423 = scalar_lea.vmem %s5, 448
        %v3424 = vld [vmem:[%s3423] sm:$0xf]
        %v3425 = vld [vmem:[%s3423 + $0x4] sm:$0xf]
        %v3426 = vld [vmem:[%s3423 + $0x8] sm:$0xf]
        %v3427 = vld [vmem:[%s3423 + $0xc] sm:$0xf]
        %v3428 = vld [vmem:[%s3423 + $0x10] sm:$0xf]
        %v3429 = vld [vmem:[%s3423 + $0x14] sm:$0xf]
        %v3430 = vld [vmem:[%s3423 + $0x18] sm:$0xf]
        %v3431 = vld [vmem:[%s3423 + $0x1c] sm:$0xf]
        %v3432 = vld [vmem:[%s3423 + $0x20] sm:$0xf]
        %v3433 = vld [vmem:[%s3423 + $0x24] sm:$0xf]
        %v3434 = vld [vmem:[%s3423 + $0x28] sm:$0xf]
        %v3435 = vld [vmem:[%s3423 + $0x2c] sm:$0xf]
        %v3436 = vld [vmem:[%s3423 + $0x30] sm:$0xf]
        %v3437 = vld [vmem:[%s3423 + $0x34] sm:$0xf]
        %v3438 = vld [vmem:[%s3423 + $0x38] sm:$0xf]
        %v3439 = vld [vmem:[%s3423 + $0x3c] sm:$0xf]
        %v3441 = vshrl.u32 %v3324, 16
        %v3443 = vshll.u32 %v3324, 16
        %v3445 = vrot.slane %v3443, 1
        %v3446 = vor.u32 %v3441, %v3445
        %v3448 = vshll.u32 %v3325, 16
        %v3450 = vrot.slane %v3448, 1
        %v3451 = vsel %vm2684, %v3446, %v3450
        %v3452 = vshrl.u32 %v3325, 16
        %v3454 = vor.u32 %v3452, %v3450
        %v3456 = vshll.u32 %v3326, 16
        %v3458 = vrot.slane %v3456, 1
        %v3459 = vsel %vm2684, %v3454, %v3458
        %v3460 = vshrl.u32 %v3326, 16
        %v3462 = vor.u32 %v3460, %v3458
        %v3464 = vshll.u32 %v3422, 16
        %v3466 = vrot.slane %v3464, 1
        %v3467 = vsel %vm2684, %v3462, %v3466
        %v3487 = vunpack.c.l.b16 %v3424
        %v3488 = vunpack.c.l.b16 %v3425
        %v3489 = vunpack.c.l.b16 %v3426
        %v3490 = vunpack.c.l.b16 %v3427
        %v3491 = vunpack.c.l.b16 %v3428
        %v3492 = vunpack.c.l.b16 %v3429
        %v3493 = vunpack.c.l.b16 %v3430
        %v3494 = vunpack.c.l.b16 %v3431
        %v3495 = vunpack.c.l.b16 %v3432
        %v3496 = vunpack.c.l.b16 %v3433
        %v3497 = vunpack.c.l.b16 %v3434
        %v3498 = vunpack.c.l.b16 %v3435
        %v3499 = vunpack.c.l.b16 %v3436
        %v3500 = vunpack.c.l.b16 %v3437
        %v3501 = vunpack.c.l.b16 %v3438
        %v3502 = vunpack.c.l.b16 %v3439
        %v3503 = vpack.c.b16 %v3488, %v3487
        %v3504 = vpack.c.b16 %v3490, %v3489
        %v3505 = vpack.c.b16 %v3492, %v3491
        %v3506 = vpack.c.b16 %v3494, %v3493
        %v3507 = vpack.c.b16 %v3496, %v3495
        %v3508 = vpack.c.b16 %v3498, %v3497
        %v3509 = vpack.c.b16 %v3500, %v3499
        %v3510 = vpack.c.b16 %v3502, %v3501
        %3519 = vmatpush.bf16.msra.mxu0 %v3510
        %3520 = vmatpush.bf16.msra.mxu0 %v3509
        %3521 = vmatpush.bf16.msra.mxu0 %v3508
        %3522 = vmatpush.bf16.msra.mxu0 %v3507
        %3523 = vmatpush.bf16.msra.mxu0 %v3506
        %3524 = vmatpush.bf16.msra.mxu0 %v3505
        %3525 = vmatpush.bf16.msra.mxu0 %v3504
        %3526 = vmatpush.bf16.msra.mxu0 %v3503
        %3527 = vmatmul.bf16.gmra.mxu0 %v3451
        %v3528 = vpop.f32.mrf.mxu0
        %v3529 = vadd.f32 0.0, %v3528
        %v3530 = vpop.f32.mrf.mxu0
        %v3531 = vadd.f32 0.0, %v3530
        %3532 = vmatmul.bf16.gmra.mxu0 %v3459
        %v3533 = vpop.f32.mrf.mxu0
        %v3534 = vadd.f32 0.0, %v3533
        %v3535 = vpop.f32.mrf.mxu0
        %v3536 = vadd.f32 0.0, %v3535
        %3537 = vmatmul.bf16.gmra.mxu0 %v3467
        %v3538 = vpop.f32.mrf.mxu0
        %v3539 = vadd.f32 0.0, %v3538
        %v3540 = vpop.f32.mrf.mxu0
        %v3541 = vadd.f32 0.0, %v3540
        %3542 = vdwg.mxu0
        %v3543 = vadd.f32 %v3416, %v3529
        %v3544 = vadd.f32 %v3417, %v3531
        %v3545 = vadd.f32 %v3418, %v3534
        %v3546 = vadd.f32 %v3419, %v3536
        %v3547 = vadd.f32 %v3420, %v3539
        %v3548 = vadd.f32 %v3421, %v3541
        %s3549 = scalar_lea.vmem %s5, 512
        %v3550 = vld [vmem:[%s3549] sm:$0xf]
        %v3551 = vld [vmem:[%s3549 + $0x4] sm:$0xf]
        %v3552 = vld [vmem:[%s3549 + $0x8] sm:$0xf]
        %v3553 = vld [vmem:[%s3549 + $0xc] sm:$0xf]
        %v3554 = vld [vmem:[%s3549 + $0x10] sm:$0xf]
        %v3555 = vld [vmem:[%s3549 + $0x14] sm:$0xf]
        %v3556 = vld [vmem:[%s3549 + $0x18] sm:$0xf]
        %v3557 = vld [vmem:[%s3549 + $0x1c] sm:$0xf]
        %v3558 = vld [vmem:[%s3549 + $0x20] sm:$0xf]
        %v3559 = vld [vmem:[%s3549 + $0x24] sm:$0xf]
        %v3560 = vld [vmem:[%s3549 + $0x28] sm:$0xf]
        %v3561 = vld [vmem:[%s3549 + $0x2c] sm:$0xf]
        %v3562 = vld [vmem:[%s3549 + $0x30] sm:$0xf]
        %v3563 = vld [vmem:[%s3549 + $0x34] sm:$0xf]
        %v3564 = vld [vmem:[%s3549 + $0x38] sm:$0xf]
        %v3565 = vld [vmem:[%s3549 + $0x3c] sm:$0xf]
        %v3570 = vrot.slane %v3324, 1
        %v3571 = vrot.slane %v3325, 1
        %v3572 = vsel %vm2881, %v3570, %v3571
        %v3573 = vrot.slane %v3326, 1
        %v3574 = vsel %vm2881, %v3571, %v3573
        %v3575 = vrot.slane %v3422, 1
        %v3576 = vsel %vm2881, %v3573, %v3575
        %v3596 = vunpack.c.l.b16 %v3550
        %v3597 = vunpack.c.l.b16 %v3551
        %v3598 = vunpack.c.l.b16 %v3552
        %v3599 = vunpack.c.l.b16 %v3553
        %v3600 = vunpack.c.l.b16 %v3554
        %v3601 = vunpack.c.l.b16 %v3555
        %v3602 = vunpack.c.l.b16 %v3556
        %v3603 = vunpack.c.l.b16 %v3557
        %v3604 = vunpack.c.l.b16 %v3558
        %v3605 = vunpack.c.l.b16 %v3559
        %v3606 = vunpack.c.l.b16 %v3560
        %v3607 = vunpack.c.l.b16 %v3561
        %v3608 = vunpack.c.l.b16 %v3562
        %v3609 = vunpack.c.l.b16 %v3563
        %v3610 = vunpack.c.l.b16 %v3564
        %v3611 = vunpack.c.l.b16 %v3565
        %v3612 = vpack.c.b16 %v3597, %v3596
        %v3613 = vpack.c.b16 %v3599, %v3598
        %v3614 = vpack.c.b16 %v3601, %v3600
        %v3615 = vpack.c.b16 %v3603, %v3602
        %v3616 = vpack.c.b16 %v3605, %v3604
        %v3617 = vpack.c.b16 %v3607, %v3606
        %v3618 = vpack.c.b16 %v3609, %v3608
        %v3619 = vpack.c.b16 %v3611, %v3610
        %3628 = vmatpush.bf16.msra.mxu0 %v3619
        %3629 = vmatpush.bf16.msra.mxu0 %v3618
        %3630 = vmatpush.bf16.msra.mxu0 %v3617
        %3631 = vmatpush.bf16.msra.mxu0 %v3616
        %3632 = vmatpush.bf16.msra.mxu0 %v3615
        %3633 = vmatpush.bf16.msra.mxu0 %v3614
        %3634 = vmatpush.bf16.msra.mxu0 %v3613
        %3635 = vmatpush.bf16.msra.mxu0 %v3612
        %3636 = vmatmul.bf16.gmra.mxu0 %v3572
        %v3637 = vpop.f32.mrf.mxu0
        %v3638 = vadd.f32 0.0, %v3637
        %v3639 = vpop.f32.mrf.mxu0
        %v3640 = vadd.f32 0.0, %v3639
        %3641 = vmatmul.bf16.gmra.mxu0 %v3574
        %v3642 = vpop.f32.mrf.mxu0
        %v3643 = vadd.f32 0.0, %v3642
        %v3644 = vpop.f32.mrf.mxu0
        %v3645 = vadd.f32 0.0, %v3644
        %3646 = vmatmul.bf16.gmra.mxu0 %v3576
        %v3647 = vpop.f32.mrf.mxu0
        %v3648 = vadd.f32 0.0, %v3647
        %v3649 = vpop.f32.mrf.mxu0
        %v3650 = vadd.f32 0.0, %v3649
        %3651 = vdwg.mxu0
        %v3652 = vadd.f32 %v3543, %v3638
        %v3653 = vadd.f32 %v3544, %v3640
        %v3654 = vadd.f32 %v3545, %v3643
        %v3655 = vadd.f32 %v3546, %v3645
        %v3656 = vadd.f32 %v3547, %v3648
        %v3657 = vadd.f32 %v3548, %v3650
        %v3659 = vperm.slane %v2631, 0
        %v3661 = vadd.f32 %v3652, %v3659
        %v3662 = vadd.f32 %v3653, %v3659
        %v3663 = vadd.f32 %v3654, %v3659
        %v3664 = vadd.f32 %v3655, %v3659
        %v3665 = vadd.f32 %v3656, %v3659
        %v3666 = vadd.f32 %v3657, %v3659
        %v3667 = vmax.f32 %v3661, 0.0
        %v3668 = vmax.f32 %v3662, 0.0
        %v3669 = vmax.f32 %v3663, 0.0
        %v3670 = vmax.f32 %v3664, 0.0
        %v3671 = vmax.f32 %v3665, 0.0
        %v3672 = vmax.f32 %v3666, 0.0
        %s3673 = smul.u32 %s2633, 48
        %s3674 = scalar_lea.vmem [#allocation4], %s3673
        %vm3675 = vcmask 523264
        %3676 = vst.msk [vmem:[%s3674] sm:$0xff] %vm3675, %v3667
        %3677 = vst.msk [vmem:[%s3674 + $0x8] sm:$0xff] %vm3675, %v3668
        %3678 = vst.msk [vmem:[%s3674 + $0x10] sm:$0xff] %vm3675, %v3669
        %3679 = vst.msk [vmem:[%s3674 + $0x18] sm:$0xff] %vm3675, %v3670
        %3680 = vst.msk [vmem:[%s3674 + $0x20] sm:$0xff] %vm3675, %v3671
        %3681 = vst.msk [vmem:[%s3674 + $0x28] sm:$0xff] %vm3675, %v3672
      $region75: #{cnn_spatial_forward.1} parent=55 // loop_footer
        %s2637 = sadd.s32 1, %s2633
      $region76: #{cnn_spatial_forward.1} parent=55 // loop_footer_branch
        %2632 = sbr.rel target = $region72
      $region77: #{cnn_spatial_forward.1} parent=55 // loop_exit
        _
      %v3682 = vld [vmem:[%s8] sm:$0x1]
      loop: start=0, step=1, limit=23
      $region78: #{cnn_spatial_forward.1} parent=55 // loop_pre_header
        _
      $region79: #{cnn_spatial_forward.1} parent=55 // loop_header
        %s3684 = sphi 0, %s3688
        %p3685 = scmp.ge.s32.totalorder %s3684, 23
      $region80: #{cnn_spatial_forward.1} parent=55 // loop_header_branch
        %3687 = sbr.rel (%p3685) target = $region84
      $region81: #{cnn_spatial_forward.1} parent=55 // loop_body
        %s3689 = smul.u32 %s3684, 48
        %s3690 = scalar_lea.vmem [#allocation4], %s3689
        %v3691 = vld [vmem:[%s3690] sm:$0xff]
        %v3692 = vld [vmem:[%s3690 + $0x8] sm:$0xff]
        %v3693 = vld [vmem:[%s3690 + $0x10] sm:$0xff]
        %v3694 = vld [vmem:[%s3690 + $0x18] sm:$0xff]
        %v3695 = vld [vmem:[%s3690 + $0x20] sm:$0xff]
        %v3696 = vld [vmem:[%s3690 + $0x28] sm:$0xff]
        %v3697 = vpack.c.bf16 %v3692, %v3691
        %v3698 = vpack.c.bf16 %v3694, %v3693
        %v3699 = vpack.c.bf16 %v3696, %v3695
        %v3700 = vld [vmem:[%s7] sm:$0xf]
        %v3701 = vld [vmem:[%s7 + $0x4] sm:$0xf]
        %v3702 = vld [vmem:[%s7 + $0x8] sm:$0xf]
        %v3703 = vld [vmem:[%s7 + $0xc] sm:$0xf]
        %v3704 = vld [vmem:[%s7 + $0x10] sm:$0xf]
        %v3705 = vld [vmem:[%s7 + $0x14] sm:$0xf]
        %v3706 = vld [vmem:[%s7 + $0x18] sm:$0xf]
        %v3707 = vld [vmem:[%s7 + $0x1c] sm:$0xf]
        %s3708 = scalar_lea.vmem %s7, 32
        %v3709 = vld [vmem:[%s3708] sm:$0xf]
        %v3710 = vld [vmem:[%s3708 + $0x4] sm:$0xf]
        %v3711 = vld [vmem:[%s3708 + $0x8] sm:$0xf]
        %v3712 = vld [vmem:[%s3708 + $0xc] sm:$0xf]
        %v3713 = vld [vmem:[%s3708 + $0x10] sm:$0xf]
        %v3714 = vld [vmem:[%s3708 + $0x14] sm:$0xf]
        %v3715 = vld [vmem:[%s3708 + $0x18] sm:$0xf]
        %v3716 = vld [vmem:[%s3708 + $0x1c] sm:$0xf]
        %vm3717 = vsmask.f32 7424
        %v3719 = vshrl.u32 %v3697, 16
        %v3721 = vshll.u32 %v3697, 16
        %v3723 = vrot.slane %v3721, 1
        %v3724 = vor.u32 %v3719, %v3723
        %v3726 = vshll.u32 %v3698, 16
        %v3728 = vrot.slane %v3726, 1
        %v3729 = vsel %vm3717, %v3724, %v3728
        %v3730 = vshrl.u32 %v3698, 16
        %v3732 = vor.u32 %v3730, %v3728
        %v3734 = vshll.u32 %v3699, 16
        %v3736 = vrot.slane %v3734, 1
        %v3737 = vsel %vm3717, %v3732, %v3736
        %v3738 = vshrl.u32 %v3699, 16
        %v3740 = vor.u32 %v3738, %v3736
        %v3749 = vunpack.c.l.b16 %v3709
        %v3750 = vunpack.c.l.b16 %v3710
        %v3751 = vunpack.c.l.b16 %v3711
        %v3752 = vunpack.c.l.b16 %v3712
        %v3753 = vunpack.c.l.b16 %v3713
        %v3754 = vunpack.c.l.b16 %v3714
        %v3755 = vunpack.c.l.b16 %v3715
        %v3756 = vunpack.c.l.b16 %v3716
        %v3757 = vpack.c.b16 %v3750, %v3749
        %v3758 = vpack.c.b16 %v3752, %v3751
        %v3759 = vpack.c.b16 %v3754, %v3753
        %v3760 = vpack.c.b16 %v3756, %v3755
        %vm3765 = vcmask 523264
        %v3767 = vsel %vm3765, %v3729, 0
        %v3770 = vsel %vm3765, %v3737, 0
        %v3773 = vsel %vm3765, %v3740, 0
        %3775 = vmatpush.bf16.msra.mxu0 0
        %3776 = vmatpush.bf16.msra.mxu0 0
        %3777 = vmatpush.bf16.msra.mxu0 0
        %3778 = vmatpush.bf16.msra.mxu0 0
        %3779 = vmatpush.bf16.msra.mxu0 %v3760
        %3780 = vmatpush.bf16.msra.mxu0 %v3759
        %3781 = vmatpush.bf16.msra.mxu0 %v3758
        %3782 = vmatpush.bf16.msra.mxu0 %v3757
        %3783 = vmatmul.bf16.gmra.mxu0 %v3767
        %v3784 = vpop.f32.mrf.mxu0
        %v3785 = vadd.f32 0.0, %v3784
        %v3786 = vpop.f32.mrf.mxu0
        %v3787 = vadd.f32 0.0, %v3786
        %3788 = vmatmul.bf16.gmra.mxu0 %v3770
        %v3789 = vpop.f32.mrf.mxu0
        %v3790 = vadd.f32 0.0, %v3789
        %v3791 = vpop.f32.mrf.mxu0
        %v3792 = vadd.f32 0.0, %v3791
        %3793 = vmatmul.bf16.gmra.mxu0 %v3773
        %v3794 = vpop.f32.mrf.mxu0
        %v3795 = vadd.f32 0.0, %v3794
        %v3796 = vpop.f32.mrf.mxu0
        %v3797 = vadd.f32 0.0, %v3796
        %3798 = vdwg.mxu0
        %v3807 = vunpack.c.l.b16 %v3700
        %v3808 = vunpack.c.l.b16 %v3701
        %v3809 = vunpack.c.l.b16 %v3702
        %v3810 = vunpack.c.l.b16 %v3703
        %v3811 = vunpack.c.l.b16 %v3704
        %v3812 = vunpack.c.l.b16 %v3705
        %v3813 = vunpack.c.l.b16 %v3706
        %v3814 = vunpack.c.l.b16 %v3707
        %v3815 = vpack.c.b16 %v3808, %v3807
        %v3816 = vpack.c.b16 %v3810, %v3809
        %v3817 = vpack.c.b16 %v3812, %v3811
        %v3818 = vpack.c.b16 %v3814, %v3813
        %v3823 = vsel %vm3765, %v3697, 0
        %v3825 = vsel %vm3765, %v3698, 0
        %v3827 = vsel %vm3765, %v3699, 0
        %3829 = vmatpush.bf16.msra.mxu0 0
        %3830 = vmatpush.bf16.msra.mxu0 0
        %3831 = vmatpush.bf16.msra.mxu0 0
        %3832 = vmatpush.bf16.msra.mxu0 0
        %3833 = vmatpush.bf16.msra.mxu0 %v3818
        %3834 = vmatpush.bf16.msra.mxu0 %v3817
        %3835 = vmatpush.bf16.msra.mxu0 %v3816
        %3836 = vmatpush.bf16.msra.mxu0 %v3815
        %3837 = vmatmul.bf16.gmra.mxu0 %v3823
        %v3838 = vpop.f32.mrf.mxu0
        %v3839 = vadd.f32 %v3785, %v3838
        %v3840 = vpop.f32.mrf.mxu0
        %v3841 = vadd.f32 %v3787, %v3840
        %3842 = vmatmul.bf16.gmra.mxu0 %v3825
        %v3843 = vpop.f32.mrf.mxu0
        %v3844 = vadd.f32 %v3790, %v3843
        %v3845 = vpop.f32.mrf.mxu0
        %v3846 = vadd.f32 %v3792, %v3845
        %3847 = vmatmul.bf16.gmra.mxu0 %v3827
        %v3848 = vpop.f32.mrf.mxu0
        %v3849 = vadd.f32 %v3795, %v3848
        %v3850 = vpop.f32.mrf.mxu0
        %v3851 = vadd.f32 %v3797, %v3850
        %3852 = vdwg.mxu0
        %s3853 = scalar_lea.vmem %s7, 64
        %v3854 = vld [vmem:[%s3853] sm:$0xf]
        %v3855 = vld [vmem:[%s3853 + $0x4] sm:$0xf]
        %v3856 = vld [vmem:[%s3853 + $0x8] sm:$0xf]
        %v3857 = vld [vmem:[%s3853 + $0xc] sm:$0xf]
        %v3858 = vld [vmem:[%s3853 + $0x10] sm:$0xf]
        %v3859 = vld [vmem:[%s3853 + $0x14] sm:$0xf]
        %v3860 = vld [vmem:[%s3853 + $0x18] sm:$0xf]
        %v3861 = vld [vmem:[%s3853 + $0x1c] sm:$0xf]
        %vm3865 = vcmask 1046528
        %v3866 = vrot.slane %v3697, 1
        %v3867 = vrot.slane %v3698, 1
        %v3868 = vsel %vm3865, %v3866, %v3867
        %v3869 = vrot.slane %v3699, 1
        %v3870 = vsel %vm3865, %v3867, %v3869
        %v3879 = vunpack.c.l.b16 %v3854
        %v3880 = vunpack.c.l.b16 %v3855
        %v3881 = vunpack.c.l.b16 %v3856
        %v3882 = vunpack.c.l.b16 %v3857
        %v3883 = vunpack.c.l.b16 %v3858
        %v3884 = vunpack.c.l.b16 %v3859
        %v3885 = vunpack.c.l.b16 %v3860
        %v3886 = vunpack.c.l.b16 %v3861
        %v3887 = vpack.c.b16 %v3880, %v3879
        %v3888 = vpack.c.b16 %v3882, %v3881
        %v3889 = vpack.c.b16 %v3884, %v3883
        %v3890 = vpack.c.b16 %v3886, %v3885
        %v3896 = vsel %vm3765, %v3868, 0
        %v3899 = vsel %vm3765, %v3870, 0
        %v3902 = vsel %vm3765, %v3869, 0
        %3904 = vmatpush.bf16.msra.mxu0 0
        %3905 = vmatpush.bf16.msra.mxu0 0
        %3906 = vmatpush.bf16.msra.mxu0 0
        %3907 = vmatpush.bf16.msra.mxu0 0
        %3908 = vmatpush.bf16.msra.mxu0 %v3890
        %3909 = vmatpush.bf16.msra.mxu0 %v3889
        %3910 = vmatpush.bf16.msra.mxu0 %v3888
        %3911 = vmatpush.bf16.msra.mxu0 %v3887
        %3912 = vmatmul.bf16.gmra.mxu0 %v3896
        %v3913 = vpop.f32.mrf.mxu0
        %v3914 = vadd.f32 0.0, %v3913
        %v3915 = vpop.f32.mrf.mxu0
        %v3916 = vadd.f32 0.0, %v3915
        %3917 = vmatmul.bf16.gmra.mxu0 %v3899
        %v3918 = vpop.f32.mrf.mxu0
        %v3919 = vadd.f32 0.0, %v3918
        %v3920 = vpop.f32.mrf.mxu0
        %v3921 = vadd.f32 0.0, %v3920
        %3922 = vmatmul.bf16.gmra.mxu0 %v3902
        %v3923 = vpop.f32.mrf.mxu0
        %v3924 = vadd.f32 0.0, %v3923
        %v3925 = vpop.f32.mrf.mxu0
        %v3926 = vadd.f32 0.0, %v3925
        %3927 = vdwg.mxu0
        %v3928 = vadd.f32 %v3839, %v3914
        %v3929 = vadd.f32 %v3841, %v3916
        %v3930 = vadd.f32 %v3844, %v3919
        %v3931 = vadd.f32 %v3846, %v3921
        %v3932 = vadd.f32 %v3849, %v3924
        %v3933 = vadd.f32 %v3851, %v3926
        %s3934 = sadd.s32 %s3684, 1
        %s3935 = smul.u32 %s3934, 48
        %s3936 = scalar_lea.vmem [#allocation4], %s3935
        %v3937 = vld [vmem:[%s3936] sm:$0xff]
        %v3938 = vld [vmem:[%s3936 + $0x8] sm:$0xff]
        %v3939 = vld [vmem:[%s3936 + $0x10] sm:$0xff]
        %v3940 = vld [vmem:[%s3936 + $0x18] sm:$0xff]
        %v3941 = vld [vmem:[%s3936 + $0x20] sm:$0xff]
        %v3942 = vld [vmem:[%s3936 + $0x28] sm:$0xff]
        %v3943 = vpack.c.bf16 %v3938, %v3937
        %v3944 = vpack.c.bf16 %v3940, %v3939
        %v3945 = vpack.c.bf16 %v3942, %v3941
        %s3946 = scalar_lea.vmem %s7, 96
        %v3947 = vld [vmem:[%s3946] sm:$0xf]
        %v3948 = vld [vmem:[%s3946 + $0x4] sm:$0xf]
        %v3949 = vld [vmem:[%s3946 + $0x8] sm:$0xf]
        %v3950 = vld [vmem:[%s3946 + $0xc] sm:$0xf]
        %v3951 = vld [vmem:[%s3946 + $0x10] sm:$0xf]
        %v3952 = vld [vmem:[%s3946 + $0x14] sm:$0xf]
        %v3953 = vld [vmem:[%s3946 + $0x18] sm:$0xf]
        %v3954 = vld [vmem:[%s3946 + $0x1c] sm:$0xf]
        %v3963 = vunpack.c.l.b16 %v3947
        %v3964 = vunpack.c.l.b16 %v3948
        %v3965 = vunpack.c.l.b16 %v3949
        %v3966 = vunpack.c.l.b16 %v3950
        %v3967 = vunpack.c.l.b16 %v3951
        %v3968 = vunpack.c.l.b16 %v3952
        %v3969 = vunpack.c.l.b16 %v3953
        %v3970 = vunpack.c.l.b16 %v3954
        %v3971 = vpack.c.b16 %v3964, %v3963
        %v3972 = vpack.c.b16 %v3966, %v3965
        %v3973 = vpack.c.b16 %v3968, %v3967
        %v3974 = vpack.c.b16 %v3970, %v3969
        %v3980 = vsel %vm3765, %v3943, 0
        %v3983 = vsel %vm3765, %v3944, 0
        %v3986 = vsel %vm3765, %v3945, 0
        %3988 = vmatpush.bf16.msra.mxu0 0
        %3989 = vmatpush.bf16.msra.mxu0 0
        %3990 = vmatpush.bf16.msra.mxu0 0
        %3991 = vmatpush.bf16.msra.mxu0 0
        %3992 = vmatpush.bf16.msra.mxu0 %v3974
        %3993 = vmatpush.bf16.msra.mxu0 %v3973
        %3994 = vmatpush.bf16.msra.mxu0 %v3972
        %3995 = vmatpush.bf16.msra.mxu0 %v3971
        %3996 = vmatmul.bf16.gmra.mxu0 %v3980
        %v3997 = vpop.f32.mrf.mxu0
        %v3998 = vadd.f32 0.0, %v3997
        %v3999 = vpop.f32.mrf.mxu0
        %v4000 = vadd.f32 0.0, %v3999
        %4001 = vmatmul.bf16.gmra.mxu0 %v3983
        %v4002 = vpop.f32.mrf.mxu0
        %v4003 = vadd.f32 0.0, %v4002
        %v4004 = vpop.f32.mrf.mxu0
        %v4005 = vadd.f32 0.0, %v4004
        %4006 = vmatmul.bf16.gmra.mxu0 %v3986
        %v4007 = vpop.f32.mrf.mxu0
        %v4008 = vadd.f32 0.0, %v4007
        %v4009 = vpop.f32.mrf.mxu0
        %v4010 = vadd.f32 0.0, %v4009
        %4011 = vdwg.mxu0
        %v4012 = vadd.f32 %v3928, %v3998
        %v4013 = vadd.f32 %v3929, %v4000
        %v4014 = vadd.f32 %v3930, %v4003
        %v4015 = vadd.f32 %v3931, %v4005
        %v4016 = vadd.f32 %v3932, %v4008
        %v4017 = vadd.f32 %v3933, %v4010
        %s4018 = scalar_lea.vmem %s7, 128
        %v4019 = vld [vmem:[%s4018] sm:$0xf]
        %v4020 = vld [vmem:[%s4018 + $0x4] sm:$0xf]
        %v4021 = vld [vmem:[%s4018 + $0x8] sm:$0xf]
        %v4022 = vld [vmem:[%s4018 + $0xc] sm:$0xf]
        %v4023 = vld [vmem:[%s4018 + $0x10] sm:$0xf]
        %v4024 = vld [vmem:[%s4018 + $0x14] sm:$0xf]
        %v4025 = vld [vmem:[%s4018 + $0x18] sm:$0xf]
        %v4026 = vld [vmem:[%s4018 + $0x1c] sm:$0xf]
        %v4027 = vshrl.u32 %v3943, 16
        %v4029 = vshll.u32 %v3943, 16
        %v4031 = vrot.slane %v4029, 1
        %v4032 = vor.u32 %v4027, %v4031
        %v4033 = vshll.u32 %v3944, 16
        %v4035 = vrot.slane %v4033, 1
        %v4036 = vsel %vm3717, %v4032, %v4035
        %v4037 = vshrl.u32 %v3944, 16
        %v4039 = vor.u32 %v4037, %v4035
        %v4040 = vshll.u32 %v3945, 16
        %v4042 = vrot.slane %v4040, 1
        %v4043 = vsel %vm3717, %v4039, %v4042
        %v4044 = vshrl.u32 %v3945, 16
        %v4046 = vor.u32 %v4044, %v4042
        %v4055 = vunpack.c.l.b16 %v4019
        %v4056 = vunpack.c.l.b16 %v4020
        %v4057 = vunpack.c.l.b16 %v4021
        %v4058 = vunpack.c.l.b16 %v4022
        %v4059 = vunpack.c.l.b16 %v4023
        %v4060 = vunpack.c.l.b16 %v4024
        %v4061 = vunpack.c.l.b16 %v4025
        %v4062 = vunpack.c.l.b16 %v4026
        %v4063 = vpack.c.b16 %v4056, %v4055
        %v4064 = vpack.c.b16 %v4058, %v4057
        %v4065 = vpack.c.b16 %v4060, %v4059
        %v4066 = vpack.c.b16 %v4062, %v4061
        %v4072 = vsel %vm3765, %v4036, 0
        %v4075 = vsel %vm3765, %v4043, 0
        %v4078 = vsel %vm3765, %v4046, 0
        %4080 = vmatpush.bf16.msra.mxu0 0
        %4081 = vmatpush.bf16.msra.mxu0 0
        %4082 = vmatpush.bf16.msra.mxu0 0
        %4083 = vmatpush.bf16.msra.mxu0 0
        %4084 = vmatpush.bf16.msra.mxu0 %v4066
        %4085 = vmatpush.bf16.msra.mxu0 %v4065
        %4086 = vmatpush.bf16.msra.mxu0 %v4064
        %4087 = vmatpush.bf16.msra.mxu0 %v4063
        %4088 = vmatmul.bf16.gmra.mxu0 %v4072
        %v4089 = vpop.f32.mrf.mxu0
        %v4090 = vadd.f32 0.0, %v4089
        %v4091 = vpop.f32.mrf.mxu0
        %v4092 = vadd.f32 0.0, %v4091
        %4093 = vmatmul.bf16.gmra.mxu0 %v4075
        %v4094 = vpop.f32.mrf.mxu0
        %v4095 = vadd.f32 0.0, %v4094
        %v4096 = vpop.f32.mrf.mxu0
        %v4097 = vadd.f32 0.0, %v4096
        %4098 = vmatmul.bf16.gmra.mxu0 %v4078
        %v4099 = vpop.f32.mrf.mxu0
        %v4100 = vadd.f32 0.0, %v4099
        %v4101 = vpop.f32.mrf.mxu0
        %v4102 = vadd.f32 0.0, %v4101
        %4103 = vdwg.mxu0
        %v4104 = vadd.f32 %v4012, %v4090
        %v4105 = vadd.f32 %v4013, %v4092
        %v4106 = vadd.f32 %v4014, %v4095
        %v4107 = vadd.f32 %v4015, %v4097
        %v4108 = vadd.f32 %v4016, %v4100
        %v4109 = vadd.f32 %v4017, %v4102
        %s4110 = scalar_lea.vmem %s7, 160
        %v4111 = vld [vmem:[%s4110] sm:$0xf]
        %v4112 = vld [vmem:[%s4110 + $0x4] sm:$0xf]
        %v4113 = vld [vmem:[%s4110 + $0x8] sm:$0xf]
        %v4114 = vld [vmem:[%s4110 + $0xc] sm:$0xf]
        %v4115 = vld [vmem:[%s4110 + $0x10] sm:$0xf]
        %v4116 = vld [vmem:[%s4110 + $0x14] sm:$0xf]
        %v4117 = vld [vmem:[%s4110 + $0x18] sm:$0xf]
        %v4118 = vld [vmem:[%s4110 + $0x1c] sm:$0xf]
        %v4122 = vrot.slane %v3943, 1
        %v4123 = vrot.slane %v3944, 1
        %v4124 = vsel %vm3865, %v4122, %v4123
        %v4125 = vrot.slane %v3945, 1
        %v4126 = vsel %vm3865, %v4123, %v4125
        %v4135 = vunpack.c.l.b16 %v4111
        %v4136 = vunpack.c.l.b16 %v4112
        %v4137 = vunpack.c.l.b16 %v4113
        %v4138 = vunpack.c.l.b16 %v4114
        %v4139 = vunpack.c.l.b16 %v4115
        %v4140 = vunpack.c.l.b16 %v4116
        %v4141 = vunpack.c.l.b16 %v4117
        %v4142 = vunpack.c.l.b16 %v4118
        %v4143 = vpack.c.b16 %v4136, %v4135
        %v4144 = vpack.c.b16 %v4138, %v4137
        %v4145 = vpack.c.b16 %v4140, %v4139
        %v4146 = vpack.c.b16 %v4142, %v4141
        %v4152 = vsel %vm3765, %v4124, 0
        %v4155 = vsel %vm3765, %v4126, 0
        %v4158 = vsel %vm3765, %v4125, 0
        %4160 = vmatpush.bf16.msra.mxu0 0
        %4161 = vmatpush.bf16.msra.mxu0 0
        %4162 = vmatpush.bf16.msra.mxu0 0
        %4163 = vmatpush.bf16.msra.mxu0 0
        %4164 = vmatpush.bf16.msra.mxu0 %v4146
        %4165 = vmatpush.bf16.msra.mxu0 %v4145
        %4166 = vmatpush.bf16.msra.mxu0 %v4144
        %4167 = vmatpush.bf16.msra.mxu0 %v4143
        %4168 = vmatmul.bf16.gmra.mxu0 %v4152
        %v4169 = vpop.f32.mrf.mxu0
        %v4170 = vadd.f32 0.0, %v4169
        %v4171 = vpop.f32.mrf.mxu0
        %v4172 = vadd.f32 0.0, %v4171
        %4173 = vmatmul.bf16.gmra.mxu0 %v4155
        %v4174 = vpop.f32.mrf.mxu0
        %v4175 = vadd.f32 0.0, %v4174
        %v4176 = vpop.f32.mrf.mxu0
        %v4177 = vadd.f32 0.0, %v4176
        %4178 = vmatmul.bf16.gmra.mxu0 %v4158
        %v4179 = vpop.f32.mrf.mxu0
        %v4180 = vadd.f32 0.0, %v4179
        %v4181 = vpop.f32.mrf.mxu0
        %v4182 = vadd.f32 0.0, %v4181
        %4183 = vdwg.mxu0
        %v4184 = vadd.f32 %v4104, %v4170
        %v4185 = vadd.f32 %v4105, %v4172
        %v4186 = vadd.f32 %v4106, %v4175
        %v4187 = vadd.f32 %v4107, %v4177
        %v4188 = vadd.f32 %v4108, %v4180
        %v4189 = vadd.f32 %v4109, %v4182
        %s4190 = sadd.s32 %s3684, 2
        %s4191 = smul.u32 %s4190, 48
        %s4192 = scalar_lea.vmem [#allocation4], %s4191
        %v4193 = vld [vmem:[%s4192] sm:$0xff]
        %v4194 = vld [vmem:[%s4192 + $0x8] sm:$0xff]
        %v4195 = vld [vmem:[%s4192 + $0x10] sm:$0xff]
        %v4196 = vld [vmem:[%s4192 + $0x18] sm:$0xff]
        %v4197 = vld [vmem:[%s4192 + $0x20] sm:$0xff]
        %v4198 = vld [vmem:[%s4192 + $0x28] sm:$0xff]
        %v4199 = vpack.c.bf16 %v4194, %v4193
        %v4200 = vpack.c.bf16 %v4196, %v4195
        %v4201 = vpack.c.bf16 %v4198, %v4197
        %s4202 = scalar_lea.vmem %s7, 192
        %v4203 = vld [vmem:[%s4202] sm:$0xf]
        %v4204 = vld [vmem:[%s4202 + $0x4] sm:$0xf]
        %v4205 = vld [vmem:[%s4202 + $0x8] sm:$0xf]
        %v4206 = vld [vmem:[%s4202 + $0xc] sm:$0xf]
        %v4207 = vld [vmem:[%s4202 + $0x10] sm:$0xf]
        %v4208 = vld [vmem:[%s4202 + $0x14] sm:$0xf]
        %v4209 = vld [vmem:[%s4202 + $0x18] sm:$0xf]
        %v4210 = vld [vmem:[%s4202 + $0x1c] sm:$0xf]
        %v4219 = vunpack.c.l.b16 %v4203
        %v4220 = vunpack.c.l.b16 %v4204
        %v4221 = vunpack.c.l.b16 %v4205
        %v4222 = vunpack.c.l.b16 %v4206
        %v4223 = vunpack.c.l.b16 %v4207
        %v4224 = vunpack.c.l.b16 %v4208
        %v4225 = vunpack.c.l.b16 %v4209
        %v4226 = vunpack.c.l.b16 %v4210
        %v4227 = vpack.c.b16 %v4220, %v4219
        %v4228 = vpack.c.b16 %v4222, %v4221
        %v4229 = vpack.c.b16 %v4224, %v4223
        %v4230 = vpack.c.b16 %v4226, %v4225
        %v4236 = vsel %vm3765, %v4199, 0
        %v4239 = vsel %vm3765, %v4200, 0
        %v4242 = vsel %vm3765, %v4201, 0
        %4244 = vmatpush.bf16.msra.mxu0 0
        %4245 = vmatpush.bf16.msra.mxu0 0
        %4246 = vmatpush.bf16.msra.mxu0 0
        %4247 = vmatpush.bf16.msra.mxu0 0
        %4248 = vmatpush.bf16.msra.mxu0 %v4230
        %4249 = vmatpush.bf16.msra.mxu0 %v4229
        %4250 = vmatpush.bf16.msra.mxu0 %v4228
        %4251 = vmatpush.bf16.msra.mxu0 %v4227
        %4252 = vmatmul.bf16.gmra.mxu0 %v4236
        %v4253 = vpop.f32.mrf.mxu0
        %v4254 = vadd.f32 0.0, %v4253
        %v4255 = vpop.f32.mrf.mxu0
        %v4256 = vadd.f32 0.0, %v4255
        %4257 = vmatmul.bf16.gmra.mxu0 %v4239
        %v4258 = vpop.f32.mrf.mxu0
        %v4259 = vadd.f32 0.0, %v4258
        %v4260 = vpop.f32.mrf.mxu0
        %v4261 = vadd.f32 0.0, %v4260
        %4262 = vmatmul.bf16.gmra.mxu0 %v4242
        %v4263 = vpop.f32.mrf.mxu0
        %v4264 = vadd.f32 0.0, %v4263
        %v4265 = vpop.f32.mrf.mxu0
        %v4266 = vadd.f32 0.0, %v4265
        %4267 = vdwg.mxu0
        %v4268 = vadd.f32 %v4184, %v4254
        %v4269 = vadd.f32 %v4185, %v4256
        %v4270 = vadd.f32 %v4186, %v4259
        %v4271 = vadd.f32 %v4187, %v4261
        %v4272 = vadd.f32 %v4188, %v4264
        %v4273 = vadd.f32 %v4189, %v4266
        %s4274 = scalar_lea.vmem %s7, 224
        %v4275 = vld [vmem:[%s4274] sm:$0xf]
        %v4276 = vld [vmem:[%s4274 + $0x4] sm:$0xf]
        %v4277 = vld [vmem:[%s4274 + $0x8] sm:$0xf]
        %v4278 = vld [vmem:[%s4274 + $0xc] sm:$0xf]
        %v4279 = vld [vmem:[%s4274 + $0x10] sm:$0xf]
        %v4280 = vld [vmem:[%s4274 + $0x14] sm:$0xf]
        %v4281 = vld [vmem:[%s4274 + $0x18] sm:$0xf]
        %v4282 = vld [vmem:[%s4274 + $0x1c] sm:$0xf]
        %v4283 = vshrl.u32 %v4199, 16
        %v4285 = vshll.u32 %v4199, 16
        %v4287 = vrot.slane %v4285, 1
        %v4288 = vor.u32 %v4283, %v4287
        %v4289 = vshll.u32 %v4200, 16
        %v4291 = vrot.slane %v4289, 1
        %v4292 = vsel %vm3717, %v4288, %v4291
        %v4293 = vshrl.u32 %v4200, 16
        %v4295 = vor.u32 %v4293, %v4291
        %v4296 = vshll.u32 %v4201, 16
        %v4298 = vrot.slane %v4296, 1
        %v4299 = vsel %vm3717, %v4295, %v4298
        %v4300 = vshrl.u32 %v4201, 16
        %v4302 = vor.u32 %v4300, %v4298
        %v4311 = vunpack.c.l.b16 %v4275
        %v4312 = vunpack.c.l.b16 %v4276
        %v4313 = vunpack.c.l.b16 %v4277
        %v4314 = vunpack.c.l.b16 %v4278
        %v4315 = vunpack.c.l.b16 %v4279
        %v4316 = vunpack.c.l.b16 %v4280
        %v4317 = vunpack.c.l.b16 %v4281
        %v4318 = vunpack.c.l.b16 %v4282
        %v4319 = vpack.c.b16 %v4312, %v4311
        %v4320 = vpack.c.b16 %v4314, %v4313
        %v4321 = vpack.c.b16 %v4316, %v4315
        %v4322 = vpack.c.b16 %v4318, %v4317
        %v4328 = vsel %vm3765, %v4292, 0
        %v4331 = vsel %vm3765, %v4299, 0
        %v4334 = vsel %vm3765, %v4302, 0
        %4336 = vmatpush.bf16.msra.mxu0 0
        %4337 = vmatpush.bf16.msra.mxu0 0
        %4338 = vmatpush.bf16.msra.mxu0 0
        %4339 = vmatpush.bf16.msra.mxu0 0
        %4340 = vmatpush.bf16.msra.mxu0 %v4322
        %4341 = vmatpush.bf16.msra.mxu0 %v4321
        %4342 = vmatpush.bf16.msra.mxu0 %v4320
        %4343 = vmatpush.bf16.msra.mxu0 %v4319
        %4344 = vmatmul.bf16.gmra.mxu0 %v4328
        %v4345 = vpop.f32.mrf.mxu0
        %v4346 = vadd.f32 0.0, %v4345
        %v4347 = vpop.f32.mrf.mxu0
        %v4348 = vadd.f32 0.0, %v4347
        %4349 = vmatmul.bf16.gmra.mxu0 %v4331
        %v4350 = vpop.f32.mrf.mxu0
        %v4351 = vadd.f32 0.0, %v4350
        %v4352 = vpop.f32.mrf.mxu0
        %v4353 = vadd.f32 0.0, %v4352
        %4354 = vmatmul.bf16.gmra.mxu0 %v4334
        %v4355 = vpop.f32.mrf.mxu0
        %v4356 = vadd.f32 0.0, %v4355
        %v4357 = vpop.f32.mrf.mxu0
        %v4358 = vadd.f32 0.0, %v4357
        %4359 = vdwg.mxu0
        %v4360 = vadd.f32 %v4268, %v4346
        %v4361 = vadd.f32 %v4269, %v4348
        %v4362 = vadd.f32 %v4270, %v4351
        %v4363 = vadd.f32 %v4271, %v4353
        %v4364 = vadd.f32 %v4272, %v4356
        %v4365 = vadd.f32 %v4273, %v4358
        %s4366 = scalar_lea.vmem %s7, 256
        %v4367 = vld [vmem:[%s4366] sm:$0xf]
        %v4368 = vld [vmem:[%s4366 + $0x4] sm:$0xf]
        %v4369 = vld [vmem:[%s4366 + $0x8] sm:$0xf]
        %v4370 = vld [vmem:[%s4366 + $0xc] sm:$0xf]
        %v4371 = vld [vmem:[%s4366 + $0x10] sm:$0xf]
        %v4372 = vld [vmem:[%s4366 + $0x14] sm:$0xf]
        %v4373 = vld [vmem:[%s4366 + $0x18] sm:$0xf]
        %v4374 = vld [vmem:[%s4366 + $0x1c] sm:$0xf]
        %v4378 = vrot.slane %v4199, 1
        %v4379 = vrot.slane %v4200, 1
        %v4380 = vsel %vm3865, %v4378, %v4379
        %v4381 = vrot.slane %v4201, 1
        %v4382 = vsel %vm3865, %v4379, %v4381
        %v4391 = vunpack.c.l.b16 %v4367
        %v4392 = vunpack.c.l.b16 %v4368
        %v4393 = vunpack.c.l.b16 %v4369
        %v4394 = vunpack.c.l.b16 %v4370
        %v4395 = vunpack.c.l.b16 %v4371
        %v4396 = vunpack.c.l.b16 %v4372
        %v4397 = vunpack.c.l.b16 %v4373
        %v4398 = vunpack.c.l.b16 %v4374
        %v4399 = vpack.c.b16 %v4392, %v4391
        %v4400 = vpack.c.b16 %v4394, %v4393
        %v4401 = vpack.c.b16 %v4396, %v4395
        %v4402 = vpack.c.b16 %v4398, %v4397
        %v4408 = vsel %vm3765, %v4380, 0
        %v4411 = vsel %vm3765, %v4382, 0
        %v4414 = vsel %vm3765, %v4381, 0
        %4416 = vmatpush.bf16.msra.mxu0 0
        %4417 = vmatpush.bf16.msra.mxu0 0
        %4418 = vmatpush.bf16.msra.mxu0 0
        %4419 = vmatpush.bf16.msra.mxu0 0
        %4420 = vmatpush.bf16.msra.mxu0 %v4402
        %4421 = vmatpush.bf16.msra.mxu0 %v4401
        %4422 = vmatpush.bf16.msra.mxu0 %v4400
        %4423 = vmatpush.bf16.msra.mxu0 %v4399
        %4424 = vmatmul.bf16.gmra.mxu0 %v4408
        %v4425 = vpop.f32.mrf.mxu0
        %v4426 = vadd.f32 0.0, %v4425
        %v4427 = vpop.f32.mrf.mxu0
        %v4428 = vadd.f32 0.0, %v4427
        %4429 = vmatmul.bf16.gmra.mxu0 %v4411
        %v4430 = vpop.f32.mrf.mxu0
        %v4431 = vadd.f32 0.0, %v4430
        %v4432 = vpop.f32.mrf.mxu0
        %v4433 = vadd.f32 0.0, %v4432
        %4434 = vmatmul.bf16.gmra.mxu0 %v4414
        %v4435 = vpop.f32.mrf.mxu0
        %v4436 = vadd.f32 0.0, %v4435
        %v4437 = vpop.f32.mrf.mxu0
        %v4438 = vadd.f32 0.0, %v4437
        %4439 = vdwg.mxu0
        %v4440 = vadd.f32 %v4360, %v4426
        %v4441 = vadd.f32 %v4361, %v4428
        %v4442 = vadd.f32 %v4362, %v4431
        %v4443 = vadd.f32 %v4363, %v4433
        %v4444 = vadd.f32 %v4364, %v4436
        %v4445 = vadd.f32 %v4365, %v4438
        %v4447 = vperm.slane %v3682, 0
        %v4449 = vadd.f32 %v4440, %v4447
        %v4450 = vadd.f32 %v4441, %v4447
        %v4451 = vadd.f32 %v4442, %v4447
        %v4452 = vadd.f32 %v4443, %v4447
        %v4453 = vadd.f32 %v4444, %v4447
        %v4454 = vadd.f32 %v4445, %v4447
        %s4455 = scalar_lea.vmem %s332, %s3689
        %vm4456 = vcmask 130048
        %4457 = vst.msk [vmem:[%s4455] sm:$0xff] %vm4456, %v4449
        %4458 = vst.msk [vmem:[%s4455 + $0x8] sm:$0xff] %vm4456, %v4450
        %4459 = vst.msk [vmem:[%s4455 + $0x10] sm:$0xff] %vm4456, %v4451
        %4460 = vst.msk [vmem:[%s4455 + $0x18] sm:$0xff] %vm4456, %v4452
        %4461 = vst.msk [vmem:[%s4455 + $0x20] sm:$0xff] %vm4456, %v4453
        %vm4462 = vcmask 128000
        %4463 = vst.msk [vmem:[%s4455 + $0x28] sm:$0x3f] %vm4462, %v4454
      $region82: #{cnn_spatial_forward.1} parent=55 // loop_footer
        %s3688 = sadd.s32 1, %s3684
      $region83: #{cnn_spatial_forward.1} parent=55 // loop_footer_branch
        %3683 = sbr.rel target = $region79
      $region84: #{cnn_spatial_forward.1} parent=55 // loop_exit
        _
      %p4464 = scmp.lt.s32.totalorder %s20, 1
      %s4465 = scalar_select %p4464, %s20, 1
      %s4466 = smul.addr %s4465, 138
      %s4467 = smul.addr %s4466, 8
      %s4468 = scalar_lea.vmem %s9, %s4467
      // Predicated region
      $region85: #{cnn_spatial_forward.1} parent=55 // pred_check
        %p4469 = pneg %p232
      $region86: #{cnn_spatial_forward.1} parent=55 // pred_check_branch
        %4471 = sbr.rel (%p4469) target = $region88
      $region87: #{cnn_spatial_forward.1} parent=55 // pred_region
        _
      $region88: #{cnn_spatial_forward.1} parent=55 // pred_fallthru
        _
    $region56: #{cnn_spatial_forward.1} parent=5 // pred_fallthru
      _
    %p4472 = scmp.le.s32.totalorder 2, %s15
    // Predicated region
    $region89: #{cnn_spatial_forward.1} parent=5 // pred_check
      %p4473 = pneg %p4472
    $region90: #{cnn_spatial_forward.1} parent=5 // pred_check_branch
      %4475 = sbr.rel (%p4473) target = $region92
    $region91: #{cnn_spatial_forward.1} parent=5 // pred_region
      %s4476 = ssub.s32 %s15, 2
      // Predicated region
      $region93: #{cnn_spatial_forward.1} parent=91 // pred_check
        %p4477 = pneg %p238
      $region94: #{cnn_spatial_forward.1} parent=91 // pred_check_branch
        %4479 = sbr.rel (%p4477) target = $region96
      $region95: #{cnn_spatial_forward.1} parent=91 // pred_region
        %p4480 = scmp.lt.s32.totalorder %s21, 1
        %s4481 = scalar_select %p4480, %s21, 1
        %s4482 = smul.addr %s4481, 138
        %s4483 = smul.addr %s4482, 8
        %s4484 = scalar_lea.vmem %s9, %s4483
      $region96: #{cnn_spatial_forward.1} parent=91 // pred_fallthru
        _
    $region92: #{cnn_spatial_forward.1} parent=5 // pred_fallthru
      _
  $region6: #{cnn_spatial_forward.1} parent=0 // loop_footer
    %s19 = sadd.s32 1, %s15
  $region7: #{cnn_spatial_forward.1} parent=0 // loop_footer_branch
    %14 = sbr.rel target = $region3
  $region8: #{cnn_spatial_forward.1} parent=0 // loop_exit
    _

</llo_original>
